<compile_context>
chip_gen: v5e
topology: v5e:2x2
jax: 0.10.0
libtpu: 0.0.40
codegen_flags: <defaults>
</compile_context>

<pallas_src>
import numpy as np
import jax
import jax.numpy as jnp
from jax.experimental import pallas as pl
from jax.experimental.pallas import tpu as pltpu

# ---------------- model configuration (small but faithful shapes) -----------
B, S, F = 2, 8, 16          # batch, seq_len, feature_dim
R = B * S                   # flattened rows
H = 128                     # hidden_dim (d_model)
HEADS = 4
HD = H // HEADS             # head dim = 32
L = 2                       # num encoder layers
FF = 4 * H                  # dim_feedforward
H2 = H // 2
H4 = H // 4
EPS = 1e-5                  # nn.LayerNorm default eps
SCALE = 1.0 / float(np.sqrt(HD))

# per-layer packed weight-slab column layout (all splits 128-lane aligned)
CQ = HEADS * H              # [0, 512)   masked & pre-scaled per-head Q blocks
CK = CQ + H                 # [512, 640) K
CV = CK + H                 # [640, 768) V
COW = CV + HEADS * H        # [768,1280) per-head row-masked out-proj blocks
CFF = COW + FF              # [1280,1792) ff1 weights
LB_W = CV + FF              # per-layer bias slab: [0,768) qkv | [768,1280) ff1


# ---------------- math helpers (shared by kernel and reference) --------------
def _layer_norm(x, g, b):
    mu = jnp.mean(x, axis=-1, keepdims=True)
    var = jnp.mean((x - mu) ** 2, axis=-1, keepdims=True)
    return (x - mu) * jax.lax.rsqrt(var + EPS) * g + b


def _gelu(x):
    # tanh-approximation GELU (EUP tanh unit).
    c = 0.7978845608028654
    return 0.5 * x * (1.0 + jnp.tanh(c * (x + 0.044715 * x * x * x)))


def _mm(a, b):
    # bf16 x bf16 -> f32 accumulate (MXU-native on every TPU generation).
    return jnp.dot(a.astype(jnp.bfloat16), b.astype(jnp.bfloat16),
                   preferred_element_type=jnp.float32)


def _forward_math(x, w_in, vec, layb, hvec, mask, enc, ff2, headw,
                  approx_recip=False):
    """Shared forward math.  Arguments may be Refs (kernel) or arrays (ref);
    every access is a static slice taken at the point of use."""
    if approx_recip:
        recip = lambda t: pl.reciprocal(t, approx=True)
    else:
        recip = lambda t: 1.0 / t

    NT = (((1,), (1,)), ((), ()))     # contract last dims: A @ B^T

    # ---- input projection (+ bias & positional encoding folded into vec) ----
    h = _mm(x[0:R, 0:F], w_in[0:F, :]) + vec[0:R, :]             # [R, H] f32
    h = _layer_norm(h, vec[16:17, :], vec[17:18, :])             # pre_norm

    # ---- transformer encoder layers (post-norm, GELU FFN) ----
    for l in range(L):
        base = 18 + 6 * l
        wl = enc[l]                                              # [H, CFF] bf16 ref/array

        # fused QKV projection; Q blocks are per-head lane-masked + pre-scaled.
        qkv = _mm(h, wl[:, 0:CV]) + layb[l:l + 1, 0:CV]          # [R, 768] f32
        qkv = qkv.astype(jnp.bfloat16)
        k = qkv[:, CQ:CK]                                        # [R, H] bf16
        v = qkv[:, CK:CV]                                        # [R, H] bf16
        # stack the four masked per-head Q blocks along rows -> [HEADS*R, H]
        q_stack = jnp.concatenate(
            [qkv[:, hh * H:(hh + 1) * H] for hh in range(HEADS)], axis=0)

        scores = jax.lax.dot_general(q_stack, k, NT,
                                     preferred_element_type=jnp.float32)
        scores = scores + mask[0:HEADS * R, 0:R]                 # kill cross-batch keys
        m = jnp.max(scores, axis=-1, keepdims=True)
        e = jnp.exp(scores - m)
        probs = (e * recip(jnp.sum(e, axis=-1, keepdims=True))).astype(jnp.bfloat16)
        ctx = jnp.dot(probs, v, preferred_element_type=jnp.float32)   # [HEADS*R, H]
        ctx = ctx.astype(jnp.bfloat16)

        # out-projection with the head concat folded into row-masked blocks
        attn = _mm(ctx[0:R, :], wl[:, CV:CV + H])
        for hh in range(1, HEADS):
            attn = attn + _mm(ctx[hh * R:(hh + 1) * R, :],
                              wl[:, CV + hh * H:CV + (hh + 1) * H])
        attn = attn + vec[base:base + 1, :]                      # out_proj bias

        h = _layer_norm(h + attn, vec[base + 1:base + 2, :], vec[base + 2:base + 3, :])
        ff = _mm(h, wl[:, COW:CFF]) + layb[l:l + 1, CV:LB_W]     # [R, FF] f32
        ff = _mm(_gelu(ff), ff2[l][:, :]) + vec[base + 5:base + 6, :]
        h = _layer_norm(h + ff, vec[base + 3:base + 4, :], vec[base + 4:base + 5, :])

    # ---- final encoder LayerNorm ----
    h = _layer_norm(h, vec[30:31, :], vec[31:32, :])

    # ---- attention pooling over the sequence (softmax over dim=1) ----
    a = jnp.tanh(_mm(h, headw[:, 0:H]) + hvec[0:1, :])           # [R, H] (lanes>=H2 are 0)
    s = jnp.sum(a * hvec[1:2, :], axis=-1, keepdims=True) + hvec[2:3, 0:1]  # [R, 1]
    s3 = s.reshape(B, S, 1)
    sm = jnp.max(s3, axis=1, keepdims=True)
    se = jnp.exp(s3 - sm)
    w = se * recip(jnp.sum(se, axis=1, keepdims=True))           # [B, S, 1]
    ctxp = jnp.sum(h.reshape(B, S, H) * w, axis=1)               # [B, H]

    # ---- output MLP head (dropout = identity at inference) ----
    o = _gelu(_mm(ctxp, headw[:, H:2 * H]) + hvec[3:4, :])
    o = _gelu(_mm(o, headw[:, 2 * H:3 * H]) + hvec[4:5, :])
    o = jnp.sum(o * hvec[6:7, :], axis=-1, keepdims=True) + hvec[5:6, 0:1]  # [B, 1]
    return o


# ---------------- Pallas kernel ---------------------------------------------
def transformer_kernel(x_ref, win_ref, vec_ref, layb_ref, hvec_ref, mask_ref,
                       e0_ref, e1_ref, f0_ref, f1_ref, headw_ref, out_ref):
    out_ref[...] = _forward_math(
        x_ref, win_ref, vec_ref, layb_ref, hvec_ref, mask_ref,
        (e0_ref, e1_ref), (f0_ref, f1_ref), headw_ref, approx_recip=True)


def forward(x, packed):
    """x: [B, S, F] float32 -> [B, 1] float32."""
    x_flat = x.reshape(R, F)
    vmem = pl.BlockSpec(memory_space=pltpu.MemorySpace.VMEM)
    e0, e1 = packed["enc_w"]
    f0, f1 = packed["ff2_w"]
    return pl.pallas_call(
        transformer_kernel,
        out_shape=jax.ShapeDtypeStruct((B, 1), jnp.float32),
        in_specs=[vmem] * 11,
        out_specs=vmem,
    )(x_flat, packed["w_in"], packed["vec"], packed["layb"], packed["hvec"],
      packed["mask"], e0, e1, f0, f1, packed["head_w"])


# ---------------- deterministic parameter construction & packing ------------
def _sinusoidal_pe(seq_len, d_model):
    pe = np.zeros((seq_len, d_model), np.float32)
    position = np.arange(seq_len, dtype=np.float32)[:, None]
    div_term = np.exp(np.arange(0, d_model, 2, dtype=np.float32)
                      * (-np.log(10000.0) / d_model))
    pe[:, 0::2] = np.sin(position * div_term)
    pe[:, 1::2] = np.cos(position * div_term)    # d_model is even
    return pe


def init_params(key):
    keys = iter(jax.random.split(key, 32))

    def xavier(shape):
        fan_in, fan_out = shape[-2], shape[-1]
        lim = float(np.sqrt(6.0 / (fan_in + fan_out)))
        return jax.random.uniform(next(keys), shape, jnp.float32, -lim, lim)

    zeros = lambda s: jnp.zeros(s, jnp.float32)
    ones = lambda s: jnp.ones(s, jnp.float32)

    p = {}
    # input projection: normal(0, 0.02) per _init_weights ('projection' name)
    p["w_in"] = 0.02 * jax.random.normal(next(keys), (F, H), jnp.float32)
    p["b_in"] = zeros((1, H))
    p["pos"] = jnp.asarray(_sinusoidal_pe(S, H))
    p["pre_g"], p["pre_b"] = ones((1, H)), zeros((1, H))
    p["qkv_w"], p["qkv_b"] = xavier((L, H, 3 * H)), zeros((L, 1, 3 * H))
    p["ow"], p["ob"] = xavier((L, H, H)), zeros((L, 1, H))
    p["ln1_g"], p["ln1_b"] = ones((L, 1, H)), zeros((L, 1, H))
    p["ln2_g"], p["ln2_b"] = ones((L, 1, H)), zeros((L, 1, H))
    p["ff1_w"], p["ff1_b"] = xavier((L, H, FF)), zeros((L, 1, FF))
    p["ff2_w"], p["ff2_b"] = xavier((L, FF, H)), zeros((L, 1, H))
    p["fin_g"], p["fin_b"] = ones((1, H)), zeros((1, H))
    p["wa1"], p["ba1"] = xavier((H, H2)), zeros((1, H2))
    p["wa2"], p["ba2"] = xavier((H2, 1)), zeros((1, 1))
    p["wo1"], p["bo1"] = xavier((H, H2)), zeros((1, H2))
    p["wo2"], p["bo2"] = xavier((H2, H4)), zeros((1, H4))
    p["wo3"], p["bo3"] = xavier((H4, 1)), zeros((1, 1))
    return p


def pack_params(p):
    # --- [32,128] f32 vector slab: pos(+b_in) rows + all H-wide gains/biases
    vec = np.zeros((32, H), np.float32)
    vec[0:R, :] = np.tile(np.asarray(p["pos"]), (B, 1)) + np.asarray(p["b_in"])
    vec[16, :] = np.asarray(p["pre_g"])[0]
    vec[17, :] = np.asarray(p["pre_b"])[0]
    for l in range(L):
        base = 18 + 6 * l
        vec[base, :] = np.asarray(p["ob"])[l, 0]
        vec[base + 1, :] = np.asarray(p["ln1_g"])[l, 0]
        vec[base + 2, :] = np.asarray(p["ln1_b"])[l, 0]
        vec[base + 3, :] = np.asarray(p["ln2_g"])[l, 0]
        vec[base + 4, :] = np.asarray(p["ln2_b"])[l, 0]
        vec[base + 5, :] = np.asarray(p["ff2_b"])[l, 0]
    vec[30, :] = np.asarray(p["fin_g"])[0]
    vec[31, :] = np.asarray(p["fin_b"])[0]

    # --- per-layer bias slab [L, 1280] f32 (masked/scaled qkv bias | ff1 bias)
    layb = np.zeros((L, LB_W), np.float32)
    for l in range(L):
        qb = np.asarray(p["qkv_b"])[l, 0]
        for hh in range(HEADS):
            c0 = hh * HD
            layb[l, hh * H + c0: hh * H + c0 + HD] = qb[c0:c0 + HD] * SCALE
        layb[l, CQ:CK] = qb[H:2 * H]
        layb[l, CK:CV] = qb[2 * H:3 * H]
        layb[l, CV:CV + FF] = np.asarray(p["ff1_b"])[l, 0]

    # --- per-layer weight slabs [H, 1792] bf16 ---
    encs = []
    for l in range(L):
        e = np.zeros((H, CFF), np.float32)
        qw = np.asarray(p["qkv_w"])[l]
        for hh in range(HEADS):
            c0 = hh * HD
            # per-head lane-masked Q block, pre-scaled by 1/sqrt(HD)
            e[:, hh * H + c0: hh * H + c0 + HD] = qw[:, c0:c0 + HD] * SCALE
        e[:, CQ:CK] = qw[:, H:2 * H]
        e[:, CK:CV] = qw[:, 2 * H:3 * H]
        ow = np.asarray(p["ow"])[l]
        for hh in range(HEADS):
            r0 = hh * HD
            # per-head row-masked out-projection block (folds head concat)
            e[r0:r0 + HD, CV + hh * H: CV + (hh + 1) * H] = ow[r0:r0 + HD, :]
        e[:, COW:CFF] = np.asarray(p["ff1_w"])[l]
        encs.append(jnp.asarray(e).astype(jnp.bfloat16))
    ff2s = tuple(jnp.asarray(np.asarray(p["ff2_w"])[l]).astype(jnp.bfloat16)
                 for l in range(L))

    # --- pooled/output head weights [H, 3H] bf16, zero-padded to lane tiles
    hw = np.zeros((H, 3 * H), np.float32)
    hw[:, 0:H2] = np.asarray(p["wa1"])
    hw[:, H:H + H2] = np.asarray(p["wo1"])
    hw[0:H2, 2 * H:2 * H + H4] = np.asarray(p["wo2"])

    hv = np.zeros((8, H), np.float32)
    hv[0, 0:H2] = np.asarray(p["ba1"])[0]
    hv[1, 0:H2] = np.asarray(p["wa2"])[:, 0]
    hv[2, 0] = np.asarray(p["ba2"])[0, 0]
    hv[3, 0:H2] = np.asarray(p["bo1"])[0]
    hv[4, 0:H4] = np.asarray(p["bo2"])[0]
    hv[5, 0] = np.asarray(p["bo3"])[0, 0]
    hv[6, 0:H4] = np.asarray(p["wo3"])[:, 0]

    # --- additive block-diagonal batch mask, tiled over heads: [HEADS*R, R]
    blk = np.full((R, R), -1e30, np.float32)
    for bb in range(B):
        blk[bb * S:(bb + 1) * S, bb * S:(bb + 1) * S] = 0.0
    mask = np.tile(blk, (HEADS, 1))

    return dict(
        w_in=p["w_in"].astype(jnp.bfloat16),
        vec=jnp.asarray(vec), layb=jnp.asarray(layb), hvec=jnp.asarray(hv),
        mask=jnp.asarray(mask),
        enc_w=tuple(encs), ff2_w=ff2s,
        head_w=jnp.asarray(hw).astype(jnp.bfloat16))


if __name__ == "__main__":
    key = jax.random.PRNGKey(0)
    pkey, xkey = jax.random.split(key)
    params = init_params(pkey)
    packed = pack_params(params)
    x = jax.random.normal(xkey, (B, S, F), dtype=jnp.float32)

    out = jax.block_until_ready(forward(x, packed))
    assert out.shape == (B, 1), out.shape

    # pure-JAX reference using the exact same packed weights and math
    ref_fn = jax.jit(lambda xx: _forward_math(
        xx.reshape(R, F), packed["w_in"], packed["vec"], packed["layb"],
        packed["hvec"], packed["mask"], packed["enc_w"], packed["ff2_w"],
        packed["head_w"], approx_recip=False))
    ref = jax.block_until_ready(ref_fn(x))
    np.testing.assert_allclose(np.asarray(out), np.asarray(ref),
                               rtol=5e-2, atol=5e-2)

    print("KERNEL_OK")
</pallas_src>

<mosaic_0001>
module attributes {stable_mosaic.version = 11 : i64} {
  func.func @transformer_kernel(%arg0: memref<16x16xf32, #tpu.memory_space<vmem>>, %arg1: memref<16x128xbf16, #tpu.memory_space<vmem>>, %arg2: memref<32x128xf32, #tpu.memory_space<vmem>>, %arg3: memref<2x1280xf32, #tpu.memory_space<vmem>>, %arg4: memref<8x128xf32, #tpu.memory_space<vmem>>, %arg5: memref<64x16xf32, #tpu.memory_space<vmem>>, %arg6: memref<128x1792xbf16, #tpu.memory_space<vmem>>, %arg7: memref<128x1792xbf16, #tpu.memory_space<vmem>>, %arg8: memref<512x128xbf16, #tpu.memory_space<vmem>>, %arg9: memref<512x128xbf16, #tpu.memory_space<vmem>>, %arg10: memref<128x384xbf16, #tpu.memory_space<vmem>>, %arg11: memref<2x1xf32, #tpu.memory_space<vmem>>) attributes {dimension_semantics = [], scalar_prefetch = 0 : i64, scratch_operands = 0 : i64, tpu.core_type = #tpu.core_type<tc>} {
    %c0 = arith.constant 0 : index
    %c0_0 = arith.constant 0 : index
    %0 = vector.load %arg0[%c0, %c0_0] : memref<16x16xf32, #tpu.memory_space<vmem>>, vector<16x16xf32>
    %c0_1 = arith.constant 0 : index
    %c0_2 = arith.constant 0 : index
    %1 = vector.load %arg1[%c0_1, %c0_2] : memref<16x128xbf16, #tpu.memory_space<vmem>>, vector<16x128xbf16>
    %2 = arith.truncf %0 : vector<16x16xf32> to vector<16x16xbf16>
    %cst = arith.constant dense<0.000000e+00> : vector<16x128xf32>
    %3 = tpu.matmul %2, %1, %cst {dimension_numbers = #tpu.dot_dimension_numbers<[1], [0], [0], [1], [0, 0, 1, 1], [], []>} : vector<16x16xbf16>, vector<16x128xbf16>, vector<16x128xf32> -> vector<16x128xf32>
    %c0_3 = arith.constant 0 : index
    %c0_4 = arith.constant 0 : index
    %4 = vector.load %arg2[%c0_3, %c0_4] : memref<32x128xf32, #tpu.memory_space<vmem>>, vector<16x128xf32>
    %5 = arith.addf %3, %4 : vector<16x128xf32>
    %c16 = arith.constant 16 : index
    %c0_5 = arith.constant 0 : index
    %6 = vector.load %arg2[%c16, %c0_5] : memref<32x128xf32, #tpu.memory_space<vmem>>, vector<1x128xf32>
    %c17 = arith.constant 17 : index
    %c0_6 = arith.constant 0 : index
    %7 = vector.load %arg2[%c17, %c0_6] : memref<32x128xf32, #tpu.memory_space<vmem>>, vector<1x128xf32>
    %cst_7 = arith.constant dense<0.000000e+00> : vector<16xf32>
    %8 = vector.multi_reduction <add>, %5, %cst_7 [1] : vector<16x128xf32> to vector<16xf32>
    %9 = vector.shape_cast %8 : vector<16xf32> to vector<16x1xf32>
    %cst_8 = arith.constant 1.280000e+02 : f32
    %10 = vector.broadcast %cst_8 : f32 to vector<16x1xf32>
    %11 = arith.divf %9, %10 : vector<16x1xf32>
    %12 = vector.broadcast %11 : vector<16x1xf32> to vector<16x128xf32>
    %13 = arith.subf %5, %12 : vector<16x128xf32>
    %14 = arith.mulf %13, %13 : vector<16x128xf32>
    %cst_9 = arith.constant dense<0.000000e+00> : vector<16xf32>
    %15 = vector.multi_reduction <add>, %14, %cst_9 [1] : vector<16x128xf32> to vector<16xf32>
    %16 = vector.shape_cast %15 : vector<16xf32> to vector<16x1xf32>
    %cst_10 = arith.constant 1.280000e+02 : f32
    %17 = vector.broadcast %cst_10 : f32 to vector<16x1xf32>
    %18 = arith.divf %16, %17 : vector<16x1xf32>
    %19 = vector.broadcast %11 : vector<16x1xf32> to vector<16x128xf32>
    %20 = arith.subf %5, %19 : vector<16x128xf32>
    %cst_11 = arith.constant 9.99999974E-6 : f32
    %21 = vector.broadcast %cst_11 : f32 to vector<16x1xf32>
    %22 = arith.addf %18, %21 : vector<16x1xf32>
    %23 = math.rsqrt %22 : vector<16x1xf32>
    %24 = vector.broadcast %23 : vector<16x1xf32> to vector<16x128xf32>
    %25 = arith.mulf %20, %24 : vector<16x128xf32>
    %26 = vector.broadcast %6 : vector<1x128xf32> to vector<16x128xf32>
    %27 = arith.mulf %25, %26 : vector<16x128xf32>
    %28 = vector.broadcast %7 : vector<1x128xf32> to vector<16x128xf32>
    %29 = arith.addf %27, %28 : vector<16x128xf32>
    %c0_12 = arith.constant 0 : index
    %c0_13 = arith.constant 0 : index
    %30 = vector.load %arg6[%c0_12, %c0_13] : memref<128x1792xbf16, #tpu.memory_space<vmem>>, vector<128x768xbf16>
    %31 = arith.truncf %29 : vector<16x128xf32> to vector<16x128xbf16>
    %cst_14 = arith.constant dense<0.000000e+00> : vector<16x768xf32>
    %32 = tpu.matmul %31, %30, %cst_14 {dimension_numbers = #tpu.dot_dimension_numbers<[1], [0], [0], [1], [0, 0, 1, 1], [], []>} : vector<16x128xbf16>, vector<128x768xbf16>, vector<16x768xf32> -> vector<16x768xf32>
    %c0_15 = arith.constant 0 : index
    %c0_16 = arith.constant 0 : index
    %33 = vector.load %arg3[%c0_15, %c0_16] : memref<2x1280xf32, #tpu.memory_space<vmem>>, vector<1x768xf32>
    %34 = vector.broadcast %33 : vector<1x768xf32> to vector<16x768xf32>
    %35 = arith.addf %32, %34 : vector<16x768xf32>
    %36 = arith.truncf %35 : vector<16x768xf32> to vector<16x768xbf16>
    %37 = vector.extract_strided_slice %36 {offsets = [0, 512], sizes = [16, 128], strides = [1, 1]} : vector<16x768xbf16> to vector<16x128xbf16>
    %38 = vector.extract_strided_slice %36 {offsets = [0, 640], sizes = [16, 128], strides = [1, 1]} : vector<16x768xbf16> to vector<16x128xbf16>
    %39 = vector.extract_strided_slice %36 {offsets = [0, 0], sizes = [16, 128], strides = [1, 1]} : vector<16x768xbf16> to vector<16x128xbf16>
    %40 = vector.extract_strided_slice %36 {offsets = [0, 128], sizes = [16, 128], strides = [1, 1]} : vector<16x768xbf16> to vector<16x128xbf16>
    %41 = vector.extract_strided_slice %36 {offsets = [0, 256], sizes = [16, 128], strides = [1, 1]} : vector<16x768xbf16> to vector<16x128xbf16>
    %42 = vector.extract_strided_slice %36 {offsets = [0, 384], sizes = [16, 128], strides = [1, 1]} : vector<16x768xbf16> to vector<16x128xbf16>
    %43 = tpu.concatenate %39, %40, %41, %42 in 0 : vector<16x128xbf16>, vector<16x128xbf16>, vector<16x128xbf16>, vector<16x128xbf16> -> vector<64x128xbf16>
    %cst_17 = arith.constant dense<0.000000e+00> : vector<64x16xf32>
    %44 = tpu.matmul %43, %37, %cst_17 {dimension_numbers = #tpu.dot_dimension_numbers<[1], [1], [0], [0], [0, 0, 1, 0], [], []>} : vector<64x128xbf16>, vector<16x128xbf16>, vector<64x16xf32> -> vector<64x16xf32>
    %c0_18 = arith.constant 0 : index
    %c0_19 = arith.constant 0 : index
    %45 = vector.load %arg5[%c0_18, %c0_19] : memref<64x16xf32, #tpu.memory_space<vmem>>, vector<64x16xf32>
    %46 = arith.addf %44, %45 : vector<64x16xf32>
    %cst_20 = arith.constant dense<0xFF800000> : vector<64xf32>
    %47 = vector.multi_reduction <maximumf>, %46, %cst_20 [1] : vector<64x16xf32> to vector<64xf32>
    %48 = vector.shape_cast %47 : vector<64xf32> to vector<64x1xf32>
    %49 = vector.broadcast %48 : vector<64x1xf32> to vector<64x16xf32>
    %50 = arith.subf %46, %49 : vector<64x16xf32>
    %51 = math.exp %50 : vector<64x16xf32>
    %cst_21 = arith.constant dense<0.000000e+00> : vector<64xf32>
    %52 = vector.multi_reduction <add>, %51, %cst_21 [1] : vector<64x16xf32> to vector<64xf32>
    %53 = vector.shape_cast %52 : vector<64xf32> to vector<64x1xf32>
    %54 = tpu.reciprocal %53 {approx = true} : vector<64x1xf32> -> vector<64x1xf32>
    %55 = vector.broadcast %54 : vector<64x1xf32> to vector<64x16xf32>
    %56 = arith.mulf %51, %55 : vector<64x16xf32>
    %57 = arith.truncf %56 : vector<64x16xf32> to vector<64x16xbf16>
    %cst_22 = arith.constant dense<0.000000e+00> : vector<64x128xf32>
    %58 = tpu.matmul %57, %38, %cst_22 {dimension_numbers = #tpu.dot_dimension_numbers<[1], [0], [0], [1], [0, 0, 1, 1], [], []>} : vector<64x16xbf16>, vector<16x128xbf16>, vector<64x128xf32> -> vector<64x128xf32>
    %59 = arith.truncf %58 : vector<64x128xf32> to vector<64x128xbf16>
    %60 = vector.extract_strided_slice %59 {offsets = [0, 0], sizes = [16, 128], strides = [1, 1]} : vector<64x128xbf16> to vector<16x128xbf16>
    %c0_23 = arith.constant 0 : index
    %c768 = arith.constant 768 : index
    %61 = vector.load %arg6[%c0_23, %c768] : memref<128x1792xbf16, #tpu.memory_space<vmem>>, vector<128x128xbf16>
    %cst_24 = arith.constant dense<0.000000e+00> : vector<16x128xf32>
    %62 = tpu.matmul %60, %61, %cst_24 {dimension_numbers = #tpu.dot_dimension_numbers<[1], [0], [0], [1], [0, 0, 1, 1], [], []>} : vector<16x128xbf16>, vector<128x128xbf16>, vector<16x128xf32> -> vector<16x128xf32>
    %63 = vector.extract_strided_slice %59 {offsets = [16, 0], sizes = [16, 128], strides = [1, 1]} : vector<64x128xbf16> to vector<16x128xbf16>
    %c0_25 = arith.constant 0 : index
    %c896 = arith.constant 896 : index
    %64 = vector.load %arg6[%c0_25, %c896] : memref<128x1792xbf16, #tpu.memory_space<vmem>>, vector<128x128xbf16>
    %cst_26 = arith.constant dense<0.000000e+00> : vector<16x128xf32>
    %65 = tpu.matmul %63, %64, %cst_26 {dimension_numbers = #tpu.dot_dimension_numbers<[1], [0], [0], [1], [0, 0, 1, 1], [], []>} : vector<16x128xbf16>, vector<128x128xbf16>, vector<16x128xf32> -> vector<16x128xf32>
    %66 = arith.addf %62, %65 : vector<16x128xf32>
    %67 = vector.extract_strided_slice %59 {offsets = [32, 0], sizes = [16, 128], strides = [1, 1]} : vector<64x128xbf16> to vector<16x128xbf16>
    %c0_27 = arith.constant 0 : index
    %c1024 = arith.constant 1024 : index
    %68 = vector.load %arg6[%c0_27, %c1024] : memref<128x1792xbf16, #tpu.memory_space<vmem>>, vector<128x128xbf16>
    %cst_28 = arith.constant dense<0.000000e+00> : vector<16x128xf32>
    %69 = tpu.matmul %67, %68, %cst_28 {dimension_numbers = #tpu.dot_dimension_numbers<[1], [0], [0], [1], [0, 0, 1, 1], [], []>} : vector<16x128xbf16>, vector<128x128xbf16>, vector<16x128xf32> -> vector<16x128xf32>
    %70 = arith.addf %66, %69 : vector<16x128xf32>
    %71 = vector.extract_strided_slice %59 {offsets = [48, 0], sizes = [16, 128], strides = [1, 1]} : vector<64x128xbf16> to vector<16x128xbf16>
    %c0_29 = arith.constant 0 : index
    %c1152 = arith.constant 1152 : index
    %72 = vector.load %arg6[%c0_29, %c1152] : memref<128x1792xbf16, #tpu.memory_space<vmem>>, vector<128x128xbf16>
    %cst_30 = arith.constant dense<0.000000e+00> : vector<16x128xf32>
    %73 = tpu.matmul %71, %72, %cst_30 {dimension_numbers = #tpu.dot_dimension_numbers<[1], [0], [0], [1], [0, 0, 1, 1], [], []>} : vector<16x128xbf16>, vector<128x128xbf16>, vector<16x128xf32> -> vector<16x128xf32>
    %74 = arith.addf %70, %73 : vector<16x128xf32>
    %c18 = arith.constant 18 : index
    %c0_31 = arith.constant 0 : index
    %75 = vector.load %arg2[%c18, %c0_31] : memref<32x128xf32, #tpu.memory_space<vmem>>, vector<1x128xf32>
    %76 = vector.broadcast %75 : vector<1x128xf32> to vector<16x128xf32>
    %77 = arith.addf %74, %76 : vector<16x128xf32>
    %78 = arith.addf %29, %77 : vector<16x128xf32>
    %c19 = arith.constant 19 : index
    %c0_32 = arith.constant 0 : index
    %79 = vector.load %arg2[%c19, %c0_32] : memref<32x128xf32, #tpu.memory_space<vmem>>, vector<1x128xf32>
    %c20 = arith.constant 20 : index
    %c0_33 = arith.constant 0 : index
    %80 = vector.load %arg2[%c20, %c0_33] : memref<32x128xf32, #tpu.memory_space<vmem>>, vector<1x128xf32>
    %cst_34 = arith.constant dense<0.000000e+00> : vector<16xf32>
    %81 = vector.multi_reduction <add>, %78, %cst_34 [1] : vector<16x128xf32> to vector<16xf32>
    %82 = vector.shape_cast %81 : vector<16xf32> to vector<16x1xf32>
    %cst_35 = arith.constant 1.280000e+02 : f32
    %83 = vector.broadcast %cst_35 : f32 to vector<16x1xf32>
    %84 = arith.divf %82, %83 : vector<16x1xf32>
    %85 = vector.broadcast %84 : vector<16x1xf32> to vector<16x128xf32>
    %86 = arith.subf %78, %85 : vector<16x128xf32>
    %87 = arith.mulf %86, %86 : vector<16x128xf32>
    %cst_36 = arith.constant dense<0.000000e+00> : vector<16xf32>
    %88 = vector.multi_reduction <add>, %87, %cst_36 [1] : vector<16x128xf32> to vector<16xf32>
    %89 = vector.shape_cast %88 : vector<16xf32> to vector<16x1xf32>
    %cst_37 = arith.constant 1.280000e+02 : f32
    %90 = vector.broadcast %cst_37 : f32 to vector<16x1xf32>
    %91 = arith.divf %89, %90 : vector<16x1xf32>
    %92 = vector.broadcast %84 : vector<16x1xf32> to vector<16x128xf32>
    %93 = arith.subf %78, %92 : vector<16x128xf32>
    %cst_38 = arith.constant 9.99999974E-6 : f32
    %94 = vector.broadcast %cst_38 : f32 to vector<16x1xf32>
    %95 = arith.addf %91, %94 : vector<16x1xf32>
    %96 = math.rsqrt %95 : vector<16x1xf32>
    %97 = vector.broadcast %96 : vector<16x1xf32> to vector<16x128xf32>
    %98 = arith.mulf %93, %97 : vector<16x128xf32>
    %99 = vector.broadcast %79 : vector<1x128xf32> to vector<16x128xf32>
    %100 = arith.mulf %98, %99 : vector<16x128xf32>
    %101 = vector.broadcast %80 : vector<1x128xf32> to vector<16x128xf32>
    %102 = arith.addf %100, %101 : vector<16x128xf32>
    %c0_39 = arith.constant 0 : index
    %c1280 = arith.constant 1280 : index
    %103 = vector.load %arg6[%c0_39, %c1280] : memref<128x1792xbf16, #tpu.memory_space<vmem>>, vector<128x512xbf16>
    %104 = arith.truncf %102 : vector<16x128xf32> to vector<16x128xbf16>
    %cst_40 = arith.constant dense<0.000000e+00> : vector<16x512xf32>
    %105 = tpu.matmul %104, %103, %cst_40 {dimension_numbers = #tpu.dot_dimension_numbers<[1], [0], [0], [1], [0, 0, 1, 1], [], []>} : vector<16x128xbf16>, vector<128x512xbf16>, vector<16x512xf32> -> vector<16x512xf32>
    %c0_41 = arith.constant 0 : index
    %c768_42 = arith.constant 768 : index
    %106 = vector.load %arg3[%c0_41, %c768_42] : memref<2x1280xf32, #tpu.memory_space<vmem>>, vector<1x512xf32>
    %107 = vector.broadcast %106 : vector<1x512xf32> to vector<16x512xf32>
    %108 = arith.addf %105, %107 : vector<16x512xf32>
    %cst_43 = arith.constant 5.000000e-01 : f32
    %109 = vector.broadcast %cst_43 : f32 to vector<16x512xf32>
    %110 = arith.mulf %109, %108 : vector<16x512xf32>
    %cst_44 = arith.constant 4.471500e-02 : f32
    %111 = vector.broadcast %cst_44 : f32 to vector<16x512xf32>
    %112 = arith.mulf %111, %108 : vector<16x512xf32>
    %113 = arith.mulf %112, %108 : vector<16x512xf32>
    %114 = arith.mulf %113, %108 : vector<16x512xf32>
    %115 = arith.addf %108, %114 : vector<16x512xf32>
    %cst_45 = arith.constant 0.797884583 : f32
    %116 = vector.broadcast %cst_45 : f32 to vector<16x512xf32>
    %117 = arith.mulf %116, %115 : vector<16x512xf32>
    %118 = math.tanh %117 : vector<16x512xf32>
    %cst_46 = arith.constant 1.000000e+00 : f32
    %119 = vector.broadcast %cst_46 : f32 to vector<16x512xf32>
    %120 = arith.addf %119, %118 : vector<16x512xf32>
    %121 = arith.mulf %110, %120 : vector<16x512xf32>
    %c0_47 = arith.constant 0 : index
    %c0_48 = arith.constant 0 : index
    %122 = vector.load %arg8[%c0_47, %c0_48] : memref<512x128xbf16, #tpu.memory_space<vmem>>, vector<512x128xbf16>
    %123 = arith.truncf %121 : vector<16x512xf32> to vector<16x512xbf16>
    %cst_49 = arith.constant dense<0.000000e+00> : vector<16x128xf32>
    %124 = tpu.matmul %123, %122, %cst_49 {dimension_numbers = #tpu.dot_dimension_numbers<[1], [0], [0], [1], [0, 0, 1, 1], [], []>} : vector<16x512xbf16>, vector<512x128xbf16>, vector<16x128xf32> -> vector<16x128xf32>
    %c23 = arith.constant 23 : index
    %c0_50 = arith.constant 0 : index
    %125 = vector.load %arg2[%c23, %c0_50] : memref<32x128xf32, #tpu.memory_space<vmem>>, vector<1x128xf32>
    %126 = vector.broadcast %125 : vector<1x128xf32> to vector<16x128xf32>
    %127 = arith.addf %124, %126 : vector<16x128xf32>
    %128 = arith.addf %102, %127 : vector<16x128xf32>
    %c21 = arith.constant 21 : index
    %c0_51 = arith.constant 0 : index
    %129 = vector.load %arg2[%c21, %c0_51] : memref<32x128xf32, #tpu.memory_space<vmem>>, vector<1x128xf32>
    %c22 = arith.constant 22 : index
    %c0_52 = arith.constant 0 : index
    %130 = vector.load %arg2[%c22, %c0_52] : memref<32x128xf32, #tpu.memory_space<vmem>>, vector<1x128xf32>
    %cst_53 = arith.constant dense<0.000000e+00> : vector<16xf32>
    %131 = vector.multi_reduction <add>, %128, %cst_53 [1] : vector<16x128xf32> to vector<16xf32>
    %132 = vector.shape_cast %131 : vector<16xf32> to vector<16x1xf32>
    %cst_54 = arith.constant 1.280000e+02 : f32
    %133 = vector.broadcast %cst_54 : f32 to vector<16x1xf32>
    %134 = arith.divf %132, %133 : vector<16x1xf32>
    %135 = vector.broadcast %134 : vector<16x1xf32> to vector<16x128xf32>
    %136 = arith.subf %128, %135 : vector<16x128xf32>
    %137 = arith.mulf %136, %136 : vector<16x128xf32>
    %cst_55 = arith.constant dense<0.000000e+00> : vector<16xf32>
    %138 = vector.multi_reduction <add>, %137, %cst_55 [1] : vector<16x128xf32> to vector<16xf32>
    %139 = vector.shape_cast %138 : vector<16xf32> to vector<16x1xf32>
    %cst_56 = arith.constant 1.280000e+02 : f32
    %140 = vector.broadcast %cst_56 : f32 to vector<16x1xf32>
    %141 = arith.divf %139, %140 : vector<16x1xf32>
    %142 = vector.broadcast %134 : vector<16x1xf32> to vector<16x128xf32>
    %143 = arith.subf %128, %142 : vector<16x128xf32>
    %cst_57 = arith.constant 9.99999974E-6 : f32
    %144 = vector.broadcast %cst_57 : f32 to vector<16x1xf32>
    %145 = arith.addf %141, %144 : vector<16x1xf32>
    %146 = math.rsqrt %145 : vector<16x1xf32>
    %147 = vector.broadcast %146 : vector<16x1xf32> to vector<16x128xf32>
    %148 = arith.mulf %143, %147 : vector<16x128xf32>
    %149 = vector.broadcast %129 : vector<1x128xf32> to vector<16x128xf32>
    %150 = arith.mulf %148, %149 : vector<16x128xf32>
    %151 = vector.broadcast %130 : vector<1x128xf32> to vector<16x128xf32>
    %152 = arith.addf %150, %151 : vector<16x128xf32>
    %c0_58 = arith.constant 0 : index
    %c0_59 = arith.constant 0 : index
    %153 = vector.load %arg7[%c0_58, %c0_59] : memref<128x1792xbf16, #tpu.memory_space<vmem>>, vector<128x768xbf16>
    %154 = arith.truncf %152 : vector<16x128xf32> to vector<16x128xbf16>
    %cst_60 = arith.constant dense<0.000000e+00> : vector<16x768xf32>
    %155 = tpu.matmul %154, %153, %cst_60 {dimension_numbers = #tpu.dot_dimension_numbers<[1], [0], [0], [1], [0, 0, 1, 1], [], []>} : vector<16x128xbf16>, vector<128x768xbf16>, vector<16x768xf32> -> vector<16x768xf32>
    %c1 = arith.constant 1 : index
    %c0_61 = arith.constant 0 : index
    %156 = vector.load %arg3[%c1, %c0_61] : memref<2x1280xf32, #tpu.memory_space<vmem>>, vector<1x768xf32>
    %157 = vector.broadcast %156 : vector<1x768xf32> to vector<16x768xf32>
    %158 = arith.addf %155, %157 : vector<16x768xf32>
    %159 = arith.truncf %158 : vector<16x768xf32> to vector<16x768xbf16>
    %160 = vector.extract_strided_slice %159 {offsets = [0, 512], sizes = [16, 128], strides = [1, 1]} : vector<16x768xbf16> to vector<16x128xbf16>
    %161 = vector.extract_strided_slice %159 {offsets = [0, 640], sizes = [16, 128], strides = [1, 1]} : vector<16x768xbf16> to vector<16x128xbf16>
    %162 = vector.extract_strided_slice %159 {offsets = [0, 0], sizes = [16, 128], strides = [1, 1]} : vector<16x768xbf16> to vector<16x128xbf16>
    %163 = vector.extract_strided_slice %159 {offsets = [0, 128], sizes = [16, 128], strides = [1, 1]} : vector<16x768xbf16> to vector<16x128xbf16>
    %164 = vector.extract_strided_slice %159 {offsets = [0, 256], sizes = [16, 128], strides = [1, 1]} : vector<16x768xbf16> to vector<16x128xbf16>
    %165 = vector.extract_strided_slice %159 {offsets = [0, 384], sizes = [16, 128], strides = [1, 1]} : vector<16x768xbf16> to vector<16x128xbf16>
    %166 = tpu.concatenate %162, %163, %164, %165 in 0 : vector<16x128xbf16>, vector<16x128xbf16>, vector<16x128xbf16>, vector<16x128xbf16> -> vector<64x128xbf16>
    %cst_62 = arith.constant dense<0.000000e+00> : vector<64x16xf32>
    %167 = tpu.matmul %166, %160, %cst_62 {dimension_numbers = #tpu.dot_dimension_numbers<[1], [1], [0], [0], [0, 0, 1, 0], [], []>} : vector<64x128xbf16>, vector<16x128xbf16>, vector<64x16xf32> -> vector<64x16xf32>
    %c0_63 = arith.constant 0 : index
    %c0_64 = arith.constant 0 : index
    %168 = vector.load %arg5[%c0_63, %c0_64] : memref<64x16xf32, #tpu.memory_space<vmem>>, vector<64x16xf32>
    %169 = arith.addf %167, %168 : vector<64x16xf32>
    %cst_65 = arith.constant dense<0xFF800000> : vector<64xf32>
    %170 = vector.multi_reduction <maximumf>, %169, %cst_65 [1] : vector<64x16xf32> to vector<64xf32>
    %171 = vector.shape_cast %170 : vector<64xf32> to vector<64x1xf32>
    %172 = vector.broadcast %171 : vector<64x1xf32> to vector<64x16xf32>
    %173 = arith.subf %169, %172 : vector<64x16xf32>
    %174 = math.exp %173 : vector<64x16xf32>
    %cst_66 = arith.constant dense<0.000000e+00> : vector<64xf32>
    %175 = vector.multi_reduction <add>, %174, %cst_66 [1] : vector<64x16xf32> to vector<64xf32>
    %176 = vector.shape_cast %175 : vector<64xf32> to vector<64x1xf32>
    %177 = tpu.reciprocal %176 {approx = true} : vector<64x1xf32> -> vector<64x1xf32>
    %178 = vector.broadcast %177 : vector<64x1xf32> to vector<64x16xf32>
    %179 = arith.mulf %174, %178 : vector<64x16xf32>
    %180 = arith.truncf %179 : vector<64x16xf32> to vector<64x16xbf16>
    %cst_67 = arith.constant dense<0.000000e+00> : vector<64x128xf32>
    %181 = tpu.matmul %180, %161, %cst_67 {dimension_numbers = #tpu.dot_dimension_numbers<[1], [0], [0], [1], [0, 0, 1, 1], [], []>} : vector<64x16xbf16>, vector<16x128xbf16>, vector<64x128xf32> -> vector<64x128xf32>
    %182 = arith.truncf %181 : vector<64x128xf32> to vector<64x128xbf16>
    %183 = vector.extract_strided_slice %182 {offsets = [0, 0], sizes = [16, 128], strides = [1, 1]} : vector<64x128xbf16> to vector<16x128xbf16>
    %c0_68 = arith.constant 0 : index
    %c768_69 = arith.constant 768 : index
    %184 = vector.load %arg7[%c0_68, %c768_69] : memref<128x1792xbf16, #tpu.memory_space<vmem>>, vector<128x128xbf16>
    %cst_70 = arith.constant dense<0.000000e+00> : vector<16x128xf32>
    %185 = tpu.matmul %183, %184, %cst_70 {dimension_numbers = #tpu.dot_dimension_numbers<[1], [0], [0], [1], [0, 0, 1, 1], [], []>} : vector<16x128xbf16>, vector<128x128xbf16>, vector<16x128xf32> -> vector<16x128xf32>
    %186 = vector.extract_strided_slice %182 {offsets = [16, 0], sizes = [16, 128], strides = [1, 1]} : vector<64x128xbf16> to vector<16x128xbf16>
    %c0_71 = arith.constant 0 : index
    %c896_72 = arith.constant 896 : index
    %187 = vector.load %arg7[%c0_71, %c896_72] : memref<128x1792xbf16, #tpu.memory_space<vmem>>, vector<128x128xbf16>
    %cst_73 = arith.constant dense<0.000000e+00> : vector<16x128xf32>
    %188 = tpu.matmul %186, %187, %cst_73 {dimension_numbers = #tpu.dot_dimension_numbers<[1], [0], [0], [1], [0, 0, 1, 1], [], []>} : vector<16x128xbf16>, vector<128x128xbf16>, vector<16x128xf32> -> vector<16x128xf32>
    %189 = arith.addf %185, %188 : vector<16x128xf32>
    %190 = vector.extract_strided_slice %182 {offsets = [32, 0], sizes = [16, 128], strides = [1, 1]} : vector<64x128xbf16> to vector<16x128xbf16>
    %c0_74 = arith.constant 0 : index
    %c1024_75 = arith.constant 1024 : index
    %191 = vector.load %arg7[%c0_74, %c1024_75] : memref<128x1792xbf16, #tpu.memory_space<vmem>>, vector<128x128xbf16>
    %cst_76 = arith.constant dense<0.000000e+00> : vector<16x128xf32>
    %192 = tpu.matmul %190, %191, %cst_76 {dimension_numbers = #tpu.dot_dimension_numbers<[1], [0], [0], [1], [0, 0, 1, 1], [], []>} : vector<16x128xbf16>, vector<128x128xbf16>, vector<16x128xf32> -> vector<16x128xf32>
    %193 = arith.addf %189, %192 : vector<16x128xf32>
    %194 = vector.extract_strided_slice %182 {offsets = [48, 0], sizes = [16, 128], strides = [1, 1]} : vector<64x128xbf16> to vector<16x128xbf16>
    %c0_77 = arith.constant 0 : index
    %c1152_78 = arith.constant 1152 : index
    %195 = vector.load %arg7[%c0_77, %c1152_78] : memref<128x1792xbf16, #tpu.memory_space<vmem>>, vector<128x128xbf16>
    %cst_79 = arith.constant dense<0.000000e+00> : vector<16x128xf32>
    %196 = tpu.matmul %194, %195, %cst_79 {dimension_numbers = #tpu.dot_dimension_numbers<[1], [0], [0], [1], [0, 0, 1, 1], [], []>} : vector<16x128xbf16>, vector<128x128xbf16>, vector<16x128xf32> -> vector<16x128xf32>
    %197 = arith.addf %193, %196 : vector<16x128xf32>
    %c24 = arith.constant 24 : index
    %c0_80 = arith.constant 0 : index
    %198 = vector.load %arg2[%c24, %c0_80] : memref<32x128xf32, #tpu.memory_space<vmem>>, vector<1x128xf32>
    %199 = vector.broadcast %198 : vector<1x128xf32> to vector<16x128xf32>
    %200 = arith.addf %197, %199 : vector<16x128xf32>
    %201 = arith.addf %152, %200 : vector<16x128xf32>
    %c25 = arith.constant 25 : index
    %c0_81 = arith.constant 0 : index
    %202 = vector.load %arg2[%c25, %c0_81] : memref<32x128xf32, #tpu.memory_space<vmem>>, vector<1x128xf32>
    %c26 = arith.constant 26 : index
    %c0_82 = arith.constant 0 : index
    %203 = vector.load %arg2[%c26, %c0_82] : memref<32x128xf32, #tpu.memory_space<vmem>>, vector<1x128xf32>
    %cst_83 = arith.constant dense<0.000000e+00> : vector<16xf32>
    %204 = vector.multi_reduction <add>, %201, %cst_83 [1] : vector<16x128xf32> to vector<16xf32>
    %205 = vector.shape_cast %204 : vector<16xf32> to vector<16x1xf32>
    %cst_84 = arith.constant 1.280000e+02 : f32
    %206 = vector.broadcast %cst_84 : f32 to vector<16x1xf32>
    %207 = arith.divf %205, %206 : vector<16x1xf32>
    %208 = vector.broadcast %207 : vector<16x1xf32> to vector<16x128xf32>
    %209 = arith.subf %201, %208 : vector<16x128xf32>
    %210 = arith.mulf %209, %209 : vector<16x128xf32>
    %cst_85 = arith.constant dense<0.000000e+00> : vector<16xf32>
    %211 = vector.multi_reduction <add>, %210, %cst_85 [1] : vector<16x128xf32> to vector<16xf32>
    %212 = vector.shape_cast %211 : vector<16xf32> to vector<16x1xf32>
    %cst_86 = arith.constant 1.280000e+02 : f32
    %213 = vector.broadcast %cst_86 : f32 to vector<16x1xf32>
    %214 = arith.divf %212, %213 : vector<16x1xf32>
    %215 = vector.broadcast %207 : vector<16x1xf32> to vector<16x128xf32>
    %216 = arith.subf %201, %215 : vector<16x128xf32>
    %cst_87 = arith.constant 9.99999974E-6 : f32
    %217 = vector.broadcast %cst_87 : f32 to vector<16x1xf32>
    %218 = arith.addf %214, %217 : vector<16x1xf32>
    %219 = math.rsqrt %218 : vector<16x1xf32>
    %220 = vector.broadcast %219 : vector<16x1xf32> to vector<16x128xf32>
    %221 = arith.mulf %216, %220 : vector<16x128xf32>
    %222 = vector.broadcast %202 : vector<1x128xf32> to vector<16x128xf32>
    %223 = arith.mulf %221, %222 : vector<16x128xf32>
    %224 = vector.broadcast %203 : vector<1x128xf32> to vector<16x128xf32>
    %225 = arith.addf %223, %224 : vector<16x128xf32>
    %c0_88 = arith.constant 0 : index
    %c1280_89 = arith.constant 1280 : index
    %226 = vector.load %arg7[%c0_88, %c1280_89] : memref<128x1792xbf16, #tpu.memory_space<vmem>>, vector<128x512xbf16>
    %227 = arith.truncf %225 : vector<16x128xf32> to vector<16x128xbf16>
    %cst_90 = arith.constant dense<0.000000e+00> : vector<16x512xf32>
    %228 = tpu.matmul %227, %226, %cst_90 {dimension_numbers = #tpu.dot_dimension_numbers<[1], [0], [0], [1], [0, 0, 1, 1], [], []>} : vector<16x128xbf16>, vector<128x512xbf16>, vector<16x512xf32> -> vector<16x512xf32>
    %c1_91 = arith.constant 1 : index
    %c768_92 = arith.constant 768 : index
    %229 = vector.load %arg3[%c1_91, %c768_92] : memref<2x1280xf32, #tpu.memory_space<vmem>>, vector<1x512xf32>
    %230 = vector.broadcast %229 : vector<1x512xf32> to vector<16x512xf32>
    %231 = arith.addf %228, %230 : vector<16x512xf32>
    %cst_93 = arith.constant 5.000000e-01 : f32
    %232 = vector.broadcast %cst_93 : f32 to vector<16x512xf32>
    %233 = arith.mulf %232, %231 : vector<16x512xf32>
    %cst_94 = arith.constant 4.471500e-02 : f32
    %234 = vector.broadcast %cst_94 : f32 to vector<16x512xf32>
    %235 = arith.mulf %234, %231 : vector<16x512xf32>
    %236 = arith.mulf %235, %231 : vector<16x512xf32>
    %237 = arith.mulf %236, %231 : vector<16x512xf32>
    %238 = arith.addf %231, %237 : vector<16x512xf32>
    %cst_95 = arith.constant 0.797884583 : f32
    %239 = vector.broadcast %cst_95 : f32 to vector<16x512xf32>
    %240 = arith.mulf %239, %238 : vector<16x512xf32>
    %241 = math.tanh %240 : vector<16x512xf32>
    %cst_96 = arith.constant 1.000000e+00 : f32
    %242 = vector.broadcast %cst_96 : f32 to vector<16x512xf32>
    %243 = arith.addf %242, %241 : vector<16x512xf32>
    %244 = arith.mulf %233, %243 : vector<16x512xf32>
    %c0_97 = arith.constant 0 : index
    %c0_98 = arith.constant 0 : index
    %245 = vector.load %arg9[%c0_97, %c0_98] : memref<512x128xbf16, #tpu.memory_space<vmem>>, vector<512x128xbf16>
    %246 = arith.truncf %244 : vector<16x512xf32> to vector<16x512xbf16>
    %cst_99 = arith.constant dense<0.000000e+00> : vector<16x128xf32>
    %247 = tpu.matmul %246, %245, %cst_99 {dimension_numbers = #tpu.dot_dimension_numbers<[1], [0], [0], [1], [0, 0, 1, 1], [], []>} : vector<16x512xbf16>, vector<512x128xbf16>, vector<16x128xf32> -> vector<16x128xf32>
    %c29 = arith.constant 29 : index
    %c0_100 = arith.constant 0 : index
    %248 = vector.load %arg2[%c29, %c0_100] : memref<32x128xf32, #tpu.memory_space<vmem>>, vector<1x128xf32>
    %249 = vector.broadcast %248 : vector<1x128xf32> to vector<16x128xf32>
    %250 = arith.addf %247, %249 : vector<16x128xf32>
    %251 = arith.addf %225, %250 : vector<16x128xf32>
    %c27 = arith.constant 27 : index
    %c0_101 = arith.constant 0 : index
    %252 = vector.load %arg2[%c27, %c0_101] : memref<32x128xf32, #tpu.memory_space<vmem>>, vector<1x128xf32>
    %c28 = arith.constant 28 : index
    %c0_102 = arith.constant 0 : index
    %253 = vector.load %arg2[%c28, %c0_102] : memref<32x128xf32, #tpu.memory_space<vmem>>, vector<1x128xf32>
    %cst_103 = arith.constant dense<0.000000e+00> : vector<16xf32>
    %254 = vector.multi_reduction <add>, %251, %cst_103 [1] : vector<16x128xf32> to vector<16xf32>
    %255 = vector.shape_cast %254 : vector<16xf32> to vector<16x1xf32>
    %cst_104 = arith.constant 1.280000e+02 : f32
    %256 = vector.broadcast %cst_104 : f32 to vector<16x1xf32>
    %257 = arith.divf %255, %256 : vector<16x1xf32>
    %258 = vector.broadcast %257 : vector<16x1xf32> to vector<16x128xf32>
    %259 = arith.subf %251, %258 : vector<16x128xf32>
    %260 = arith.mulf %259, %259 : vector<16x128xf32>
    %cst_105 = arith.constant dense<0.000000e+00> : vector<16xf32>
    %261 = vector.multi_reduction <add>, %260, %cst_105 [1] : vector<16x128xf32> to vector<16xf32>
    %262 = vector.shape_cast %261 : vector<16xf32> to vector<16x1xf32>
    %cst_106 = arith.constant 1.280000e+02 : f32
    %263 = vector.broadcast %cst_106 : f32 to vector<16x1xf32>
    %264 = arith.divf %262, %263 : vector<16x1xf32>
    %265 = vector.broadcast %257 : vector<16x1xf32> to vector<16x128xf32>
    %266 = arith.subf %251, %265 : vector<16x128xf32>
    %cst_107 = arith.constant 9.99999974E-6 : f32
    %267 = vector.broadcast %cst_107 : f32 to vector<16x1xf32>
    %268 = arith.addf %264, %267 : vector<16x1xf32>
    %269 = math.rsqrt %268 : vector<16x1xf32>
    %270 = vector.broadcast %269 : vector<16x1xf32> to vector<16x128xf32>
    %271 = arith.mulf %266, %270 : vector<16x128xf32>
    %272 = vector.broadcast %252 : vector<1x128xf32> to vector<16x128xf32>
    %273 = arith.mulf %271, %272 : vector<16x128xf32>
    %274 = vector.broadcast %253 : vector<1x128xf32> to vector<16x128xf32>
    %275 = arith.addf %273, %274 : vector<16x128xf32>
    %c30 = arith.constant 30 : index
    %c0_108 = arith.constant 0 : index
    %276 = vector.load %arg2[%c30, %c0_108] : memref<32x128xf32, #tpu.memory_space<vmem>>, vector<1x128xf32>
    %c31 = arith.constant 31 : index
    %c0_109 = arith.constant 0 : index
    %277 = vector.load %arg2[%c31, %c0_109] : memref<32x128xf32, #tpu.memory_space<vmem>>, vector<1x128xf32>
    %cst_110 = arith.constant dense<0.000000e+00> : vector<16xf32>
    %278 = vector.multi_reduction <add>, %275, %cst_110 [1] : vector<16x128xf32> to vector<16xf32>
    %279 = vector.shape_cast %278 : vector<16xf32> to vector<16x1xf32>
    %cst_111 = arith.constant 1.280000e+02 : f32
    %280 = vector.broadcast %cst_111 : f32 to vector<16x1xf32>
    %281 = arith.divf %279, %280 : vector<16x1xf32>
    %282 = vector.broadcast %281 : vector<16x1xf32> to vector<16x128xf32>
    %283 = arith.subf %275, %282 : vector<16x128xf32>
    %284 = arith.mulf %283, %283 : vector<16x128xf32>
    %cst_112 = arith.constant dense<0.000000e+00> : vector<16xf32>
    %285 = vector.multi_reduction <add>, %284, %cst_112 [1] : vector<16x128xf32> to vector<16xf32>
    %286 = vector.shape_cast %285 : vector<16xf32> to vector<16x1xf32>
    %cst_113 = arith.constant 1.280000e+02 : f32
    %287 = vector.broadcast %cst_113 : f32 to vector<16x1xf32>
    %288 = arith.divf %286, %287 : vector<16x1xf32>
    %289 = vector.broadcast %281 : vector<16x1xf32> to vector<16x128xf32>
    %290 = arith.subf %275, %289 : vector<16x128xf32>
    %cst_114 = arith.constant 9.99999974E-6 : f32
    %291 = vector.broadcast %cst_114 : f32 to vector<16x1xf32>
    %292 = arith.addf %288, %291 : vector<16x1xf32>
    %293 = math.rsqrt %292 : vector<16x1xf32>
    %294 = vector.broadcast %293 : vector<16x1xf32> to vector<16x128xf32>
    %295 = arith.mulf %290, %294 : vector<16x128xf32>
    %296 = vector.broadcast %276 : vector<1x128xf32> to vector<16x128xf32>
    %297 = arith.mulf %295, %296 : vector<16x128xf32>
    %298 = vector.broadcast %277 : vector<1x128xf32> to vector<16x128xf32>
    %299 = arith.addf %297, %298 : vector<16x128xf32>
    %c0_115 = arith.constant 0 : index
    %c0_116 = arith.constant 0 : index
    %300 = vector.load %arg10[%c0_115, %c0_116] : memref<128x384xbf16, #tpu.memory_space<vmem>>, vector<128x128xbf16>
    %301 = arith.truncf %299 : vector<16x128xf32> to vector<16x128xbf16>
    %cst_117 = arith.constant dense<0.000000e+00> : vector<16x128xf32>
    %302 = tpu.matmul %301, %300, %cst_117 {dimension_numbers = #tpu.dot_dimension_numbers<[1], [0], [0], [1], [0, 0, 1, 1], [], []>} : vector<16x128xbf16>, vector<128x128xbf16>, vector<16x128xf32> -> vector<16x128xf32>
    %c0_118 = arith.constant 0 : index
    %c0_119 = arith.constant 0 : index
    %303 = vector.load %arg4[%c0_118, %c0_119] : memref<8x128xf32, #tpu.memory_space<vmem>>, vector<1x128xf32>
    %304 = vector.broadcast %303 : vector<1x128xf32> to vector<16x128xf32>
    %305 = arith.addf %302, %304 : vector<16x128xf32>
    %306 = math.tanh %305 : vector<16x128xf32>
    %c1_120 = arith.constant 1 : index
    %c0_121 = arith.constant 0 : index
    %307 = vector.load %arg4[%c1_120, %c0_121] : memref<8x128xf32, #tpu.memory_space<vmem>>, vector<1x128xf32>
    %308 = vector.broadcast %307 : vector<1x128xf32> to vector<16x128xf32>
    %309 = arith.mulf %306, %308 : vector<16x128xf32>
    %cst_122 = arith.constant dense<0.000000e+00> : vector<16xf32>
    %310 = vector.multi_reduction <add>, %309, %cst_122 [1] : vector<16x128xf32> to vector<16xf32>
    %311 = vector.shape_cast %310 : vector<16xf32> to vector<16x1xf32>
    %c2 = arith.constant 2 : index
    %c0_123 = arith.constant 0 : index
    %312 = vector.load %arg4[%c2, %c0_123] : memref<8x128xf32, #tpu.memory_space<vmem>>, vector<1x1xf32>
    %313 = vector.broadcast %312 : vector<1x1xf32> to vector<16x1xf32>
    %314 = arith.addf %311, %313 : vector<16x1xf32>
    %315 = vector.shape_cast %314 : vector<16x1xf32> to vector<2x8x1xf32>
    %cst_124 = arith.constant dense<0xFF800000> : vector<2x1xf32>
    %316 = vector.multi_reduction <maximumf>, %315, %cst_124 [1] : vector<2x8x1xf32> to vector<2x1xf32>
    %317 = vector.shape_cast %316 : vector<2x1xf32> to vector<2x1x1xf32>
    %318 = vector.broadcast %317 : vector<2x1x1xf32> to vector<2x8x1xf32>
    %319 = arith.subf %315, %318 : vector<2x8x1xf32>
    %320 = math.exp %319 : vector<2x8x1xf32>
    %cst_125 = arith.constant dense<0.000000e+00> : vector<2x1xf32>
    %321 = vector.multi_reduction <add>, %320, %cst_125 [1] : vector<2x8x1xf32> to vector<2x1xf32>
    %322 = vector.shape_cast %321 : vector<2x1xf32> to vector<2x1x1xf32>
    %323 = tpu.reciprocal %322 {approx = true} : vector<2x1x1xf32> -> vector<2x1x1xf32>
    %324 = vector.broadcast %323 : vector<2x1x1xf32> to vector<2x8x1xf32>
    %325 = arith.mulf %320, %324 : vector<2x8x1xf32>
    %326 = vector.shape_cast %299 : vector<16x128xf32> to vector<2x8x128xf32>
    %327 = vector.broadcast %325 : vector<2x8x1xf32> to vector<2x8x128xf32>
    %328 = arith.mulf %326, %327 : vector<2x8x128xf32>
    %cst_126 = arith.constant dense<0.000000e+00> : vector<2x128xf32>
    %329 = vector.multi_reduction <add>, %328, %cst_126 [1] : vector<2x8x128xf32> to vector<2x128xf32>
    %c0_127 = arith.constant 0 : index
    %c128 = arith.constant 128 : index
    %330 = vector.load %arg10[%c0_127, %c128] : memref<128x384xbf16, #tpu.memory_space<vmem>>, vector<128x128xbf16>
    %331 = arith.truncf %329 : vector<2x128xf32> to vector<2x128xbf16>
    %cst_128 = arith.constant dense<0.000000e+00> : vector<2x128xf32>
    %332 = tpu.matmul %331, %330, %cst_128 {dimension_numbers = #tpu.dot_dimension_numbers<[1], [0], [0], [1], [0, 0, 1, 1], [], []>} : vector<2x128xbf16>, vector<128x128xbf16>, vector<2x128xf32> -> vector<2x128xf32>
    %c3 = arith.constant 3 : index
    %c0_129 = arith.constant 0 : index
    %333 = vector.load %arg4[%c3, %c0_129] : memref<8x128xf32, #tpu.memory_space<vmem>>, vector<1x128xf32>
    %334 = vector.broadcast %333 : vector<1x128xf32> to vector<2x128xf32>
    %335 = arith.addf %332, %334 : vector<2x128xf32>
    %cst_130 = arith.constant 5.000000e-01 : f32
    %336 = vector.broadcast %cst_130 : f32 to vector<2x128xf32>
    %337 = arith.mulf %336, %335 : vector<2x128xf32>
    %cst_131 = arith.constant 4.471500e-02 : f32
    %338 = vector.broadcast %cst_131 : f32 to vector<2x128xf32>
    %339 = arith.mulf %338, %335 : vector<2x128xf32>
    %340 = arith.mulf %339, %335 : vector<2x128xf32>
    %341 = arith.mulf %340, %335 : vector<2x128xf32>
    %342 = arith.addf %335, %341 : vector<2x128xf32>
    %cst_132 = arith.constant 0.797884583 : f32
    %343 = vector.broadcast %cst_132 : f32 to vector<2x128xf32>
    %344 = arith.mulf %343, %342 : vector<2x128xf32>
    %345 = math.tanh %344 : vector<2x128xf32>
    %cst_133 = arith.constant 1.000000e+00 : f32
    %346 = vector.broadcast %cst_133 : f32 to vector<2x128xf32>
    %347 = arith.addf %346, %345 : vector<2x128xf32>
    %348 = arith.mulf %337, %347 : vector<2x128xf32>
    %c0_134 = arith.constant 0 : index
    %c256 = arith.constant 256 : index
    %349 = vector.load %arg10[%c0_134, %c256] : memref<128x384xbf16, #tpu.memory_space<vmem>>, vector<128x128xbf16>
    %350 = arith.truncf %348 : vector<2x128xf32> to vector<2x128xbf16>
    %cst_135 = arith.constant dense<0.000000e+00> : vector<2x128xf32>
    %351 = tpu.matmul %350, %349, %cst_135 {dimension_numbers = #tpu.dot_dimension_numbers<[1], [0], [0], [1], [0, 0, 1, 1], [], []>} : vector<2x128xbf16>, vector<128x128xbf16>, vector<2x128xf32> -> vector<2x128xf32>
    %c4 = arith.constant 4 : index
    %c0_136 = arith.constant 0 : index
    %352 = vector.load %arg4[%c4, %c0_136] : memref<8x128xf32, #tpu.memory_space<vmem>>, vector<1x128xf32>
    %353 = vector.broadcast %352 : vector<1x128xf32> to vector<2x128xf32>
    %354 = arith.addf %351, %353 : vector<2x128xf32>
    %cst_137 = arith.constant 5.000000e-01 : f32
    %355 = vector.broadcast %cst_137 : f32 to vector<2x128xf32>
    %356 = arith.mulf %355, %354 : vector<2x128xf32>
    %cst_138 = arith.constant 4.471500e-02 : f32
    %357 = vector.broadcast %cst_138 : f32 to vector<2x128xf32>
    %358 = arith.mulf %357, %354 : vector<2x128xf32>
    %359 = arith.mulf %358, %354 : vector<2x128xf32>
    %360 = arith.mulf %359, %354 : vector<2x128xf32>
    %361 = arith.addf %354, %360 : vector<2x128xf32>
    %cst_139 = arith.constant 0.797884583 : f32
    %362 = vector.broadcast %cst_139 : f32 to vector<2x128xf32>
    %363 = arith.mulf %362, %361 : vector<2x128xf32>
    %364 = math.tanh %363 : vector<2x128xf32>
    %cst_140 = arith.constant 1.000000e+00 : f32
    %365 = vector.broadcast %cst_140 : f32 to vector<2x128xf32>
    %366 = arith.addf %365, %364 : vector<2x128xf32>
    %367 = arith.mulf %356, %366 : vector<2x128xf32>
    %c6 = arith.constant 6 : index
    %c0_141 = arith.constant 0 : index
    %368 = vector.load %arg4[%c6, %c0_141] : memref<8x128xf32, #tpu.memory_space<vmem>>, vector<1x128xf32>
    %369 = vector.broadcast %368 : vector<1x128xf32> to vector<2x128xf32>
    %370 = arith.mulf %367, %369 : vector<2x128xf32>
    %cst_142 = arith.constant dense<0.000000e+00> : vector<2xf32>
    %371 = vector.multi_reduction <add>, %370, %cst_142 [1] : vector<2x128xf32> to vector<2xf32>
    %372 = vector.shape_cast %371 : vector<2xf32> to vector<2x1xf32>
    %c5 = arith.constant 5 : index
    %c0_143 = arith.constant 0 : index
    %373 = vector.load %arg4[%c5, %c0_143] : memref<8x128xf32, #tpu.memory_space<vmem>>, vector<1x1xf32>
    %374 = vector.broadcast %373 : vector<1x1xf32> to vector<2x1xf32>
    %375 = arith.addf %372, %374 : vector<2x1xf32>
    %c0_144 = arith.constant 0 : index
    %c0_145 = arith.constant 0 : index
    %376 = vector.load %arg11[%c0_144, %c0_145] : memref<2x1xf32, #tpu.memory_space<vmem>>, vector<2x1xf32>
    tpu.vector_store %arg11[%c0_144, %c0_145], %375 {strides = array<i32>} : memref<2x1xf32, #tpu.memory_space<vmem>>, vector<2x1xf32>,
    return
  }
}

</mosaic_0001>

<llo_original>
// kernel: tpu_custom_call.1
$region0: #{tpu_custom_call.1}
  #allocation0 [shape = 'u32[]', space=smem, size = 0x4, offset = 0x4, fixed_abs, tag = 'smem constant byte address 0x4 - core index']
  #allocation1 [shape = 'u32[72,128]{1,0:T(1,128)}', space=vmem, size = 0x9000, scoped, tag = 'internal scratch']
  %s0 = inlined_call_operand.vmem [shape: f32[16,16], index: 0, kind: input, shape index: {}]
  %s1 = inlined_call_operand.vmem [shape: bf16[16,128], index: 1, kind: input, shape index: {}]
  %s2 = inlined_call_operand.vmem [shape: f32[32,128], index: 2, kind: input, shape index: {}]
  %s3 = inlined_call_operand.vmem [shape: f32[2,1280], index: 3, kind: input, shape index: {}]
  %s4 = inlined_call_operand.hbm [shape: f32[8,128], index: 4, kind: input, shape index: {}]
  %s5 = inlined_call_operand.vmem [shape: f32[64,16], index: 5, kind: input, shape index: {}]
  %s6 = inlined_call_operand.hbm [shape: bf16[128,1792], index: 6, kind: input, shape index: {}]
  %s7 = inlined_call_operand.hbm [shape: bf16[128,1792], index: 7, kind: input, shape index: {}]
  %s8 = inlined_call_operand.hbm [shape: bf16[512,128], index: 8, kind: input, shape index: {}]
  %s9 = inlined_call_operand.hbm [shape: bf16[512,128], index: 9, kind: input, shape index: {}]
  %s10 = inlined_call_operand.hbm [shape: bf16[128,384], index: 10, kind: input, shape index: {}]
  %s11 = inlined_call_operand.vmem [shape: f32[2,1], index: 11, kind: output, shape index: {}]
  %s12 = sld [smem:[#allocation0]]
  $region78: #{tpu_custom_call.1} parent=0
    _
  %s14 = ssub.s32 1, %s12
  %s15 = scalar_select 0, %s14, %s12
  $region1: #{tpu_custom_call.1} parent=0
    #allocation2 [shape = 'u8[4096]{0}', space=vmem, size = 0x1000, scoped, tag = 'input window, operand 4, single buffered']
    #allocation3 [shape = 's32[1]{0}', space=sflag, size = 0x4, scoped, tag = 'scoped memory for tpu_custom_call.1']
    #allocation4 [shape = 'u8[458752]{0}', space=vmem, size = 0x70000, scoped, tag = 'input window, operand 6, single buffered']
    #allocation5 [shape = 's32[1]{0}', space=sflag, size = 0x4, scoped, tag = 'scoped memory for tpu_custom_call.1']
    #allocation6 [shape = 'u8[458752]{0}', space=vmem, size = 0x70000, scoped, tag = 'input window, operand 7, single buffered']
    #allocation7 [shape = 'u8[131072]{0}', space=vmem, size = 0x20000, scoped, tag = 'input window, operand 8, single buffered']
    #allocation8 [shape = 's32[1]{0}', space=sflag, size = 0x4, scoped, tag = 'scoped memory for tpu_custom_call.1']
    #allocation9 [shape = 'u8[131072]{0}', space=vmem, size = 0x20000, scoped, tag = 'input window, operand 9, single buffered']
    #allocation10 [shape = 'u8[98304]{0}', space=vmem, size = 0x18000, scoped, tag = 'input window, operand 10, single buffered']
    #allocation11 [shape = 's32[1]{0}', space=sflag, size = 0x4, scoped, tag = 'scoped memory for tpu_custom_call.1']
    %16 = vsyncpa [#allocation3], 0
    %17 = vsyncpa [#allocation5], 0
    %18 = vsyncpa [#allocation8], 0
    %19 = vsyncpa [#allocation11], 0
    // Predicated region
    $region2: #{tpu_custom_call.1} parent=1 // pred_check
      _
    $region3: #{tpu_custom_call.1} parent=1 // pred_check_branch
      %21 = sbr.rel (0) target = $region5
    $region4: #{tpu_custom_call.1} parent=1 // pred_region
      _
    $region5: #{tpu_custom_call.1} parent=1 // pred_fallthru
      _
    // Predicated region
    $region6: #{tpu_custom_call.1} parent=1 // pred_check
      _
    $region7: #{tpu_custom_call.1} parent=1 // pred_check_branch
      %23 = sbr.rel (0) target = $region9
    $region8: #{tpu_custom_call.1} parent=1 // pred_region
      _
    $region9: #{tpu_custom_call.1} parent=1 // pred_fallthru
      _
    // Predicated region
    $region10: #{tpu_custom_call.1} parent=1 // pred_check
      _
    $region11: #{tpu_custom_call.1} parent=1 // pred_check_branch
      %25 = sbr.rel (0) target = $region13
    $region12: #{tpu_custom_call.1} parent=1 // pred_region
      _
    $region13: #{tpu_custom_call.1} parent=1 // pred_fallthru
      _
    // Predicated region
    $region14: #{tpu_custom_call.1} parent=1 // pred_check
      _
    $region15: #{tpu_custom_call.1} parent=1 // pred_check_branch
      %27 = sbr.rel (0) target = $region17
    $region16: #{tpu_custom_call.1} parent=1 // pred_region
      _
    $region17: #{tpu_custom_call.1} parent=1 // pred_fallthru
      _
    // Predicated region
    $region18: #{tpu_custom_call.1} parent=1 // pred_check
      _
    $region19: #{tpu_custom_call.1} parent=1 // pred_check_branch
      %29 = sbr.rel (0) target = $region21
    $region20: #{tpu_custom_call.1} parent=1 // pred_region
      %31 = vsyncadd [#allocation3], 0
      %s33 = sshll.u32 %s4, 4
      %s34 = int_to_ptr.hbm [resolvable:$true] %s33
      %s35 = sshll.u32 [#allocation2], 4
      %s36 = int_to_ptr.vmem [resolvable:$true] %s35
      %38 = dma.hbm_to_vmem [thread:$0]  %s34, 128, %s36, [#allocation3]
    $region21: #{tpu_custom_call.1} parent=1 // pred_fallthru
      _
    // Predicated region
    $region22: #{tpu_custom_call.1} parent=1 // pred_check
      _
    $region23: #{tpu_custom_call.1} parent=1 // pred_check_branch
      %40 = sbr.rel (0) target = $region25
    $region24: #{tpu_custom_call.1} parent=1 // pred_region
      _
    $region25: #{tpu_custom_call.1} parent=1 // pred_fallthru
      _
    // Predicated region
    $region26: #{tpu_custom_call.1} parent=1 // pred_check
      _
    $region27: #{tpu_custom_call.1} parent=1 // pred_check_branch
      %42 = sbr.rel (0) target = $region29
    $region28: #{tpu_custom_call.1} parent=1 // pred_region
      %44 = vsyncadd [#allocation5], 0
      %s45 = sshll.u32 %s6, 4
      %s46 = int_to_ptr.hbm [resolvable:$true] %s45
      %s47 = sshll.u32 [#allocation4], 4
      %s48 = int_to_ptr.vmem [resolvable:$true] %s47
      %53 = dma.hbm_to_vmem [thread:$0]  %s46, 14336, %s48, [#allocation5], 896, 896, 56
    $region29: #{tpu_custom_call.1} parent=1 // pred_fallthru
      _
    // Predicated region
    $region30: #{tpu_custom_call.1} parent=1 // pred_check
      _
    $region31: #{tpu_custom_call.1} parent=1 // pred_check_branch
      %55 = sbr.rel (0) target = $region33
    $region32: #{tpu_custom_call.1} parent=1 // pred_region
      %57 = vsyncadd [#allocation5], 0
      %s58 = sshll.u32 %s7, 4
      %s59 = int_to_ptr.hbm [resolvable:$true] %s58
      %s60 = sshll.u32 [#allocation6], 4
      %s61 = int_to_ptr.vmem [resolvable:$true] %s60
      %66 = dma.hbm_to_vmem [thread:$0]  %s59, 14336, %s61, [#allocation5], 896, 896, 56
    $region33: #{tpu_custom_call.1} parent=1 // pred_fallthru
      _
    // Predicated region
    $region34: #{tpu_custom_call.1} parent=1 // pred_check
      _
    $region35: #{tpu_custom_call.1} parent=1 // pred_check_branch
      %68 = sbr.rel (0) target = $region37
    $region36: #{tpu_custom_call.1} parent=1 // pred_region
      %70 = vsyncadd [#allocation8], 0
      %s71 = sshll.u32 %s8, 4
      %s72 = int_to_ptr.hbm [resolvable:$true] %s71
      %s73 = sshll.u32 [#allocation7], 4
      %s74 = int_to_ptr.vmem [resolvable:$true] %s73
      %79 = dma.hbm_to_vmem [thread:$0]  %s72, 4096, %s74, [#allocation8], 64, 64, 4
    $region37: #{tpu_custom_call.1} parent=1 // pred_fallthru
      _
    // Predicated region
    $region38: #{tpu_custom_call.1} parent=1 // pred_check
      _
    $region39: #{tpu_custom_call.1} parent=1 // pred_check_branch
      %81 = sbr.rel (0) target = $region41
    $region40: #{tpu_custom_call.1} parent=1 // pred_region
      %83 = vsyncadd [#allocation8], 0
      %s84 = sshll.u32 %s9, 4
      %s85 = int_to_ptr.hbm [resolvable:$true] %s84
      %s86 = sshll.u32 [#allocation9], 4
      %s87 = int_to_ptr.vmem [resolvable:$true] %s86
      %92 = dma.hbm_to_vmem [thread:$0]  %s85, 4096, %s87, [#allocation8], 64, 64, 4
    $region41: #{tpu_custom_call.1} parent=1 // pred_fallthru
      _
    // Predicated region
    $region42: #{tpu_custom_call.1} parent=1 // pred_check
      _
    $region43: #{tpu_custom_call.1} parent=1 // pred_check_branch
      %94 = sbr.rel (0) target = $region45
    $region44: #{tpu_custom_call.1} parent=1 // pred_region
      %96 = vsyncadd [#allocation11], 0
      %s97 = sshll.u32 %s10, 4
      %s98 = int_to_ptr.hbm [resolvable:$true] %s97
      %s99 = sshll.u32 [#allocation10], 4
      %s100 = int_to_ptr.vmem [resolvable:$true] %s99
      %105 = dma.hbm_to_vmem [thread:$0]  %s98, 3072, %s100, [#allocation11], 192, 192, 12
    $region45: #{tpu_custom_call.1} parent=1 // pred_fallthru
      _
    // Predicated region
    $region46: #{tpu_custom_call.1} parent=1 // pred_check
      _
    $region47: #{tpu_custom_call.1} parent=1 // pred_check_branch
      %107 = sbr.rel (0) target = $region49
    $region48: #{tpu_custom_call.1} parent=1 // pred_region
      %109 = dma.done [#allocation3], 128
    $region49: #{tpu_custom_call.1} parent=1 // pred_fallthru
      _
    // Predicated region
    $region50: #{tpu_custom_call.1} parent=1 // pred_check
      _
    $region51: #{tpu_custom_call.1} parent=1 // pred_check_branch
      %111 = sbr.rel (0) target = $region53
    $region52: #{tpu_custom_call.1} parent=1 // pred_region
      %113 = dma.done [#allocation5], 14336
    $region53: #{tpu_custom_call.1} parent=1 // pred_fallthru
      _
    // Predicated region
    $region54: #{tpu_custom_call.1} parent=1 // pred_check
      _
    $region55: #{tpu_custom_call.1} parent=1 // pred_check_branch
      %115 = sbr.rel (0) target = $region57
    $region56: #{tpu_custom_call.1} parent=1 // pred_region
      %117 = dma.done [#allocation5], 14336
    $region57: #{tpu_custom_call.1} parent=1 // pred_fallthru
      _
    // Predicated region
    $region58: #{tpu_custom_call.1} parent=1 // pred_check
      _
    $region59: #{tpu_custom_call.1} parent=1 // pred_check_branch
      %119 = sbr.rel (0) target = $region61
    $region60: #{tpu_custom_call.1} parent=1 // pred_region
      %121 = dma.done [#allocation8], 4096
    $region61: #{tpu_custom_call.1} parent=1 // pred_fallthru
      _
    // Predicated region
    $region62: #{tpu_custom_call.1} parent=1 // pred_check
      _
    $region63: #{tpu_custom_call.1} parent=1 // pred_check_branch
      %123 = sbr.rel (0) target = $region65
    $region64: #{tpu_custom_call.1} parent=1 // pred_region
      %125 = dma.done [#allocation8], 4096
    $region65: #{tpu_custom_call.1} parent=1 // pred_fallthru
      _
    // Predicated region
    $region66: #{tpu_custom_call.1} parent=1 // pred_check
      _
    $region67: #{tpu_custom_call.1} parent=1 // pred_check_branch
      %127 = sbr.rel (0) target = $region69
    $region68: #{tpu_custom_call.1} parent=1 // pred_region
      %129 = dma.done [#allocation11], 3072
    $region69: #{tpu_custom_call.1} parent=1 // pred_fallthru
      _
    %v131 = vld [vmem:[%s0] sm:$0xff]
    %v132 = vld [vmem:[%s0 + $0x8] sm:$0xff]
    %v133 = vld [vmem:[%s1] sm:$0xf]
    %v134 = vld [vmem:[%s1 + $0x4] sm:$0xf]
    %v135 = vpack.c.bf16 %v132, %v131
    %v136 = vld [vmem:[%s2] sm:$0xff]
    %v137 = vld [vmem:[%s2 + $0x8] sm:$0xff]
    %v140 = vunpack.c.l.b16 %v133
    %v141 = vunpack.c.l.b16 %v134
    %v142 = vpack.c.b16 %v141, %v140
    %vm144 = vcmask 130048
    %v146 = vsel %vm144, %v135, 0
    %148 = vmatpush.bf16.msra.mxu0 0
    %149 = vmatpush.bf16.msra.mxu0 0
    %150 = vmatpush.bf16.msra.mxu0 0
    %151 = vmatpush.bf16.msra.mxu0 0
    %152 = vmatpush.bf16.msra.mxu0 0
    %153 = vmatpush.bf16.msra.mxu0 0
    %154 = vmatpush.bf16.msra.mxu0 0
    %155 = vmatpush.bf16.msra.mxu0 %v142
    %156 = vmatmul.bf16.gmra.mxu0 %v146
    %v157 = vpop.f32.mrf.mxu0
    %v158 = vadd.f32 %v136, %v157
    %v159 = vpop.f32.mrf.mxu0
    %v160 = vadd.f32 %v137, %v159
    %161 = vdwg.mxu0
    %v162 = vld [vmem:[%s2 + $0x10] sm:$0x1]
    %v163 = vld [vmem:[%s2 + $0x11] sm:$0x1]
    %164 = vadd.xlane.f32.xlu0 %v158
    %v165 = vpop.xlane.xlu0 %164
    %166 = vadd.xlane.f32.xlu0 %v160
    %v167 = vpop.xlane.xlu0 %166
    %v168 = vrcp.pop 128.0
    %v169 = vmul.f32 128.0, %v168
    %v170 = vsub.f32 1.0, %v169
    %v171 = vmul.f32 %v168, %v170
    %v172 = vadd.f32 %v168, %v171
    %vm173 = vweird.f32 %v168
    %v174 = vsel %vm173, %v168, %v172
    %v175 = vmul.f32 %v165, %v174
    %v176 = vmul.f32 %v167, %v174
    %v177 = vsub.f32 %v158, %v175
    %v178 = vsub.f32 %v160, %v176
    %v179 = vmul.f32 %v177, %v177
    %v180 = vmul.f32 %v178, %v178
    %181 = vadd.xlane.f32.xlu0 %v179
    %v182 = vpop.xlane.xlu0 %181
    %183 = vadd.xlane.f32.xlu0 %v180
    %v184 = vpop.xlane.xlu0 %183
    %v185 = vmul.f32 %v182, %v174
    %v186 = vmul.f32 %v184, %v174
    %v187 = vadd.f32 %v185, 1e-05
    %v188 = vadd.f32 %v186, 1e-05
    %v189 = vrsqrt.pop %v187
    %v190 = vmul.f32 %v189, %v187
    %v191 = vmul.f32 %v190, %v189
    %v192 = vmul.f32 0.5, %v191
    %v193 = vsub.f32 1.5, %v192
    %v194 = vmul.f32 %v189, %v193
    %vm195 = vweird.f32 %v187
    %vm196 = vweird.f32 %v189
    %vm197 = vmor %vm195, %vm196
    %v198 = vsel %vm197, %v189, %v194
    %v199 = vrsqrt.pop %v188
    %v200 = vmul.f32 %v199, %v188
    %v201 = vmul.f32 %v200, %v199
    %v202 = vmul.f32 0.5, %v201
    %v203 = vsub.f32 1.5, %v202
    %v204 = vmul.f32 %v199, %v203
    %vm205 = vweird.f32 %v188
    %vm206 = vweird.f32 %v199
    %vm207 = vmor %vm205, %vm206
    %v208 = vsel %vm207, %v199, %v204
    %v209 = vmul.f32 %v177, %v198
    %v210 = vmul.f32 %v178, %v208
    %v211 = vperm.slane %v162, 0
    %v212 = vmul.f32 %v209, %v211
    %v213 = vmul.f32 %v210, %v211
    %v214 = vperm.slane %v163, 0
    %v215 = vadd.f32 %v212, %v214
    %v216 = vadd.f32 %v213, %v214
    %v217 = vld [vmem:[#allocation4] sm:$0xff]
    %v218 = vld [vmem:[#allocation4 + $0x8] sm:$0xff]
    %v219 = vld [vmem:[#allocation4 + $0x10] sm:$0xff]
    %v220 = vld [vmem:[#allocation4 + $0x38] sm:$0xff]
    %v221 = vld [vmem:[#allocation4 + $0x40] sm:$0xff]
    %v222 = vld [vmem:[#allocation4 + $0x48] sm:$0xff]
    %v223 = vld [vmem:[#allocation4 + $0x70] sm:$0xff]
    %v224 = vld [vmem:[#allocation4 + $0x78] sm:$0xff]
    %v225 = vld [vmem:[#allocation4 + $0x80] sm:$0xff]
    %v226 = vld [vmem:[#allocation4 + $0xa8] sm:$0xff]
    %v227 = vld [vmem:[#allocation4 + $0xb0] sm:$0xff]
    %v228 = vld [vmem:[#allocation4 + $0xb8] sm:$0xff]
    %v229 = vld [vmem:[#allocation4 + $0xe0] sm:$0xff]
    %v230 = vld [vmem:[#allocation4 + $0xe8] sm:$0xff]
    %v231 = vld [vmem:[#allocation4 + $0xf0] sm:$0xff]
    %v232 = vld [vmem:[#allocation4 + $0x118] sm:$0xff]
    %v233 = vld [vmem:[#allocation4 + $0x120] sm:$0xff]
    %v234 = vld [vmem:[#allocation4 + $0x128] sm:$0xff]
    %v235 = vld [vmem:[#allocation4 + $0x150] sm:$0xff]
    %v236 = vld [vmem:[#allocation4 + $0x158] sm:$0xff]
    %v237 = vld [vmem:[#allocation4 + $0x160] sm:$0xff]
    %v238 = vld [vmem:[#allocation4 + $0x188] sm:$0xff]
    %v239 = vld [vmem:[#allocation4 + $0x190] sm:$0xff]
    %v240 = vld [vmem:[#allocation4 + $0x198] sm:$0xff]
    %v241 = vld [vmem:[#allocation4 + $0x1c0] sm:$0xff]
    %v242 = vld [vmem:[#allocation4 + $0x1c8] sm:$0xff]
    %v243 = vld [vmem:[#allocation4 + $0x1d0] sm:$0xff]
    %v244 = vld [vmem:[#allocation4 + $0x1f8] sm:$0xff]
    %v245 = vld [vmem:[#allocation4 + $0x200] sm:$0xff]
    %v246 = vld [vmem:[#allocation4 + $0x208] sm:$0xff]
    %v247 = vld [vmem:[#allocation4 + $0x230] sm:$0xff]
    %v248 = vld [vmem:[#allocation4 + $0x238] sm:$0xff]
    %v249 = vld [vmem:[#allocation4 + $0x240] sm:$0xff]
    %v250 = vld [vmem:[#allocation4 + $0x268] sm:$0xff]
    %v251 = vld [vmem:[#allocation4 + $0x270] sm:$0xff]
    %v252 = vld [vmem:[#allocation4 + $0x278] sm:$0xff]
    %v253 = vld [vmem:[#allocation4 + $0x2a0] sm:$0xff]
    %v254 = vld [vmem:[#allocation4 + $0x2a8] sm:$0xff]
    %v255 = vld [vmem:[#allocation4 + $0x2b0] sm:$0xff]
    %v256 = vld [vmem:[#allocation4 + $0x2d8] sm:$0xff]
    %v257 = vld [vmem:[#allocation4 + $0x2e0] sm:$0xff]
    %v258 = vld [vmem:[#allocation4 + $0x2e8] sm:$0xff]
    %v259 = vld [vmem:[#allocation4 + $0x310] sm:$0xff]
    %v260 = vld [vmem:[#allocation4 + $0x318] sm:$0xff]
    %v261 = vld [vmem:[#allocation4 + $0x320] sm:$0xff]
    %v262 = vld [vmem:[#allocation4 + $0x348] sm:$0xff]
    %v263 = vld [vmem:[#allocation4 + $0x350] sm:$0xff]
    %v264 = vld [vmem:[#allocation4 + $0x358] sm:$0xff]
    %v265 = vpack.c.bf16 %v216, %v215
    %v266 = vld [vmem:[%s3] ss:$2 sm:$0x3f]
    %v268 = vperm.slane %v266, 0
    %v269 = vperm.slane %v266, 1
    %v270 = vperm.slane %v266, 2
    %v271 = vperm.slane %v266, 3
    %v272 = vperm.slane %v266, 4
    %v273 = vperm.slane %v266, 5
    %v328 = vunpack.c.l.b16 %v217
    %v329 = vunpack.c.h.b16 %v217
    %v330 = vunpack.c.l.b16 %v218
    %v331 = vunpack.c.h.b16 %v218
    %v332 = vunpack.c.l.b16 %v219
    %v333 = vunpack.c.h.b16 %v219
    %v334 = vunpack.c.l.b16 %v220
    %v335 = vunpack.c.h.b16 %v220
    %v336 = vunpack.c.l.b16 %v221
    %v337 = vunpack.c.h.b16 %v221
    %v338 = vunpack.c.l.b16 %v222
    %v339 = vunpack.c.h.b16 %v222
    %v340 = vunpack.c.l.b16 %v223
    %v341 = vunpack.c.h.b16 %v223
    %v342 = vunpack.c.l.b16 %v224
    %v343 = vunpack.c.h.b16 %v224
    %v344 = vunpack.c.l.b16 %v225
    %v345 = vunpack.c.h.b16 %v225
    %v346 = vunpack.c.l.b16 %v226
    %v347 = vunpack.c.h.b16 %v226
    %v348 = vunpack.c.l.b16 %v227
    %v349 = vunpack.c.h.b16 %v227
    %v350 = vunpack.c.l.b16 %v228
    %v351 = vunpack.c.h.b16 %v228
    %v352 = vunpack.c.l.b16 %v229
    %v353 = vunpack.c.h.b16 %v229
    %v354 = vunpack.c.l.b16 %v230
    %v355 = vunpack.c.h.b16 %v230
    %v356 = vunpack.c.l.b16 %v231
    %v357 = vunpack.c.h.b16 %v231
    %v358 = vunpack.c.l.b16 %v232
    %v359 = vunpack.c.h.b16 %v232
    %v360 = vunpack.c.l.b16 %v233
    %v361 = vunpack.c.h.b16 %v233
    %v362 = vunpack.c.l.b16 %v234
    %v363 = vunpack.c.h.b16 %v234
    %v364 = vunpack.c.l.b16 %v235
    %v365 = vunpack.c.h.b16 %v235
    %v366 = vunpack.c.l.b16 %v236
    %v367 = vunpack.c.h.b16 %v236
    %v368 = vunpack.c.l.b16 %v237
    %v369 = vunpack.c.h.b16 %v237
    %v370 = vunpack.c.l.b16 %v238
    %v371 = vunpack.c.h.b16 %v238
    %v372 = vunpack.c.l.b16 %v239
    %v373 = vunpack.c.h.b16 %v239
    %v374 = vunpack.c.l.b16 %v240
    %v375 = vunpack.c.h.b16 %v240
    %v376 = vunpack.c.l.b16 %v241
    %v377 = vunpack.c.h.b16 %v241
    %v378 = vunpack.c.l.b16 %v242
    %v379 = vunpack.c.h.b16 %v242
    %v380 = vunpack.c.l.b16 %v243
    %v381 = vunpack.c.h.b16 %v243
    %v382 = vunpack.c.l.b16 %v244
    %v383 = vunpack.c.h.b16 %v244
    %v384 = vunpack.c.l.b16 %v245
    %v385 = vunpack.c.h.b16 %v245
    %v386 = vunpack.c.l.b16 %v246
    %v387 = vunpack.c.h.b16 %v246
    %v388 = vunpack.c.l.b16 %v247
    %v389 = vunpack.c.h.b16 %v247
    %v390 = vunpack.c.l.b16 %v248
    %v391 = vunpack.c.h.b16 %v248
    %v392 = vunpack.c.l.b16 %v249
    %v393 = vunpack.c.h.b16 %v249
    %v394 = vunpack.c.l.b16 %v250
    %v395 = vunpack.c.h.b16 %v250
    %v396 = vunpack.c.l.b16 %v251
    %v397 = vunpack.c.h.b16 %v251
    %v398 = vunpack.c.l.b16 %v252
    %v399 = vunpack.c.h.b16 %v252
    %v400 = vunpack.c.l.b16 %v253
    %v401 = vunpack.c.h.b16 %v253
    %v402 = vunpack.c.l.b16 %v254
    %v403 = vunpack.c.h.b16 %v254
    %v404 = vunpack.c.l.b16 %v255
    %v405 = vunpack.c.h.b16 %v255
    %v406 = vunpack.c.l.b16 %v256
    %v407 = vunpack.c.h.b16 %v256
    %v408 = vunpack.c.l.b16 %v257
    %v409 = vunpack.c.h.b16 %v257
    %v410 = vunpack.c.l.b16 %v258
    %v411 = vunpack.c.h.b16 %v258
    %v412 = vunpack.c.l.b16 %v259
    %v413 = vunpack.c.h.b16 %v259
    %v414 = vunpack.c.l.b16 %v260
    %v415 = vunpack.c.h.b16 %v260
    %v416 = vunpack.c.l.b16 %v261
    %v417 = vunpack.c.h.b16 %v261
    %v418 = vunpack.c.l.b16 %v262
    %v419 = vunpack.c.h.b16 %v262
    %v420 = vunpack.c.l.b16 %v263
    %v421 = vunpack.c.h.b16 %v263
    %v422 = vunpack.c.l.b16 %v264
    %v423 = vunpack.c.h.b16 %v264
    %v424 = vpack.c.b16 %v334, %v328
    %v425 = vpack.c.b16 %v335, %v329
    %v426 = vpack.c.b16 %v336, %v330
    %v427 = vpack.c.b16 %v337, %v331
    %v428 = vpack.c.b16 %v338, %v332
    %v429 = vpack.c.b16 %v339, %v333
    %v430 = vpack.c.b16 %v346, %v340
    %v431 = vpack.c.b16 %v347, %v341
    %v432 = vpack.c.b16 %v348, %v342
    %v433 = vpack.c.b16 %v349, %v343
    %v434 = vpack.c.b16 %v350, %v344
    %v435 = vpack.c.b16 %v351, %v345
    %v436 = vpack.c.b16 %v358, %v352
    %v437 = vpack.c.b16 %v359, %v353
    %v438 = vpack.c.b16 %v360, %v354
    %v439 = vpack.c.b16 %v361, %v355
    %v440 = vpack.c.b16 %v362, %v356
    %v441 = vpack.c.b16 %v363, %v357
    %v442 = vpack.c.b16 %v370, %v364
    %v443 = vpack.c.b16 %v371, %v365
    %v444 = vpack.c.b16 %v372, %v366
    %v445 = vpack.c.b16 %v373, %v367
    %v446 = vpack.c.b16 %v374, %v368
    %v447 = vpack.c.b16 %v375, %v369
    %v448 = vpack.c.b16 %v382, %v376
    %v449 = vpack.c.b16 %v383, %v377
    %v450 = vpack.c.b16 %v384, %v378
    %v451 = vpack.c.b16 %v385, %v379
    %v452 = vpack.c.b16 %v386, %v380
    %v453 = vpack.c.b16 %v387, %v381
    %v454 = vpack.c.b16 %v394, %v388
    %v455 = vpack.c.b16 %v395, %v389
    %v456 = vpack.c.b16 %v396, %v390
    %v457 = vpack.c.b16 %v397, %v391
    %v458 = vpack.c.b16 %v398, %v392
    %v459 = vpack.c.b16 %v399, %v393
    %v460 = vpack.c.b16 %v406, %v400
    %v461 = vpack.c.b16 %v407, %v401
    %v462 = vpack.c.b16 %v408, %v402
    %v463 = vpack.c.b16 %v409, %v403
    %v464 = vpack.c.b16 %v410, %v404
    %v465 = vpack.c.b16 %v411, %v405
    %v466 = vpack.c.b16 %v418, %v412
    %v467 = vpack.c.b16 %v419, %v413
    %v468 = vpack.c.b16 %v420, %v414
    %v469 = vpack.c.b16 %v421, %v415
    %v470 = vpack.c.b16 %v422, %v416
    %v471 = vpack.c.b16 %v423, %v417
    %520 = vmatpush.bf16.msra.mxu0 %v466
    %521 = vmatpush.bf16.msra.mxu0 %v460
    %522 = vmatpush.bf16.msra.mxu0 %v454
    %523 = vmatpush.bf16.msra.mxu0 %v448
    %524 = vmatpush.bf16.msra.mxu0 %v442
    %525 = vmatpush.bf16.msra.mxu0 %v436
    %526 = vmatpush.bf16.msra.mxu0 %v430
    %527 = vmatpush.bf16.msra.mxu0 %v424
    %528 = vmatmul.bf16.gmra.mxu0 %v265
    %v529 = vpop.f32.mrf.mxu0
    %v530 = vadd.f32 %v268, %v529
    %v531 = vpop.f32.mrf.mxu0
    %v532 = vadd.f32 %v268, %v531
    %533 = vdwg.mxu0
    %534 = vmatpush.bf16.msra.mxu0 %v467
    %535 = vmatpush.bf16.msra.mxu0 %v461
    %536 = vmatpush.bf16.msra.mxu0 %v455
    %537 = vmatpush.bf16.msra.mxu0 %v449
    %538 = vmatpush.bf16.msra.mxu0 %v443
    %539 = vmatpush.bf16.msra.mxu0 %v437
    %540 = vmatpush.bf16.msra.mxu0 %v431
    %541 = vmatpush.bf16.msra.mxu0 %v425
    %542 = vmatmul.bf16.gmra.mxu0 %v265
    %v543 = vpop.f32.mrf.mxu0
    %v544 = vadd.f32 %v269, %v543
    %v545 = vpop.f32.mrf.mxu0
    %v546 = vadd.f32 %v269, %v545
    %547 = vdwg.mxu0
    %548 = vmatpush.bf16.msra.mxu0 %v468
    %549 = vmatpush.bf16.msra.mxu0 %v462
    %550 = vmatpush.bf16.msra.mxu0 %v456
    %551 = vmatpush.bf16.msra.mxu0 %v450
    %552 = vmatpush.bf16.msra.mxu0 %v444
    %553 = vmatpush.bf16.msra.mxu0 %v438
    %554 = vmatpush.bf16.msra.mxu0 %v432
    %555 = vmatpush.bf16.msra.mxu0 %v426
    %556 = vmatmul.bf16.gmra.mxu0 %v265
    %v557 = vpop.f32.mrf.mxu0
    %v558 = vadd.f32 %v270, %v557
    %v559 = vpop.f32.mrf.mxu0
    %v560 = vadd.f32 %v270, %v559
    %561 = vdwg.mxu0
    %562 = vmatpush.bf16.msra.mxu0 %v469
    %563 = vmatpush.bf16.msra.mxu0 %v463
    %564 = vmatpush.bf16.msra.mxu0 %v457
    %565 = vmatpush.bf16.msra.mxu0 %v451
    %566 = vmatpush.bf16.msra.mxu0 %v445
    %567 = vmatpush.bf16.msra.mxu0 %v439
    %568 = vmatpush.bf16.msra.mxu0 %v433
    %569 = vmatpush.bf16.msra.mxu0 %v427
    %570 = vmatmul.bf16.gmra.mxu0 %v265
    %v571 = vpop.f32.mrf.mxu0
    %v572 = vadd.f32 %v271, %v571
    %v573 = vpop.f32.mrf.mxu0
    %v574 = vadd.f32 %v271, %v573
    %575 = vdwg.mxu0
    %576 = vmatpush.bf16.msra.mxu0 %v470
    %577 = vmatpush.bf16.msra.mxu0 %v464
    %578 = vmatpush.bf16.msra.mxu0 %v458
    %579 = vmatpush.bf16.msra.mxu0 %v452
    %580 = vmatpush.bf16.msra.mxu0 %v446
    %581 = vmatpush.bf16.msra.mxu0 %v440
    %582 = vmatpush.bf16.msra.mxu0 %v434
    %583 = vmatpush.bf16.msra.mxu0 %v428
    %584 = vmatmul.bf16.gmra.mxu0 %v265
    %v585 = vpop.f32.mrf.mxu0
    %v586 = vadd.f32 %v272, %v585
    %v587 = vpop.f32.mrf.mxu0
    %v588 = vadd.f32 %v272, %v587
    %589 = vdwg.mxu0
    %590 = vmatpush.bf16.msra.mxu0 %v471
    %591 = vmatpush.bf16.msra.mxu0 %v465
    %592 = vmatpush.bf16.msra.mxu0 %v459
    %593 = vmatpush.bf16.msra.mxu0 %v453
    %594 = vmatpush.bf16.msra.mxu0 %v447
    %595 = vmatpush.bf16.msra.mxu0 %v441
    %596 = vmatpush.bf16.msra.mxu0 %v435
    %597 = vmatpush.bf16.msra.mxu0 %v429
    %598 = vmatmul.bf16.gmra.mxu0 %v265
    %v599 = vpop.f32.mrf.mxu0
    %v600 = vadd.f32 %v273, %v599
    %v601 = vpop.f32.mrf.mxu0
    %v602 = vadd.f32 %v273, %v601
    %603 = vdwg.mxu0
    %v604 = vpack.c.bf16 %v544, %v530
    %v605 = vpack.c.bf16 %v572, %v558
    %v606 = vpack.c.bf16 %v600, %v586
    %v607 = vpack.c.bf16 %v546, %v532
    %v608 = vpack.c.bf16 %v574, %v560
    %v609 = vpack.c.bf16 %v602, %v588
    %v612 = vunpack.c.l.b16 %v604
    %v613 = vunpack.c.l.b16 %v607
    %v614 = vpack.c.b16 %v613, %v612
    %v616 = vunpack.c.h.b16 %v604
    %v617 = vunpack.c.h.b16 %v607
    %v618 = vpack.c.b16 %v617, %v616
    %v622 = vunpack.c.l.b16 %v605
    %v623 = vunpack.c.l.b16 %v608
    %v624 = vpack.c.b16 %v623, %v622
    %v626 = vunpack.c.h.b16 %v605
    %v627 = vunpack.c.h.b16 %v608
    %v628 = vpack.c.b16 %v627, %v626
    %v630 = vld [vmem:[%s5] sm:$0xff]
    %v631 = vld [vmem:[%s5 + $0x8] sm:$0xff]
    %v632 = vld [vmem:[%s5 + $0x10] sm:$0xff]
    %v633 = vld [vmem:[%s5 + $0x18] sm:$0xff]
    %v634 = vld [vmem:[%s5 + $0x20] sm:$0xff]
    %v635 = vld [vmem:[%s5 + $0x28] sm:$0xff]
    %v636 = vld [vmem:[%s5 + $0x30] sm:$0xff]
    %v637 = vld [vmem:[%s5 + $0x38] sm:$0xff]
    %v640 = vunpack.c.l.b16 %v606
    %v641 = vunpack.c.l.b16 %v609
    %v642 = vpack.c.b16 %v641, %v640
    %644 = vmatpush.bf16.xpose.msra.mxu0 0
    %645 = vmatpush.bf16.xpose.msra.mxu0 0
    %646 = vmatpush.bf16.xpose.msra.mxu0 0
    %647 = vmatpush.bf16.xpose.msra.mxu0 0
    %648 = vmatpush.bf16.xpose.msra.mxu0 0
    %649 = vmatpush.bf16.xpose.msra.mxu0 0
    %650 = vmatpush.bf16.xpose.msra.mxu0 0
    %651 = vmatpush.bf16.xpose.msra.mxu0 %v642
    %652 = vmatmul.bf16.gmra.mxu0 %v614
    %v653 = vpop.f32.mrf.mxu0
    %v654 = vadd.f32 %v630, %v653
    %v655 = vpop.f32.mrf.mxu0
    %v656 = vadd.f32 %v631, %v655
    %657 = vmatmul.bf16.gmra.mxu0 %v618
    %v658 = vpop.f32.mrf.mxu0
    %v659 = vadd.f32 %v632, %v658
    %v660 = vpop.f32.mrf.mxu0
    %v661 = vadd.f32 %v633, %v660
    %662 = vmatmul.bf16.gmra.mxu0 %v624
    %v663 = vpop.f32.mrf.mxu0
    %v664 = vadd.f32 %v634, %v663
    %v665 = vpop.f32.mrf.mxu0
    %v666 = vadd.f32 %v635, %v665
    %667 = vmatmul.bf16.gmra.mxu0 %v628
    %v668 = vpop.f32.mrf.mxu0
    %v669 = vadd.f32 %v636, %v668
    %v670 = vpop.f32.mrf.mxu0
    %v671 = vadd.f32 %v637, %v670
    %672 = vdwg.mxu0
    %v673 = vsel %vm144, %v654, -inf
    %674 = vmax.xlane.f32.xlu0 %v673
    %v675 = vpop.xlane.xlu0 %674
    %v676 = vsel %vm144, %v656, -inf
    %677 = vmax.xlane.f32.xlu0 %v676
    %v678 = vpop.xlane.xlu0 %677
    %v679 = vsel %vm144, %v659, -inf
    %680 = vmax.xlane.f32.xlu0 %v679
    %v681 = vpop.xlane.xlu0 %680
    %v682 = vsel %vm144, %v661, -inf
    %683 = vmax.xlane.f32.xlu0 %v682
    %v684 = vpop.xlane.xlu0 %683
    %v685 = vsel %vm144, %v664, -inf
    %686 = vmax.xlane.f32.xlu0 %v685
    %v687 = vpop.xlane.xlu0 %686
    %v688 = vsel %vm144, %v666, -inf
    %689 = vmax.xlane.f32.xlu0 %v688
    %v690 = vpop.xlane.xlu0 %689
    %v691 = vsel %vm144, %v669, -inf
    %692 = vmax.xlane.f32.xlu0 %v691
    %v693 = vpop.xlane.xlu0 %692
    %v694 = vsel %vm144, %v671, -inf
    %695 = vmax.xlane.f32.xlu0 %v694
    %v696 = vpop.xlane.xlu0 %695
    %v697 = vsub.f32 %v654, %v675
    %v698 = vsub.f32 %v656, %v678
    %v699 = vsub.f32 %v659, %v681
    %v700 = vsub.f32 %v661, %v684
    %v701 = vsub.f32 %v664, %v687
    %v702 = vsub.f32 %v666, %v690
    %v703 = vsub.f32 %v669, %v693
    %v704 = vsub.f32 %v671, %v696
    %v705 = vmul.f32 %v697, 1.442695
    %v706 = vpow.pop %v705
    %v707 = vmul.f32 %v698, 1.442695
    %v708 = vpow.pop %v707
    %v709 = vmul.f32 %v699, 1.442695
    %v710 = vpow.pop %v709
    %v711 = vmul.f32 %v700, 1.442695
    %v712 = vpow.pop %v711
    %v713 = vmul.f32 %v701, 1.442695
    %v714 = vpow.pop %v713
    %v715 = vmul.f32 %v702, 1.442695
    %v716 = vpow.pop %v715
    %v717 = vmul.f32 %v703, 1.442695
    %v718 = vpow.pop %v717
    %v719 = vmul.f32 %v704, 1.442695
    %v720 = vpow.pop %v719
    %v721 = vsel %vm144, %v706, 0.0
    %722 = vadd.xlane.f32.xlu0 %v721
    %v723 = vpop.xlane.xlu0 %722
    %v724 = vsel %vm144, %v708, 0.0
    %725 = vadd.xlane.f32.xlu0 %v724
    %v726 = vpop.xlane.xlu0 %725
    %v727 = vsel %vm144, %v710, 0.0
    %728 = vadd.xlane.f32.xlu0 %v727
    %v729 = vpop.xlane.xlu0 %728
    %v730 = vsel %vm144, %v712, 0.0
    %731 = vadd.xlane.f32.xlu0 %v730
    %v732 = vpop.xlane.xlu0 %731
    %v733 = vsel %vm144, %v714, 0.0
    %734 = vadd.xlane.f32.xlu0 %v733
    %v735 = vpop.xlane.xlu0 %734
    %v736 = vsel %vm144, %v716, 0.0
    %737 = vadd.xlane.f32.xlu0 %v736
    %v738 = vpop.xlane.xlu0 %737
    %v739 = vsel %vm144, %v718, 0.0
    %740 = vadd.xlane.f32.xlu0 %v739
    %v741 = vpop.xlane.xlu0 %740
    %v742 = vsel %vm144, %v720, 0.0
    %743 = vadd.xlane.f32.xlu0 %v742
    %v744 = vpop.xlane.xlu0 %743
    %v745 = vrcp.pop %v723
    %v746 = vrcp.pop %v726
    %v747 = vrcp.pop %v729
    %v748 = vrcp.pop %v732
    %v749 = vrcp.pop %v735
    %v750 = vrcp.pop %v738
    %v751 = vrcp.pop %v741
    %v752 = vrcp.pop %v744
    %v753 = vmul.f32 %v706, %v745
    %v754 = vmul.f32 %v708, %v746
    %v755 = vmul.f32 %v710, %v747
    %v756 = vmul.f32 %v712, %v748
    %v757 = vmul.f32 %v714, %v749
    %v758 = vmul.f32 %v716, %v750
    %v759 = vmul.f32 %v718, %v751
    %v760 = vmul.f32 %v720, %v752
    %v761 = vpack.c.bf16 %v754, %v753
    %v762 = vpack.c.bf16 %v756, %v755
    %v763 = vpack.c.bf16 %v758, %v757
    %v764 = vpack.c.bf16 %v760, %v759
    %v765 = vunpack.c.h.b16 %v606
    %v766 = vunpack.c.h.b16 %v609
    %v767 = vpack.c.b16 %v766, %v765
    %v770 = vsel %vm144, %v761, 0
    %v773 = vsel %vm144, %v762, 0
    %v776 = vsel %vm144, %v763, 0
    %v779 = vsel %vm144, %v764, 0
    %781 = vmatpush.bf16.msra.mxu0 0
    %782 = vmatpush.bf16.msra.mxu0 0
    %783 = vmatpush.bf16.msra.mxu0 0
    %784 = vmatpush.bf16.msra.mxu0 0
    %785 = vmatpush.bf16.msra.mxu0 0
    %786 = vmatpush.bf16.msra.mxu0 0
    %787 = vmatpush.bf16.msra.mxu0 0
    %788 = vmatpush.bf16.msra.mxu0 %v767
    %789 = vmatmul.bf16.gmra.mxu0 %v770
    %v790 = vpop.f32.mrf.mxu0
    %v791 = vadd.f32 0.0, %v790
    %v792 = vpop.f32.mrf.mxu0
    %v793 = vadd.f32 0.0, %v792
    %794 = vmatmul.bf16.gmra.mxu0 %v773
    %v795 = vpop.f32.mrf.mxu0
    %v796 = vadd.f32 0.0, %v795
    %v797 = vpop.f32.mrf.mxu0
    %v798 = vadd.f32 0.0, %v797
    %799 = vmatmul.bf16.gmra.mxu0 %v776
    %v800 = vpop.f32.mrf.mxu0
    %v801 = vadd.f32 0.0, %v800
    %v802 = vpop.f32.mrf.mxu0
    %v803 = vadd.f32 0.0, %v802
    %804 = vmatmul.bf16.gmra.mxu0 %v779
    %v805 = vpop.f32.mrf.mxu0
    %v806 = vadd.f32 0.0, %v805
    %v807 = vpop.f32.mrf.mxu0
    %v808 = vadd.f32 0.0, %v807
    %809 = vdwg.mxu0
    %v810 = vpack.c.bf16 %v791, %v791
    %v811 = vpack.c.bf16 %v793, %v793
    %v812 = vpack.c.bf16 %v796, %v796
    %v813 = vpack.c.bf16 %v798, %v798
    %v814 = vpack.c.bf16 %v801, %v801
    %v815 = vpack.c.bf16 %v803, %v803
    %v816 = vpack.c.bf16 %v806, %v806
    %v817 = vpack.c.bf16 %v808, %v808
    %v818 = vld [vmem:[#allocation4 + $0x18] sm:$0xf]
    %v819 = vld [vmem:[#allocation4 + $0x50] sm:$0xf]
    %v820 = vld [vmem:[#allocation4 + $0x88] sm:$0xf]
    %v821 = vld [vmem:[#allocation4 + $0xc0] sm:$0xf]
    %v822 = vld [vmem:[#allocation4 + $0xf8] sm:$0xf]
    %v823 = vld [vmem:[#allocation4 + $0x130] sm:$0xf]
    %v824 = vld [vmem:[#allocation4 + $0x168] sm:$0xf]
    %v825 = vld [vmem:[#allocation4 + $0x1a0] sm:$0xf]
    %v826 = vld [vmem:[#allocation4 + $0x1d8] sm:$0xf]
    %v827 = vld [vmem:[#allocation4 + $0x210] sm:$0xf]
    %v828 = vld [vmem:[#allocation4 + $0x248] sm:$0xf]
    %v829 = vld [vmem:[#allocation4 + $0x280] sm:$0xf]
    %v830 = vld [vmem:[#allocation4 + $0x2b8] sm:$0xf]
    %v831 = vld [vmem:[#allocation4 + $0x2f0] sm:$0xf]
    %v832 = vld [vmem:[#allocation4 + $0x328] sm:$0xf]
    %v833 = vld [vmem:[#allocation4 + $0x360] sm:$0xf]
    %v834 = vld [vmem:[#allocation4 + $0x1c] sm:$0xf]
    %v835 = vld [vmem:[#allocation4 + $0x54] sm:$0xf]
    %v836 = vld [vmem:[#allocation4 + $0x8c] sm:$0xf]
    %v837 = vld [vmem:[#allocation4 + $0xc4] sm:$0xf]
    %v838 = vld [vmem:[#allocation4 + $0xfc] sm:$0xf]
    %v839 = vld [vmem:[#allocation4 + $0x134] sm:$0xf]
    %v840 = vld [vmem:[#allocation4 + $0x16c] sm:$0xf]
    %v841 = vld [vmem:[#allocation4 + $0x1a4] sm:$0xf]
    %v842 = vld [vmem:[#allocation4 + $0x1dc] sm:$0xf]
    %v843 = vld [vmem:[#allocation4 + $0x214] sm:$0xf]
    %v844 = vld [vmem:[#allocation4 + $0x24c] sm:$0xf]
    %v845 = vld [vmem:[#allocation4 + $0x284] sm:$0xf]
    %v846 = vld [vmem:[#allocation4 + $0x2bc] sm:$0xf]
    %v847 = vld [vmem:[#allocation4 + $0x2f4] sm:$0xf]
    %v848 = vld [vmem:[#allocation4 + $0x32c] sm:$0xf]
    %v849 = vld [vmem:[#allocation4 + $0x364] sm:$0xf]
    %v852 = vunpack.c.l.b16 %v812
    %v853 = vunpack.c.l.b16 %v813
    %v854 = vpack.c.b16 %v853, %v852
    %v872 = vunpack.c.l.b16 %v834
    %v873 = vunpack.c.l.b16 %v835
    %v874 = vunpack.c.l.b16 %v836
    %v875 = vunpack.c.l.b16 %v837
    %v876 = vunpack.c.l.b16 %v838
    %v877 = vunpack.c.l.b16 %v839
    %v878 = vunpack.c.l.b16 %v840
    %v879 = vunpack.c.l.b16 %v841
    %v880 = vunpack.c.l.b16 %v842
    %v881 = vunpack.c.l.b16 %v843
    %v882 = vunpack.c.l.b16 %v844
    %v883 = vunpack.c.l.b16 %v845
    %v884 = vunpack.c.l.b16 %v846
    %v885 = vunpack.c.l.b16 %v847
    %v886 = vunpack.c.l.b16 %v848
    %v887 = vunpack.c.l.b16 %v849
    %v888 = vpack.c.b16 %v873, %v872
    %v889 = vpack.c.b16 %v875, %v874
    %v890 = vpack.c.b16 %v877, %v876
    %v891 = vpack.c.b16 %v879, %v878
    %v892 = vpack.c.b16 %v881, %v880
    %v893 = vpack.c.b16 %v883, %v882
    %v894 = vpack.c.b16 %v885, %v884
    %v895 = vpack.c.b16 %v887, %v886
    %904 = vmatpush.bf16.msra.mxu0 %v895
    %905 = vmatpush.bf16.msra.mxu0 %v894
    %906 = vmatpush.bf16.msra.mxu0 %v893
    %907 = vmatpush.bf16.msra.mxu0 %v892
    %908 = vmatpush.bf16.msra.mxu0 %v891
    %909 = vmatpush.bf16.msra.mxu0 %v890
    %910 = vmatpush.bf16.msra.mxu0 %v889
    %911 = vmatpush.bf16.msra.mxu0 %v888
    %912 = vmatmul.bf16.gmra.mxu0 %v854
    %v913 = vpop.f32.mrf.mxu0
    %v914 = vadd.f32 0.0, %v913
    %v915 = vpop.f32.mrf.mxu0
    %v916 = vadd.f32 0.0, %v915
    %917 = vdwg.mxu0
    %v920 = vunpack.c.l.b16 %v810
    %v921 = vunpack.c.l.b16 %v811
    %v922 = vpack.c.b16 %v921, %v920
    %v940 = vunpack.c.l.b16 %v818
    %v941 = vunpack.c.l.b16 %v819
    %v942 = vunpack.c.l.b16 %v820
    %v943 = vunpack.c.l.b16 %v821
    %v944 = vunpack.c.l.b16 %v822
    %v945 = vunpack.c.l.b16 %v823
    %v946 = vunpack.c.l.b16 %v824
    %v947 = vunpack.c.l.b16 %v825
    %v948 = vunpack.c.l.b16 %v826
    %v949 = vunpack.c.l.b16 %v827
    %v950 = vunpack.c.l.b16 %v828
    %v951 = vunpack.c.l.b16 %v829
    %v952 = vunpack.c.l.b16 %v830
    %v953 = vunpack.c.l.b16 %v831
    %v954 = vunpack.c.l.b16 %v832
    %v955 = vunpack.c.l.b16 %v833
    %v956 = vpack.c.b16 %v941, %v940
    %v957 = vpack.c.b16 %v943, %v942
    %v958 = vpack.c.b16 %v945, %v944
    %v959 = vpack.c.b16 %v947, %v946
    %v960 = vpack.c.b16 %v949, %v948
    %v961 = vpack.c.b16 %v951, %v950
    %v962 = vpack.c.b16 %v953, %v952
    %v963 = vpack.c.b16 %v955, %v954
    %972 = vmatpush.bf16.msra.mxu0 %v963
    %973 = vmatpush.bf16.msra.mxu0 %v962
    %974 = vmatpush.bf16.msra.mxu0 %v961
    %975 = vmatpush.bf16.msra.mxu0 %v960
    %976 = vmatpush.bf16.msra.mxu0 %v959
    %977 = vmatpush.bf16.msra.mxu0 %v958
    %978 = vmatpush.bf16.msra.mxu0 %v957
    %979 = vmatpush.bf16.msra.mxu0 %v956
    %980 = vmatmul.bf16.gmra.mxu0 %v922
    %v981 = vpop.f32.mrf.mxu0
    %v982 = vadd.f32 %v914, %v981
    %v983 = vpop.f32.mrf.mxu0
    %v984 = vadd.f32 %v916, %v983
    %985 = vdwg.mxu0
    %v986 = vld [vmem:[#allocation4 + $0x20] sm:$0xf]
    %v987 = vld [vmem:[#allocation4 + $0x58] sm:$0xf]
    %v988 = vld [vmem:[#allocation4 + $0x90] sm:$0xf]
    %v989 = vld [vmem:[#allocation4 + $0xc8] sm:$0xf]
    %v990 = vld [vmem:[#allocation4 + $0x100] sm:$0xf]
    %v991 = vld [vmem:[#allocation4 + $0x138] sm:$0xf]
    %v992 = vld [vmem:[#allocation4 + $0x170] sm:$0xf]
    %v993 = vld [vmem:[#allocation4 + $0x1a8] sm:$0xf]
    %v994 = vld [vmem:[#allocation4 + $0x1e0] sm:$0xf]
    %v995 = vld [vmem:[#allocation4 + $0x218] sm:$0xf]
    %v996 = vld [vmem:[#allocation4 + $0x250] sm:$0xf]
    %v997 = vld [vmem:[#allocation4 + $0x288] sm:$0xf]
    %v998 = vld [vmem:[#allocation4 + $0x2c0] sm:$0xf]
    %v999 = vld [vmem:[#allocation4 + $0x2f8] sm:$0xf]
    %v1000 = vld [vmem:[#allocation4 + $0x330] sm:$0xf]
    %v1001 = vld [vmem:[#allocation4 + $0x368] sm:$0xf]
    %v1004 = vunpack.c.l.b16 %v814
    %v1005 = vunpack.c.l.b16 %v815
    %v1006 = vpack.c.b16 %v1005, %v1004
    %v1024 = vunpack.c.l.b16 %v986
    %v1025 = vunpack.c.l.b16 %v987
    %v1026 = vunpack.c.l.b16 %v988
    %v1027 = vunpack.c.l.b16 %v989
    %v1028 = vunpack.c.l.b16 %v990
    %v1029 = vunpack.c.l.b16 %v991
    %v1030 = vunpack.c.l.b16 %v992
    %v1031 = vunpack.c.l.b16 %v993
    %v1032 = vunpack.c.l.b16 %v994
    %v1033 = vunpack.c.l.b16 %v995
    %v1034 = vunpack.c.l.b16 %v996
    %v1035 = vunpack.c.l.b16 %v997
    %v1036 = vunpack.c.l.b16 %v998
    %v1037 = vunpack.c.l.b16 %v999
    %v1038 = vunpack.c.l.b16 %v1000
    %v1039 = vunpack.c.l.b16 %v1001
    %v1040 = vpack.c.b16 %v1025, %v1024
    %v1041 = vpack.c.b16 %v1027, %v1026
    %v1042 = vpack.c.b16 %v1029, %v1028
    %v1043 = vpack.c.b16 %v1031, %v1030
    %v1044 = vpack.c.b16 %v1033, %v1032
    %v1045 = vpack.c.b16 %v1035, %v1034
    %v1046 = vpack.c.b16 %v1037, %v1036
    %v1047 = vpack.c.b16 %v1039, %v1038
    %1056 = vmatpush.bf16.msra.mxu0 %v1047
    %1057 = vmatpush.bf16.msra.mxu0 %v1046
    %1058 = vmatpush.bf16.msra.mxu0 %v1045
    %1059 = vmatpush.bf16.msra.mxu0 %v1044
    %1060 = vmatpush.bf16.msra.mxu0 %v1043
    %1061 = vmatpush.bf16.msra.mxu0 %v1042
    %1062 = vmatpush.bf16.msra.mxu0 %v1041
    %1063 = vmatpush.bf16.msra.mxu0 %v1040
    %1064 = vmatmul.bf16.gmra.mxu0 %v1006
    %v1065 = vpop.f32.mrf.mxu0
    %v1066 = vadd.f32 0.0, %v1065
    %v1067 = vpop.f32.mrf.mxu0
    %v1068 = vadd.f32 0.0, %v1067
    %1069 = vdwg.mxu0
    %v1070 = vadd.f32 %v982, %v1066
    %v1071 = vadd.f32 %v984, %v1068
    %v1072 = vld [vmem:[#allocation4 + $0x24] sm:$0xf]
    %v1073 = vld [vmem:[#allocation4 + $0x5c] sm:$0xf]
    %v1074 = vld [vmem:[#allocation4 + $0x94] sm:$0xf]
    %v1075 = vld [vmem:[#allocation4 + $0xcc] sm:$0xf]
    %v1076 = vld [vmem:[#allocation4 + $0x104] sm:$0xf]
    %v1077 = vld [vmem:[#allocation4 + $0x13c] sm:$0xf]
    %v1078 = vld [vmem:[#allocation4 + $0x174] sm:$0xf]
    %v1079 = vld [vmem:[#allocation4 + $0x1ac] sm:$0xf]
    %v1080 = vld [vmem:[#allocation4 + $0x1e4] sm:$0xf]
    %v1081 = vld [vmem:[#allocation4 + $0x21c] sm:$0xf]
    %v1082 = vld [vmem:[#allocation4 + $0x254] sm:$0xf]
    %v1083 = vld [vmem:[#allocation4 + $0x28c] sm:$0xf]
    %v1084 = vld [vmem:[#allocation4 + $0x2c4] sm:$0xf]
    %v1085 = vld [vmem:[#allocation4 + $0x2fc] sm:$0xf]
    %v1086 = vld [vmem:[#allocation4 + $0x334] sm:$0xf]
    %v1087 = vld [vmem:[#allocation4 + $0x36c] sm:$0xf]
    %v1090 = vunpack.c.l.b16 %v816
    %v1091 = vunpack.c.l.b16 %v817
    %v1092 = vpack.c.b16 %v1091, %v1090
    %v1110 = vunpack.c.l.b16 %v1072
    %v1111 = vunpack.c.l.b16 %v1073
    %v1112 = vunpack.c.l.b16 %v1074
    %v1113 = vunpack.c.l.b16 %v1075
    %v1114 = vunpack.c.l.b16 %v1076
    %v1115 = vunpack.c.l.b16 %v1077
    %v1116 = vunpack.c.l.b16 %v1078
    %v1117 = vunpack.c.l.b16 %v1079
    %v1118 = vunpack.c.l.b16 %v1080
    %v1119 = vunpack.c.l.b16 %v1081
    %v1120 = vunpack.c.l.b16 %v1082
    %v1121 = vunpack.c.l.b16 %v1083
    %v1122 = vunpack.c.l.b16 %v1084
    %v1123 = vunpack.c.l.b16 %v1085
    %v1124 = vunpack.c.l.b16 %v1086
    %v1125 = vunpack.c.l.b16 %v1087
    %v1126 = vpack.c.b16 %v1111, %v1110
    %v1127 = vpack.c.b16 %v1113, %v1112
    %v1128 = vpack.c.b16 %v1115, %v1114
    %v1129 = vpack.c.b16 %v1117, %v1116
    %v1130 = vpack.c.b16 %v1119, %v1118
    %v1131 = vpack.c.b16 %v1121, %v1120
    %v1132 = vpack.c.b16 %v1123, %v1122
    %v1133 = vpack.c.b16 %v1125, %v1124
    %1142 = vmatpush.bf16.msra.mxu0 %v1133
    %1143 = vmatpush.bf16.msra.mxu0 %v1132
    %1144 = vmatpush.bf16.msra.mxu0 %v1131
    %1145 = vmatpush.bf16.msra.mxu0 %v1130
    %1146 = vmatpush.bf16.msra.mxu0 %v1129
    %1147 = vmatpush.bf16.msra.mxu0 %v1128
    %1148 = vmatpush.bf16.msra.mxu0 %v1127
    %1149 = vmatpush.bf16.msra.mxu0 %v1126
    %1150 = vmatmul.bf16.gmra.mxu0 %v1092
    %v1151 = vpop.f32.mrf.mxu0
    %v1152 = vadd.f32 0.0, %v1151
    %v1153 = vpop.f32.mrf.mxu0
    %v1154 = vadd.f32 0.0, %v1153
    %1155 = vdwg.mxu0
    %v1156 = vadd.f32 %v1070, %v1152
    %v1157 = vadd.f32 %v1071, %v1154
    %v1158 = vld [vmem:[%s2 + $0x12] sm:$0x1]
    %v1159 = vperm.slane %v1158, 0
    %v1160 = vadd.f32 %v1156, %v1159
    %v1161 = vadd.f32 %v1157, %v1159
    %v1162 = vadd.f32 %v215, %v1160
    %v1163 = vadd.f32 %v216, %v1161
    %v1164 = vld [vmem:[%s2 + $0x13] sm:$0x1]
    %v1165 = vld [vmem:[%s2 + $0x14] sm:$0x1]
    %1166 = vadd.xlane.f32.xlu0 %v1162
    %v1167 = vpop.xlane.xlu0 %1166
    %1168 = vadd.xlane.f32.xlu0 %v1163
    %v1169 = vpop.xlane.xlu0 %1168
    %v1170 = vmul.f32 %v1167, %v174
    %v1171 = vmul.f32 %v1169, %v174
    %v1172 = vsub.f32 %v1162, %v1170
    %v1173 = vsub.f32 %v1163, %v1171
    %v1174 = vmul.f32 %v1172, %v1172
    %v1175 = vmul.f32 %v1173, %v1173
    %1176 = vadd.xlane.f32.xlu0 %v1174
    %v1177 = vpop.xlane.xlu0 %1176
    %1178 = vadd.xlane.f32.xlu0 %v1175
    %v1179 = vpop.xlane.xlu0 %1178
    %v1180 = vmul.f32 %v1177, %v174
    %v1181 = vmul.f32 %v1179, %v174
    %v1182 = vadd.f32 %v1180, 1e-05
    %v1183 = vadd.f32 %v1181, 1e-05
    %v1184 = vrsqrt.pop %v1182
    %v1185 = vmul.f32 %v1184, %v1182
    %v1186 = vmul.f32 %v1185, %v1184
    %v1187 = vmul.f32 0.5, %v1186
    %v1188 = vsub.f32 1.5, %v1187
    %v1189 = vmul.f32 %v1184, %v1188
    %vm1190 = vweird.f32 %v1182
    %vm1191 = vweird.f32 %v1184
    %vm1192 = vmor %vm1190, %vm1191
    %v1193 = vsel %vm1192, %v1184, %v1189
    %v1194 = vrsqrt.pop %v1183
    %v1195 = vmul.f32 %v1194, %v1183
    %v1196 = vmul.f32 %v1195, %v1194
    %v1197 = vmul.f32 0.5, %v1196
    %v1198 = vsub.f32 1.5, %v1197
    %v1199 = vmul.f32 %v1194, %v1198
    %vm1200 = vweird.f32 %v1183
    %vm1201 = vweird.f32 %v1194
    %vm1202 = vmor %vm1200, %vm1201
    %v1203 = vsel %vm1202, %v1194, %v1199
    %v1204 = vmul.f32 %v1172, %v1193
    %v1205 = vmul.f32 %v1173, %v1203
    %v1206 = vperm.slane %v1164, 0
    %v1207 = vmul.f32 %v1204, %v1206
    %v1208 = vmul.f32 %v1205, %v1206
    %v1209 = vperm.slane %v1165, 0
    %v1210 = vadd.f32 %v1207, %v1209
    %v1211 = vadd.f32 %v1208, %v1209
    %v1212 = vld [vmem:[#allocation4 + $0x28] sm:$0xff]
    %v1213 = vld [vmem:[#allocation4 + $0x30] sm:$0xff]
    %v1214 = vld [vmem:[#allocation4 + $0x60] sm:$0xff]
    %v1215 = vld [vmem:[#allocation4 + $0x68] sm:$0xff]
    %v1216 = vld [vmem:[#allocation4 + $0x98] sm:$0xff]
    %v1217 = vld [vmem:[#allocation4 + $0xa0] sm:$0xff]
    %v1218 = vld [vmem:[#allocation4 + $0xd0] sm:$0xff]
    %v1219 = vld [vmem:[#allocation4 + $0xd8] sm:$0xff]
    %v1220 = vld [vmem:[#allocation4 + $0x108] sm:$0xff]
    %v1221 = vld [vmem:[#allocation4 + $0x110] sm:$0xff]
    %v1222 = vld [vmem:[#allocation4 + $0x140] sm:$0xff]
    %v1223 = vld [vmem:[#allocation4 + $0x148] sm:$0xff]
    %v1224 = vld [vmem:[#allocation4 + $0x178] sm:$0xff]
    %v1225 = vld [vmem:[#allocation4 + $0x180] sm:$0xff]
    %v1226 = vld [vmem:[#allocation4 + $0x1b0] sm:$0xff]
    %v1227 = vld [vmem:[#allocation4 + $0x1b8] sm:$0xff]
    %v1228 = vld [vmem:[#allocation4 + $0x1e8] sm:$0xff]
    %v1229 = vld [vmem:[#allocation4 + $0x1f0] sm:$0xff]
    %v1230 = vld [vmem:[#allocation4 + $0x220] sm:$0xff]
    %v1231 = vld [vmem:[#allocation4 + $0x228] sm:$0xff]
    %v1232 = vld [vmem:[#allocation4 + $0x258] sm:$0xff]
    %v1233 = vld [vmem:[#allocation4 + $0x260] sm:$0xff]
    %v1234 = vld [vmem:[#allocation4 + $0x290] sm:$0xff]
    %v1235 = vld [vmem:[#allocation4 + $0x298] sm:$0xff]
    %v1236 = vld [vmem:[#allocation4 + $0x2c8] sm:$0xff]
    %v1237 = vld [vmem:[#allocation4 + $0x2d0] sm:$0xff]
    %v1238 = vld [vmem:[#allocation4 + $0x300] sm:$0xff]
    %v1239 = vld [vmem:[#allocation4 + $0x308] sm:$0xff]
    %v1240 = vld [vmem:[#allocation4 + $0x338] sm:$0xff]
    %v1241 = vld [vmem:[#allocation4 + $0x340] sm:$0xff]
    %v1242 = vld [vmem:[#allocation4 + $0x370] sm:$0xff]
    %v1243 = vld [vmem:[#allocation4 + $0x378] sm:$0xff]
    %v1244 = vpack.c.bf16 %v1211, %v1210
    %s1245 = scalar_lea.vmem %s3, 12
    %v1246 = vld [vmem:[%s1245] ss:$2 sm:$0xf]
    %v1248 = vperm.slane %v1246, 0
    %v1249 = vperm.slane %v1246, 1
    %v1250 = vperm.slane %v1246, 2
    %v1251 = vperm.slane %v1246, 3
    %v1288 = vunpack.c.l.b16 %v1212
    %v1289 = vunpack.c.h.b16 %v1212
    %v1290 = vunpack.c.l.b16 %v1213
    %v1291 = vunpack.c.h.b16 %v1213
    %v1292 = vunpack.c.l.b16 %v1214
    %v1293 = vunpack.c.h.b16 %v1214
    %v1294 = vunpack.c.l.b16 %v1215
    %v1295 = vunpack.c.h.b16 %v1215
    %v1296 = vunpack.c.l.b16 %v1216
    %v1297 = vunpack.c.h.b16 %v1216
    %v1298 = vunpack.c.l.b16 %v1217
    %v1299 = vunpack.c.h.b16 %v1217
    %v1300 = vunpack.c.l.b16 %v1218
    %v1301 = vunpack.c.h.b16 %v1218
    %v1302 = vunpack.c.l.b16 %v1219
    %v1303 = vunpack.c.h.b16 %v1219
    %v1304 = vunpack.c.l.b16 %v1220
    %v1305 = vunpack.c.h.b16 %v1220
    %v1306 = vunpack.c.l.b16 %v1221
    %v1307 = vunpack.c.h.b16 %v1221
    %v1308 = vunpack.c.l.b16 %v1222
    %v1309 = vunpack.c.h.b16 %v1222
    %v1310 = vunpack.c.l.b16 %v1223
    %v1311 = vunpack.c.h.b16 %v1223
    %v1312 = vunpack.c.l.b16 %v1224
    %v1313 = vunpack.c.h.b16 %v1224
    %v1314 = vunpack.c.l.b16 %v1225
    %v1315 = vunpack.c.h.b16 %v1225
    %v1316 = vunpack.c.l.b16 %v1226
    %v1317 = vunpack.c.h.b16 %v1226
    %v1318 = vunpack.c.l.b16 %v1227
    %v1319 = vunpack.c.h.b16 %v1227
    %v1320 = vunpack.c.l.b16 %v1228
    %v1321 = vunpack.c.h.b16 %v1228
    %v1322 = vunpack.c.l.b16 %v1229
    %v1323 = vunpack.c.h.b16 %v1229
    %v1324 = vunpack.c.l.b16 %v1230
    %v1325 = vunpack.c.h.b16 %v1230
    %v1326 = vunpack.c.l.b16 %v1231
    %v1327 = vunpack.c.h.b16 %v1231
    %v1328 = vunpack.c.l.b16 %v1232
    %v1329 = vunpack.c.h.b16 %v1232
    %v1330 = vunpack.c.l.b16 %v1233
    %v1331 = vunpack.c.h.b16 %v1233
    %v1332 = vunpack.c.l.b16 %v1234
    %v1333 = vunpack.c.h.b16 %v1234
    %v1334 = vunpack.c.l.b16 %v1235
    %v1335 = vunpack.c.h.b16 %v1235
    %v1336 = vunpack.c.l.b16 %v1236
    %v1337 = vunpack.c.h.b16 %v1236
    %v1338 = vunpack.c.l.b16 %v1237
    %v1339 = vunpack.c.h.b16 %v1237
    %v1340 = vunpack.c.l.b16 %v1238
    %v1341 = vunpack.c.h.b16 %v1238
    %v1342 = vunpack.c.l.b16 %v1239
    %v1343 = vunpack.c.h.b16 %v1239
    %v1344 = vunpack.c.l.b16 %v1240
    %v1345 = vunpack.c.h.b16 %v1240
    %v1346 = vunpack.c.l.b16 %v1241
    %v1347 = vunpack.c.h.b16 %v1241
    %v1348 = vunpack.c.l.b16 %v1242
    %v1349 = vunpack.c.h.b16 %v1242
    %v1350 = vunpack.c.l.b16 %v1243
    %v1351 = vunpack.c.h.b16 %v1243
    %v1352 = vpack.c.b16 %v1292, %v1288
    %v1353 = vpack.c.b16 %v1293, %v1289
    %v1354 = vpack.c.b16 %v1294, %v1290
    %v1355 = vpack.c.b16 %v1295, %v1291
    %v1356 = vpack.c.b16 %v1300, %v1296
    %v1357 = vpack.c.b16 %v1301, %v1297
    %v1358 = vpack.c.b16 %v1302, %v1298
    %v1359 = vpack.c.b16 %v1303, %v1299
    %v1360 = vpack.c.b16 %v1308, %v1304
    %v1361 = vpack.c.b16 %v1309, %v1305
    %v1362 = vpack.c.b16 %v1310, %v1306
    %v1363 = vpack.c.b16 %v1311, %v1307
    %v1364 = vpack.c.b16 %v1316, %v1312
    %v1365 = vpack.c.b16 %v1317, %v1313
    %v1366 = vpack.c.b16 %v1318, %v1314
    %v1367 = vpack.c.b16 %v1319, %v1315
    %v1368 = vpack.c.b16 %v1324, %v1320
    %v1369 = vpack.c.b16 %v1325, %v1321
    %v1370 = vpack.c.b16 %v1326, %v1322
    %v1371 = vpack.c.b16 %v1327, %v1323
    %v1372 = vpack.c.b16 %v1332, %v1328
    %v1373 = vpack.c.b16 %v1333, %v1329
    %v1374 = vpack.c.b16 %v1334, %v1330
    %v1375 = vpack.c.b16 %v1335, %v1331
    %v1376 = vpack.c.b16 %v1340, %v1336
    %v1377 = vpack.c.b16 %v1341, %v1337
    %v1378 = vpack.c.b16 %v1342, %v1338
    %v1379 = vpack.c.b16 %v1343, %v1339
    %v1380 = vpack.c.b16 %v1348, %v1344
    %v1381 = vpack.c.b16 %v1349, %v1345
    %v1382 = vpack.c.b16 %v1350, %v1346
    %v1383 = vpack.c.b16 %v1351, %v1347
    %1416 = vmatpush.bf16.msra.mxu0 %v1380
    %1417 = vmatpush.bf16.msra.mxu0 %v1376
    %1418 = vmatpush.bf16.msra.mxu0 %v1372
    %1419 = vmatpush.bf16.msra.mxu0 %v1368
    %1420 = vmatpush.bf16.msra.mxu0 %v1364
    %1421 = vmatpush.bf16.msra.mxu0 %v1360
    %1422 = vmatpush.bf16.msra.mxu0 %v1356
    %1423 = vmatpush.bf16.msra.mxu0 %v1352
    %1424 = vmatmul.bf16.gmra.mxu0 %v1244
    %v1425 = vpop.f32.mrf.mxu0
    %v1426 = vadd.f32 %v1248, %v1425
    %v1427 = vpop.f32.mrf.mxu0
    %v1428 = vadd.f32 %v1248, %v1427
    %1429 = vdwg.mxu0
    %1430 = vmatpush.bf16.msra.mxu0 %v1381
    %1431 = vmatpush.bf16.msra.mxu0 %v1377
    %1432 = vmatpush.bf16.msra.mxu0 %v1373
    %1433 = vmatpush.bf16.msra.mxu0 %v1369
    %1434 = vmatpush.bf16.msra.mxu0 %v1365
    %1435 = vmatpush.bf16.msra.mxu0 %v1361
    %1436 = vmatpush.bf16.msra.mxu0 %v1357
    %1437 = vmatpush.bf16.msra.mxu0 %v1353
    %1438 = vmatmul.bf16.gmra.mxu0 %v1244
    %v1439 = vpop.f32.mrf.mxu0
    %v1440 = vadd.f32 %v1249, %v1439
    %v1441 = vpop.f32.mrf.mxu0
    %v1442 = vadd.f32 %v1249, %v1441
    %1443 = vdwg.mxu0
    %1444 = vmatpush.bf16.msra.mxu0 %v1382
    %1445 = vmatpush.bf16.msra.mxu0 %v1378
    %1446 = vmatpush.bf16.msra.mxu0 %v1374
    %1447 = vmatpush.bf16.msra.mxu0 %v1370
    %1448 = vmatpush.bf16.msra.mxu0 %v1366
    %1449 = vmatpush.bf16.msra.mxu0 %v1362
    %1450 = vmatpush.bf16.msra.mxu0 %v1358
    %1451 = vmatpush.bf16.msra.mxu0 %v1354
    %1452 = vmatmul.bf16.gmra.mxu0 %v1244
    %v1453 = vpop.f32.mrf.mxu0
    %v1454 = vadd.f32 %v1250, %v1453
    %v1455 = vpop.f32.mrf.mxu0
    %v1456 = vadd.f32 %v1250, %v1455
    %1457 = vdwg.mxu0
    %1458 = vmatpush.bf16.msra.mxu0 %v1383
    %1459 = vmatpush.bf16.msra.mxu0 %v1379
    %1460 = vmatpush.bf16.msra.mxu0 %v1375
    %1461 = vmatpush.bf16.msra.mxu0 %v1371
    %1462 = vmatpush.bf16.msra.mxu0 %v1367
    %1463 = vmatpush.bf16.msra.mxu0 %v1363
    %1464 = vmatpush.bf16.msra.mxu0 %v1359
    %1465 = vmatpush.bf16.msra.mxu0 %v1355
    %1466 = vmatmul.bf16.gmra.mxu0 %v1244
    %v1467 = vpop.f32.mrf.mxu0
    %v1468 = vadd.f32 %v1251, %v1467
    %v1469 = vpop.f32.mrf.mxu0
    %v1470 = vadd.f32 %v1251, %v1469
    %1471 = vdwg.mxu0
    %v1472 = vmul.f32 %v1426, 0.5
    %v1473 = vmul.f32 %v1440, 0.5
    %v1474 = vmul.f32 %v1454, 0.5
    %v1475 = vmul.f32 %v1468, 0.5
    %v1476 = vmul.f32 %v1428, 0.5
    %v1477 = vmul.f32 %v1442, 0.5
    %v1478 = vmul.f32 %v1456, 0.5
    %v1479 = vmul.f32 %v1470, 0.5
    %v1480 = vmul.f32 %v1426, 0.044715
    %v1481 = vmul.f32 %v1440, 0.044715
    %v1482 = vmul.f32 %v1454, 0.044715
    %v1483 = vmul.f32 %v1468, 0.044715
    %v1484 = vmul.f32 %v1428, 0.044715
    %v1485 = vmul.f32 %v1442, 0.044715
    %v1486 = vmul.f32 %v1456, 0.044715
    %v1487 = vmul.f32 %v1470, 0.044715
    %v1488 = vmul.f32 %v1480, %v1426
    %v1489 = vmul.f32 %v1481, %v1440
    %v1490 = vmul.f32 %v1482, %v1454
    %v1491 = vmul.f32 %v1483, %v1468
    %v1492 = vmul.f32 %v1484, %v1428
    %v1493 = vmul.f32 %v1485, %v1442
    %v1494 = vmul.f32 %v1486, %v1456
    %v1495 = vmul.f32 %v1487, %v1470
    %v1496 = vmul.f32 %v1488, %v1426
    %v1497 = vmul.f32 %v1489, %v1440
    %v1498 = vmul.f32 %v1490, %v1454
    %v1499 = vmul.f32 %v1491, %v1468
    %v1500 = vmul.f32 %v1492, %v1428
    %v1501 = vmul.f32 %v1493, %v1442
    %v1502 = vmul.f32 %v1494, %v1456
    %v1503 = vmul.f32 %v1495, %v1470
    %v1504 = vadd.f32 %v1426, %v1496
    %v1505 = vadd.f32 %v1440, %v1497
    %v1506 = vadd.f32 %v1454, %v1498
    %v1507 = vadd.f32 %v1468, %v1499
    %v1508 = vadd.f32 %v1428, %v1500
    %v1509 = vadd.f32 %v1442, %v1501
    %v1510 = vadd.f32 %v1456, %v1502
    %v1511 = vadd.f32 %v1470, %v1503
    %v1512 = vmul.f32 %v1504, 0.7978846
    %v1513 = vmul.f32 %v1505, 0.7978846
    %v1514 = vmul.f32 %v1506, 0.7978846
    %v1515 = vmul.f32 %v1507, 0.7978846
    %v1516 = vmul.f32 %v1508, 0.7978846
    %v1517 = vmul.f32 %v1509, 0.7978846
    %v1518 = vmul.f32 %v1510, 0.7978846
    %v1519 = vmul.f32 %v1511, 0.7978846
    %v1520 = vtanh.pop %v1512
    %v1521 = vtanh.pop %v1513
    %v1522 = vtanh.pop %v1514
    %v1523 = vtanh.pop %v1515
    %v1524 = vtanh.pop %v1516
    %v1525 = vtanh.pop %v1517
    %v1526 = vtanh.pop %v1518
    %v1527 = vtanh.pop %v1519
    %v1528 = vadd.f32 %v1520, 1.0
    %v1529 = vadd.f32 %v1521, 1.0
    %v1530 = vadd.f32 %v1522, 1.0
    %v1531 = vadd.f32 %v1523, 1.0
    %v1532 = vadd.f32 %v1524, 1.0
    %v1533 = vadd.f32 %v1525, 1.0
    %v1534 = vadd.f32 %v1526, 1.0
    %v1535 = vadd.f32 %v1527, 1.0
    %v1536 = vmul.f32 %v1472, %v1528
    %v1537 = vmul.f32 %v1473, %v1529
    %v1538 = vmul.f32 %v1474, %v1530
    %v1539 = vmul.f32 %v1475, %v1531
    %v1540 = vmul.f32 %v1476, %v1532
    %v1541 = vmul.f32 %v1477, %v1533
    %v1542 = vmul.f32 %v1478, %v1534
    %v1543 = vmul.f32 %v1479, %v1535
    %v1544 = vld [vmem:[#allocation7] sm:$0xf]
    %v1545 = vld [vmem:[#allocation7 + $0x4] sm:$0xf]
    %v1546 = vld [vmem:[#allocation7 + $0x8] sm:$0xf]
    %v1547 = vld [vmem:[#allocation7 + $0xc] sm:$0xf]
    %v1548 = vld [vmem:[#allocation7 + $0x10] sm:$0xf]
    %v1549 = vld [vmem:[#allocation7 + $0x14] sm:$0xf]
    %v1550 = vld [vmem:[#allocation7 + $0x18] sm:$0xf]
    %v1551 = vld [vmem:[#allocation7 + $0x1c] sm:$0xf]
    %v1552 = vld [vmem:[#allocation7 + $0x20] sm:$0xf]
    %v1553 = vld [vmem:[#allocation7 + $0x24] sm:$0xf]
    %v1554 = vld [vmem:[#allocation7 + $0x28] sm:$0xf]
    %v1555 = vld [vmem:[#allocation7 + $0x2c] sm:$0xf]
    %v1556 = vld [vmem:[#allocation7 + $0x30] sm:$0xf]
    %v1557 = vld [vmem:[#allocation7 + $0x34] sm:$0xf]
    %v1558 = vld [vmem:[#allocation7 + $0x38] sm:$0xf]
    %v1559 = vld [vmem:[#allocation7 + $0x3c] sm:$0xf]
    %v1560 = vld [vmem:[#allocation7 + $0x40] sm:$0xf]
    %v1561 = vld [vmem:[#allocation7 + $0x44] sm:$0xf]
    %v1562 = vld [vmem:[#allocation7 + $0x48] sm:$0xf]
    %v1563 = vld [vmem:[#allocation7 + $0x4c] sm:$0xf]
    %v1564 = vld [vmem:[#allocation7 + $0x50] sm:$0xf]
    %v1565 = vld [vmem:[#allocation7 + $0x54] sm:$0xf]
    %v1566 = vld [vmem:[#allocation7 + $0x58] sm:$0xf]
    %v1567 = vld [vmem:[#allocation7 + $0x5c] sm:$0xf]
    %v1568 = vld [vmem:[#allocation7 + $0x60] sm:$0xf]
    %v1569 = vld [vmem:[#allocation7 + $0x64] sm:$0xf]
    %v1570 = vld [vmem:[#allocation7 + $0x68] sm:$0xf]
    %v1571 = vld [vmem:[#allocation7 + $0x6c] sm:$0xf]
    %v1572 = vld [vmem:[#allocation7 + $0x70] sm:$0xf]
    %v1573 = vld [vmem:[#allocation7 + $0x74] sm:$0xf]
    %v1574 = vld [vmem:[#allocation7 + $0x78] sm:$0xf]
    %v1575 = vld [vmem:[#allocation7 + $0x7c] sm:$0xf]
    %v1576 = vld [vmem:[#allocation7 + $0x80] sm:$0xf]
    %v1577 = vld [vmem:[#allocation7 + $0x84] sm:$0xf]
    %v1578 = vld [vmem:[#allocation7 + $0x88] sm:$0xf]
    %v1579 = vld [vmem:[#allocation7 + $0x8c] sm:$0xf]
    %v1580 = vld [vmem:[#allocation7 + $0x90] sm:$0xf]
    %v1581 = vld [vmem:[#allocation7 + $0x94] sm:$0xf]
    %v1582 = vld [vmem:[#allocation7 + $0x98] sm:$0xf]
    %v1583 = vld [vmem:[#allocation7 + $0x9c] sm:$0xf]
    %v1584 = vld [vmem:[#allocation7 + $0xa0] sm:$0xf]
    %v1585 = vld [vmem:[#allocation7 + $0xa4] sm:$0xf]
    %v1586 = vld [vmem:[#allocation7 + $0xa8] sm:$0xf]
    %v1587 = vld [vmem:[#allocation7 + $0xac] sm:$0xf]
    %v1588 = vld [vmem:[#allocation7 + $0xb0] sm:$0xf]
    %v1589 = vld [vmem:[#allocation7 + $0xb4] sm:$0xf]
    %v1590 = vld [vmem:[#allocation7 + $0xb8] sm:$0xf]
    %v1591 = vld [vmem:[#allocation7 + $0xbc] sm:$0xf]
    %v1592 = vld [vmem:[#allocation7 + $0xc0] sm:$0xf]
    %v1593 = vld [vmem:[#allocation7 + $0xc4] sm:$0xf]
    %v1594 = vld [vmem:[#allocation7 + $0xc8] sm:$0xf]
    %v1595 = vld [vmem:[#allocation7 + $0xcc] sm:$0xf]
    %v1596 = vld [vmem:[#allocation7 + $0xd0] sm:$0xf]
    %v1597 = vld [vmem:[#allocation7 + $0xd4] sm:$0xf]
    %v1598 = vld [vmem:[#allocation7 + $0xd8] sm:$0xf]
    %v1599 = vld [vmem:[#allocation7 + $0xdc] sm:$0xf]
    %v1600 = vld [vmem:[#allocation7 + $0xe0] sm:$0xf]
    %v1601 = vld [vmem:[#allocation7 + $0xe4] sm:$0xf]
    %v1602 = vld [vmem:[#allocation7 + $0xe8] sm:$0xf]
    %v1603 = vld [vmem:[#allocation7 + $0xec] sm:$0xf]
    %v1604 = vld [vmem:[#allocation7 + $0xf0] sm:$0xf]
    %v1605 = vld [vmem:[#allocation7 + $0xf4] sm:$0xf]
    %v1606 = vld [vmem:[#allocation7 + $0xf8] sm:$0xf]
    %v1607 = vld [vmem:[#allocation7 + $0xfc] sm:$0xf]
    %v1608 = vpack.c.bf16 %v1540, %v1536
    %v1609 = vpack.c.bf16 %v1541, %v1537
    %v1610 = vpack.c.bf16 %v1542, %v1538
    %v1611 = vpack.c.bf16 %v1543, %v1539
    %v1612 = vld [vmem:[%s2 + $0x17] sm:$0x1]
    %v1613 = vperm.slane %v1612, 0
    %v1678 = vunpack.c.l.b16 %v1544
    %v1679 = vunpack.c.l.b16 %v1545
    %v1680 = vunpack.c.l.b16 %v1546
    %v1681 = vunpack.c.l.b16 %v1547
    %v1682 = vunpack.c.l.b16 %v1548
    %v1683 = vunpack.c.l.b16 %v1549
    %v1684 = vunpack.c.l.b16 %v1550
    %v1685 = vunpack.c.l.b16 %v1551
    %v1686 = vunpack.c.l.b16 %v1552
    %v1687 = vunpack.c.l.b16 %v1553
    %v1688 = vunpack.c.l.b16 %v1554
    %v1689 = vunpack.c.l.b16 %v1555
    %v1690 = vunpack.c.l.b16 %v1556
    %v1691 = vunpack.c.l.b16 %v1557
    %v1692 = vunpack.c.l.b16 %v1558
    %v1693 = vunpack.c.l.b16 %v1559
    %v1694 = vunpack.c.l.b16 %v1560
    %v1695 = vunpack.c.l.b16 %v1561
    %v1696 = vunpack.c.l.b16 %v1562
    %v1697 = vunpack.c.l.b16 %v1563
    %v1698 = vunpack.c.l.b16 %v1564
    %v1699 = vunpack.c.l.b16 %v1565
    %v1700 = vunpack.c.l.b16 %v1566
    %v1701 = vunpack.c.l.b16 %v1567
    %v1702 = vunpack.c.l.b16 %v1568
    %v1703 = vunpack.c.l.b16 %v1569
    %v1704 = vunpack.c.l.b16 %v1570
    %v1705 = vunpack.c.l.b16 %v1571
    %v1706 = vunpack.c.l.b16 %v1572
    %v1707 = vunpack.c.l.b16 %v1573
    %v1708 = vunpack.c.l.b16 %v1574
    %v1709 = vunpack.c.l.b16 %v1575
    %v1710 = vunpack.c.l.b16 %v1576
    %v1711 = vunpack.c.l.b16 %v1577
    %v1712 = vunpack.c.l.b16 %v1578
    %v1713 = vunpack.c.l.b16 %v1579
    %v1714 = vunpack.c.l.b16 %v1580
    %v1715 = vunpack.c.l.b16 %v1581
    %v1716 = vunpack.c.l.b16 %v1582
    %v1717 = vunpack.c.l.b16 %v1583
    %v1718 = vunpack.c.l.b16 %v1584
    %v1719 = vunpack.c.l.b16 %v1585
    %v1720 = vunpack.c.l.b16 %v1586
    %v1721 = vunpack.c.l.b16 %v1587
    %v1722 = vunpack.c.l.b16 %v1588
    %v1723 = vunpack.c.l.b16 %v1589
    %v1724 = vunpack.c.l.b16 %v1590
    %v1725 = vunpack.c.l.b16 %v1591
    %v1726 = vunpack.c.l.b16 %v1592
    %v1727 = vunpack.c.l.b16 %v1593
    %v1728 = vunpack.c.l.b16 %v1594
    %v1729 = vunpack.c.l.b16 %v1595
    %v1730 = vunpack.c.l.b16 %v1596
    %v1731 = vunpack.c.l.b16 %v1597
    %v1732 = vunpack.c.l.b16 %v1598
    %v1733 = vunpack.c.l.b16 %v1599
    %v1734 = vunpack.c.l.b16 %v1600
    %v1735 = vunpack.c.l.b16 %v1601
    %v1736 = vunpack.c.l.b16 %v1602
    %v1737 = vunpack.c.l.b16 %v1603
    %v1738 = vunpack.c.l.b16 %v1604
    %v1739 = vunpack.c.l.b16 %v1605
    %v1740 = vunpack.c.l.b16 %v1606
    %v1741 = vunpack.c.l.b16 %v1607
    %v1742 = vpack.c.b16 %v1679, %v1678
    %v1743 = vpack.c.b16 %v1681, %v1680
    %v1744 = vpack.c.b16 %v1683, %v1682
    %v1745 = vpack.c.b16 %v1685, %v1684
    %v1746 = vpack.c.b16 %v1687, %v1686
    %v1747 = vpack.c.b16 %v1689, %v1688
    %v1748 = vpack.c.b16 %v1691, %v1690
    %v1749 = vpack.c.b16 %v1693, %v1692
    %v1750 = vpack.c.b16 %v1695, %v1694
    %v1751 = vpack.c.b16 %v1697, %v1696
    %v1752 = vpack.c.b16 %v1699, %v1698
    %v1753 = vpack.c.b16 %v1701, %v1700
    %v1754 = vpack.c.b16 %v1703, %v1702
    %v1755 = vpack.c.b16 %v1705, %v1704
    %v1756 = vpack.c.b16 %v1707, %v1706
    %v1757 = vpack.c.b16 %v1709, %v1708
    %v1758 = vpack.c.b16 %v1711, %v1710
    %v1759 = vpack.c.b16 %v1713, %v1712
    %v1760 = vpack.c.b16 %v1715, %v1714
    %v1761 = vpack.c.b16 %v1717, %v1716
    %v1762 = vpack.c.b16 %v1719, %v1718
    %v1763 = vpack.c.b16 %v1721, %v1720
    %v1764 = vpack.c.b16 %v1723, %v1722
    %v1765 = vpack.c.b16 %v1725, %v1724
    %v1766 = vpack.c.b16 %v1727, %v1726
    %v1767 = vpack.c.b16 %v1729, %v1728
    %v1768 = vpack.c.b16 %v1731, %v1730
    %v1769 = vpack.c.b16 %v1733, %v1732
    %v1770 = vpack.c.b16 %v1735, %v1734
    %v1771 = vpack.c.b16 %v1737, %v1736
    %v1772 = vpack.c.b16 %v1739, %v1738
    %v1773 = vpack.c.b16 %v1741, %v1740
    %1806 = vmatpush.bf16.msra.mxu0 %v1749
    %1807 = vmatpush.bf16.msra.mxu0 %v1748
    %1808 = vmatpush.bf16.msra.mxu0 %v1747
    %1809 = vmatpush.bf16.msra.mxu0 %v1746
    %1810 = vmatpush.bf16.msra.mxu0 %v1745
    %1811 = vmatpush.bf16.msra.mxu0 %v1744
    %1812 = vmatpush.bf16.msra.mxu0 %v1743
    %1813 = vmatpush.bf16.msra.mxu0 %v1742
    %1814 = vmatmul.bf16.gmra.mxu0 %v1608
    %v1815 = vpop.f32.mrf.mxu0
    %v1816 = vadd.f32 %v1613, %v1815
    %v1817 = vpop.f32.mrf.mxu0
    %v1818 = vadd.f32 %v1613, %v1817
    %1819 = vdwg.mxu0
    %1820 = vmatpush.bf16.msra.mxu0 %v1757
    %1821 = vmatpush.bf16.msra.mxu0 %v1756
    %1822 = vmatpush.bf16.msra.mxu0 %v1755
    %1823 = vmatpush.bf16.msra.mxu0 %v1754
    %1824 = vmatpush.bf16.msra.mxu0 %v1753
    %1825 = vmatpush.bf16.msra.mxu0 %v1752
    %1826 = vmatpush.bf16.msra.mxu0 %v1751
    %1827 = vmatpush.bf16.msra.mxu0 %v1750
    %1828 = vmatmul.bf16.gmra.mxu0 %v1609
    %v1829 = vpop.f32.mrf.mxu0
    %v1830 = vadd.f32 %v1816, %v1829
    %v1831 = vpop.f32.mrf.mxu0
    %v1832 = vadd.f32 %v1818, %v1831
    %1833 = vdwg.mxu0
    %1834 = vmatpush.bf16.msra.mxu0 %v1765
    %1835 = vmatpush.bf16.msra.mxu0 %v1764
    %1836 = vmatpush.bf16.msra.mxu0 %v1763
    %1837 = vmatpush.bf16.msra.mxu0 %v1762
    %1838 = vmatpush.bf16.msra.mxu0 %v1761
    %1839 = vmatpush.bf16.msra.mxu0 %v1760
    %1840 = vmatpush.bf16.msra.mxu0 %v1759
    %1841 = vmatpush.bf16.msra.mxu0 %v1758
    %1842 = vmatmul.bf16.gmra.mxu0 %v1610
    %v1843 = vpop.f32.mrf.mxu0
    %v1844 = vadd.f32 %v1830, %v1843
    %v1845 = vpop.f32.mrf.mxu0
    %v1846 = vadd.f32 %v1832, %v1845
    %1847 = vdwg.mxu0
    %1848 = vmatpush.bf16.msra.mxu0 %v1773
    %1849 = vmatpush.bf16.msra.mxu0 %v1772
    %1850 = vmatpush.bf16.msra.mxu0 %v1771
    %1851 = vmatpush.bf16.msra.mxu0 %v1770
    %1852 = vmatpush.bf16.msra.mxu0 %v1769
    %1853 = vmatpush.bf16.msra.mxu0 %v1768
    %1854 = vmatpush.bf16.msra.mxu0 %v1767
    %1855 = vmatpush.bf16.msra.mxu0 %v1766
    %1856 = vmatmul.bf16.gmra.mxu0 %v1611
    %v1857 = vpop.f32.mrf.mxu0
    %v1858 = vadd.f32 %v1844, %v1857
    %v1859 = vpop.f32.mrf.mxu0
    %v1860 = vadd.f32 %v1846, %v1859
    %1861 = vdwg.mxu0
    %v1862 = vadd.f32 %v1210, %v1858
    %v1863 = vadd.f32 %v1211, %v1860
    %v1864 = vld [vmem:[%s2 + $0x15] sm:$0x1]
    %v1865 = vld [vmem:[%s2 + $0x16] sm:$0x1]
    %1866 = vadd.xlane.f32.xlu0 %v1862
    %v1867 = vpop.xlane.xlu0 %1866
    %1868 = vadd.xlane.f32.xlu0 %v1863
    %v1869 = vpop.xlane.xlu0 %1868
    %v1870 = vmul.f32 %v1867, %v174
    %v1871 = vmul.f32 %v1869, %v174
    %v1872 = vsub.f32 %v1862, %v1870
    %v1873 = vsub.f32 %v1863, %v1871
    %v1874 = vmul.f32 %v1872, %v1872
    %v1875 = vmul.f32 %v1873, %v1873
    %1876 = vadd.xlane.f32.xlu0 %v1874
    %v1877 = vpop.xlane.xlu0 %1876
    %1878 = vadd.xlane.f32.xlu0 %v1875
    %v1879 = vpop.xlane.xlu0 %1878
    %v1880 = vmul.f32 %v1877, %v174
    %v1881 = vmul.f32 %v1879, %v174
    %v1882 = vadd.f32 %v1880, 1e-05
    %v1883 = vadd.f32 %v1881, 1e-05
    %v1884 = vrsqrt.pop %v1882
    %v1885 = vmul.f32 %v1884, %v1882
    %v1886 = vmul.f32 %v1885, %v1884
    %v1887 = vmul.f32 0.5, %v1886
    %v1888 = vsub.f32 1.5, %v1887
    %v1889 = vmul.f32 %v1884, %v1888
    %vm1890 = vweird.f32 %v1882
    %vm1891 = vweird.f32 %v1884
    %vm1892 = vmor %vm1890, %vm1891
    %v1893 = vsel %vm1892, %v1884, %v1889
    %v1894 = vrsqrt.pop %v1883
    %v1895 = vmul.f32 %v1894, %v1883
    %v1896 = vmul.f32 %v1895, %v1894
    %v1897 = vmul.f32 0.5, %v1896
    %v1898 = vsub.f32 1.5, %v1897
    %v1899 = vmul.f32 %v1894, %v1898
    %vm1900 = vweird.f32 %v1883
    %vm1901 = vweird.f32 %v1894
    %vm1902 = vmor %vm1900, %vm1901
    %v1903 = vsel %vm1902, %v1894, %v1899
    %v1904 = vmul.f32 %v1872, %v1893
    %v1905 = vmul.f32 %v1873, %v1903
    %v1906 = vperm.slane %v1864, 0
    %v1907 = vmul.f32 %v1904, %v1906
    %v1908 = vmul.f32 %v1905, %v1906
    %v1909 = vperm.slane %v1865, 0
    %v1910 = vadd.f32 %v1907, %v1909
    %v1911 = vadd.f32 %v1908, %v1909
    %v1912 = vld [vmem:[#allocation6] sm:$0xff]
    %v1913 = vld [vmem:[#allocation6 + $0x8] sm:$0xff]
    %v1914 = vld [vmem:[#allocation6 + $0x10] sm:$0xff]
    %v1915 = vld [vmem:[#allocation6 + $0x38] sm:$0xff]
    %v1916 = vld [vmem:[#allocation6 + $0x40] sm:$0xff]
    %v1917 = vld [vmem:[#allocation6 + $0x48] sm:$0xff]
    %v1918 = vld [vmem:[#allocation6 + $0x70] sm:$0xff]
    %v1919 = vld [vmem:[#allocation6 + $0x78] sm:$0xff]
    %v1920 = vld [vmem:[#allocation6 + $0x80] sm:$0xff]
    %v1921 = vld [vmem:[#allocation6 + $0xa8] sm:$0xff]
    %v1922 = vld [vmem:[#allocation6 + $0xb0] sm:$0xff]
    %v1923 = vld [vmem:[#allocation6 + $0xb8] sm:$0xff]
    %v1924 = vld [vmem:[#allocation6 + $0xe0] sm:$0xff]
    %v1925 = vld [vmem:[#allocation6 + $0xe8] sm:$0xff]
    %v1926 = vld [vmem:[#allocation6 + $0xf0] sm:$0xff]
    %v1927 = vld [vmem:[#allocation6 + $0x118] sm:$0xff]
    %v1928 = vld [vmem:[#allocation6 + $0x120] sm:$0xff]
    %v1929 = vld [vmem:[#allocation6 + $0x128] sm:$0xff]
    %v1930 = vld [vmem:[#allocation6 + $0x150] sm:$0xff]
    %v1931 = vld [vmem:[#allocation6 + $0x158] sm:$0xff]
    %v1932 = vld [vmem:[#allocation6 + $0x160] sm:$0xff]
    %v1933 = vld [vmem:[#allocation6 + $0x188] sm:$0xff]
    %v1934 = vld [vmem:[#allocation6 + $0x190] sm:$0xff]
    %v1935 = vld [vmem:[#allocation6 + $0x198] sm:$0xff]
    %v1936 = vld [vmem:[#allocation6 + $0x1c0] sm:$0xff]
    %v1937 = vld [vmem:[#allocation6 + $0x1c8] sm:$0xff]
    %v1938 = vld [vmem:[#allocation6 + $0x1d0] sm:$0xff]
    %v1939 = vld [vmem:[#allocation6 + $0x1f8] sm:$0xff]
    %v1940 = vld [vmem:[#allocation6 + $0x200] sm:$0xff]
    %v1941 = vld [vmem:[#allocation6 + $0x208] sm:$0xff]
    %v1942 = vld [vmem:[#allocation6 + $0x230] sm:$0xff]
    %v1943 = vld [vmem:[#allocation6 + $0x238] sm:$0xff]
    %v1944 = vld [vmem:[#allocation6 + $0x240] sm:$0xff]
    %v1945 = vld [vmem:[#allocation6 + $0x268] sm:$0xff]
    %v1946 = vld [vmem:[#allocation6 + $0x270] sm:$0xff]
    %v1947 = vld [vmem:[#allocation6 + $0x278] sm:$0xff]
    %v1948 = vld [vmem:[#allocation6 + $0x2a0] sm:$0xff]
    %v1949 = vld [vmem:[#allocation6 + $0x2a8] sm:$0xff]
    %v1950 = vld [vmem:[#allocation6 + $0x2b0] sm:$0xff]
    %v1951 = vld [vmem:[#allocation6 + $0x2d8] sm:$0xff]
    %v1952 = vld [vmem:[#allocation6 + $0x2e0] sm:$0xff]
    %v1953 = vld [vmem:[#allocation6 + $0x2e8] sm:$0xff]
    %v1954 = vld [vmem:[#allocation6 + $0x310] sm:$0xff]
    %v1955 = vld [vmem:[#allocation6 + $0x318] sm:$0xff]
    %v1956 = vld [vmem:[#allocation6 + $0x320] sm:$0xff]
    %v1957 = vld [vmem:[#allocation6 + $0x348] sm:$0xff]
    %v1958 = vld [vmem:[#allocation6 + $0x350] sm:$0xff]
    %v1959 = vld [vmem:[#allocation6 + $0x358] sm:$0xff]
    %v1960 = vpack.c.bf16 %v1911, %v1910
    %s1961 = scalar_lea.vmem %s3, 1
    %v1962 = vld [vmem:[%s1961] ss:$2 sm:$0x3f]
    %v1964 = vperm.slane %v1962, 0
    %v1965 = vperm.slane %v1962, 1
    %v1966 = vperm.slane %v1962, 2
    %v1967 = vperm.slane %v1962, 3
    %v1968 = vperm.slane %v1962, 4
    %v1969 = vperm.slane %v1962, 5
    %v2024 = vunpack.c.l.b16 %v1912
    %v2025 = vunpack.c.h.b16 %v1912
    %v2026 = vunpack.c.l.b16 %v1913
    %v2027 = vunpack.c.h.b16 %v1913
    %v2028 = vunpack.c.l.b16 %v1914
    %v2029 = vunpack.c.h.b16 %v1914
    %v2030 = vunpack.c.l.b16 %v1915
    %v2031 = vunpack.c.h.b16 %v1915
    %v2032 = vunpack.c.l.b16 %v1916
    %v2033 = vunpack.c.h.b16 %v1916
    %v2034 = vunpack.c.l.b16 %v1917
    %v2035 = vunpack.c.h.b16 %v1917
    %v2036 = vunpack.c.l.b16 %v1918
    %v2037 = vunpack.c.h.b16 %v1918
    %v2038 = vunpack.c.l.b16 %v1919
    %v2039 = vunpack.c.h.b16 %v1919
    %v2040 = vunpack.c.l.b16 %v1920
    %v2041 = vunpack.c.h.b16 %v1920
    %v2042 = vunpack.c.l.b16 %v1921
    %v2043 = vunpack.c.h.b16 %v1921
    %v2044 = vunpack.c.l.b16 %v1922
    %v2045 = vunpack.c.h.b16 %v1922
    %v2046 = vunpack.c.l.b16 %v1923
    %v2047 = vunpack.c.h.b16 %v1923
    %v2048 = vunpack.c.l.b16 %v1924
    %v2049 = vunpack.c.h.b16 %v1924
    %v2050 = vunpack.c.l.b16 %v1925
    %v2051 = vunpack.c.h.b16 %v1925
    %v2052 = vunpack.c.l.b16 %v1926
    %v2053 = vunpack.c.h.b16 %v1926
    %v2054 = vunpack.c.l.b16 %v1927
    %v2055 = vunpack.c.h.b16 %v1927
    %v2056 = vunpack.c.l.b16 %v1928
    %v2057 = vunpack.c.h.b16 %v1928
    %v2058 = vunpack.c.l.b16 %v1929
    %v2059 = vunpack.c.h.b16 %v1929
    %v2060 = vunpack.c.l.b16 %v1930
    %v2061 = vunpack.c.h.b16 %v1930
    %v2062 = vunpack.c.l.b16 %v1931
    %v2063 = vunpack.c.h.b16 %v1931
    %v2064 = vunpack.c.l.b16 %v1932
    %v2065 = vunpack.c.h.b16 %v1932
    %v2066 = vunpack.c.l.b16 %v1933
    %v2067 = vunpack.c.h.b16 %v1933
    %v2068 = vunpack.c.l.b16 %v1934
    %v2069 = vunpack.c.h.b16 %v1934
    %v2070 = vunpack.c.l.b16 %v1935
    %v2071 = vunpack.c.h.b16 %v1935
    %v2072 = vunpack.c.l.b16 %v1936
    %v2073 = vunpack.c.h.b16 %v1936
    %v2074 = vunpack.c.l.b16 %v1937
    %v2075 = vunpack.c.h.b16 %v1937
    %v2076 = vunpack.c.l.b16 %v1938
    %v2077 = vunpack.c.h.b16 %v1938
    %v2078 = vunpack.c.l.b16 %v1939
    %v2079 = vunpack.c.h.b16 %v1939
    %v2080 = vunpack.c.l.b16 %v1940
    %v2081 = vunpack.c.h.b16 %v1940
    %v2082 = vunpack.c.l.b16 %v1941
    %v2083 = vunpack.c.h.b16 %v1941
    %v2084 = vunpack.c.l.b16 %v1942
    %v2085 = vunpack.c.h.b16 %v1942
    %v2086 = vunpack.c.l.b16 %v1943
    %v2087 = vunpack.c.h.b16 %v1943
    %v2088 = vunpack.c.l.b16 %v1944
    %v2089 = vunpack.c.h.b16 %v1944
    %v2090 = vunpack.c.l.b16 %v1945
    %v2091 = vunpack.c.h.b16 %v1945
    %v2092 = vunpack.c.l.b16 %v1946
    %v2093 = vunpack.c.h.b16 %v1946
    %v2094 = vunpack.c.l.b16 %v1947
    %v2095 = vunpack.c.h.b16 %v1947
    %v2096 = vunpack.c.l.b16 %v1948
    %v2097 = vunpack.c.h.b16 %v1948
    %v2098 = vunpack.c.l.b16 %v1949
    %v2099 = vunpack.c.h.b16 %v1949
    %v2100 = vunpack.c.l.b16 %v1950
    %v2101 = vunpack.c.h.b16 %v1950
    %v2102 = vunpack.c.l.b16 %v1951
    %v2103 = vunpack.c.h.b16 %v1951
    %v2104 = vunpack.c.l.b16 %v1952
    %v2105 = vunpack.c.h.b16 %v1952
    %v2106 = vunpack.c.l.b16 %v1953
    %v2107 = vunpack.c.h.b16 %v1953
    %v2108 = vunpack.c.l.b16 %v1954
    %v2109 = vunpack.c.h.b16 %v1954
    %v2110 = vunpack.c.l.b16 %v1955
    %v2111 = vunpack.c.h.b16 %v1955
    %v2112 = vunpack.c.l.b16 %v1956
    %v2113 = vunpack.c.h.b16 %v1956
    %v2114 = vunpack.c.l.b16 %v1957
    %v2115 = vunpack.c.h.b16 %v1957
    %v2116 = vunpack.c.l.b16 %v1958
    %v2117 = vunpack.c.h.b16 %v1958
    %v2118 = vunpack.c.l.b16 %v1959
    %v2119 = vunpack.c.h.b16 %v1959
    %v2120 = vpack.c.b16 %v2030, %v2024
    %v2121 = vpack.c.b16 %v2031, %v2025
    %v2122 = vpack.c.b16 %v2032, %v2026
    %v2123 = vpack.c.b16 %v2033, %v2027
    %v2124 = vpack.c.b16 %v2034, %v2028
    %v2125 = vpack.c.b16 %v2035, %v2029
    %v2126 = vpack.c.b16 %v2042, %v2036
    %v2127 = vpack.c.b16 %v2043, %v2037
    %v2128 = vpack.c.b16 %v2044, %v2038
    %v2129 = vpack.c.b16 %v2045, %v2039
    %v2130 = vpack.c.b16 %v2046, %v2040
    %v2131 = vpack.c.b16 %v2047, %v2041
    %v2132 = vpack.c.b16 %v2054, %v2048
    %v2133 = vpack.c.b16 %v2055, %v2049
    %v2134 = vpack.c.b16 %v2056, %v2050
    %v2135 = vpack.c.b16 %v2057, %v2051
    %v2136 = vpack.c.b16 %v2058, %v2052
    %v2137 = vpack.c.b16 %v2059, %v2053
    %v2138 = vpack.c.b16 %v2066, %v2060
    %v2139 = vpack.c.b16 %v2067, %v2061
    %v2140 = vpack.c.b16 %v2068, %v2062
    %v2141 = vpack.c.b16 %v2069, %v2063
    %v2142 = vpack.c.b16 %v2070, %v2064
    %v2143 = vpack.c.b16 %v2071, %v2065
    %v2144 = vpack.c.b16 %v2078, %v2072
    %v2145 = vpack.c.b16 %v2079, %v2073
    %v2146 = vpack.c.b16 %v2080, %v2074
    %v2147 = vpack.c.b16 %v2081, %v2075
    %v2148 = vpack.c.b16 %v2082, %v2076
    %v2149 = vpack.c.b16 %v2083, %v2077
    %v2150 = vpack.c.b16 %v2090, %v2084
    %v2151 = vpack.c.b16 %v2091, %v2085
    %v2152 = vpack.c.b16 %v2092, %v2086
    %v2153 = vpack.c.b16 %v2093, %v2087
    %v2154 = vpack.c.b16 %v2094, %v2088
    %v2155 = vpack.c.b16 %v2095, %v2089
    %v2156 = vpack.c.b16 %v2102, %v2096
    %v2157 = vpack.c.b16 %v2103, %v2097
    %v2158 = vpack.c.b16 %v2104, %v2098
    %v2159 = vpack.c.b16 %v2105, %v2099
    %v2160 = vpack.c.b16 %v2106, %v2100
    %v2161 = vpack.c.b16 %v2107, %v2101
    %v2162 = vpack.c.b16 %v2114, %v2108
    %v2163 = vpack.c.b16 %v2115, %v2109
    %v2164 = vpack.c.b16 %v2116, %v2110
    %v2165 = vpack.c.b16 %v2117, %v2111
    %v2166 = vpack.c.b16 %v2118, %v2112
    %v2167 = vpack.c.b16 %v2119, %v2113
    %2216 = vmatpush.bf16.msra.mxu0 %v2162
    %2217 = vmatpush.bf16.msra.mxu0 %v2156
    %2218 = vmatpush.bf16.msra.mxu0 %v2150
    %2219 = vmatpush.bf16.msra.mxu0 %v2144
    %2220 = vmatpush.bf16.msra.mxu0 %v2138
    %2221 = vmatpush.bf16.msra.mxu0 %v2132
    %2222 = vmatpush.bf16.msra.mxu0 %v2126
    %2223 = vmatpush.bf16.msra.mxu0 %v2120
    %2224 = vmatmul.bf16.gmra.mxu0 %v1960
    %v2225 = vpop.f32.mrf.mxu0
    %v2226 = vadd.f32 %v1964, %v2225
    %v2227 = vpop.f32.mrf.mxu0
    %v2228 = vadd.f32 %v1964, %v2227
    %2229 = vdwg.mxu0
    %2230 = vmatpush.bf16.msra.mxu0 %v2163
    %2231 = vmatpush.bf16.msra.mxu0 %v2157
    %2232 = vmatpush.bf16.msra.mxu0 %v2151
    %2233 = vmatpush.bf16.msra.mxu0 %v2145
    %2234 = vmatpush.bf16.msra.mxu0 %v2139
    %2235 = vmatpush.bf16.msra.mxu0 %v2133
    %2236 = vmatpush.bf16.msra.mxu0 %v2127
    %2237 = vmatpush.bf16.msra.mxu0 %v2121
    %2238 = vmatmul.bf16.gmra.mxu0 %v1960
    %v2239 = vpop.f32.mrf.mxu0
    %v2240 = vadd.f32 %v1965, %v2239
    %v2241 = vpop.f32.mrf.mxu0
    %v2242 = vadd.f32 %v1965, %v2241
    %2243 = vdwg.mxu0
    %2244 = vmatpush.bf16.msra.mxu0 %v2164
    %2245 = vmatpush.bf16.msra.mxu0 %v2158
    %2246 = vmatpush.bf16.msra.mxu0 %v2152
    %2247 = vmatpush.bf16.msra.mxu0 %v2146
    %2248 = vmatpush.bf16.msra.mxu0 %v2140
    %2249 = vmatpush.bf16.msra.mxu0 %v2134
    %2250 = vmatpush.bf16.msra.mxu0 %v2128
    %2251 = vmatpush.bf16.msra.mxu0 %v2122
    %2252 = vmatmul.bf16.gmra.mxu0 %v1960
    %v2253 = vpop.f32.mrf.mxu0
    %v2254 = vadd.f32 %v1966, %v2253
    %v2255 = vpop.f32.mrf.mxu0
    %v2256 = vadd.f32 %v1966, %v2255
    %2257 = vdwg.mxu0
    %2258 = vmatpush.bf16.msra.mxu0 %v2165
    %2259 = vmatpush.bf16.msra.mxu0 %v2159
    %2260 = vmatpush.bf16.msra.mxu0 %v2153
    %2261 = vmatpush.bf16.msra.mxu0 %v2147
    %2262 = vmatpush.bf16.msra.mxu0 %v2141
    %2263 = vmatpush.bf16.msra.mxu0 %v2135
    %2264 = vmatpush.bf16.msra.mxu0 %v2129
    %2265 = vmatpush.bf16.msra.mxu0 %v2123
    %2266 = vmatmul.bf16.gmra.mxu0 %v1960
    %v2267 = vpop.f32.mrf.mxu0
    %v2268 = vadd.f32 %v1967, %v2267
    %v2269 = vpop.f32.mrf.mxu0
    %v2270 = vadd.f32 %v1967, %v2269
    %2271 = vdwg.mxu0
    %2272 = vmatpush.bf16.msra.mxu0 %v2166
    %2273 = vmatpush.bf16.msra.mxu0 %v2160
    %2274 = vmatpush.bf16.msra.mxu0 %v2154
    %2275 = vmatpush.bf16.msra.mxu0 %v2148
    %2276 = vmatpush.bf16.msra.mxu0 %v2142
    %2277 = vmatpush.bf16.msra.mxu0 %v2136
    %2278 = vmatpush.bf16.msra.mxu0 %v2130
    %2279 = vmatpush.bf16.msra.mxu0 %v2124
    %2280 = vmatmul.bf16.gmra.mxu0 %v1960
    %v2281 = vpop.f32.mrf.mxu0
    %v2282 = vadd.f32 %v1968, %v2281
    %v2283 = vpop.f32.mrf.mxu0
    %v2284 = vadd.f32 %v1968, %v2283
    %2285 = vdwg.mxu0
    %2286 = vmatpush.bf16.msra.mxu0 %v2167
    %2287 = vmatpush.bf16.msra.mxu0 %v2161
    %2288 = vmatpush.bf16.msra.mxu0 %v2155
    %2289 = vmatpush.bf16.msra.mxu0 %v2149
    %2290 = vmatpush.bf16.msra.mxu0 %v2143
    %2291 = vmatpush.bf16.msra.mxu0 %v2137
    %2292 = vmatpush.bf16.msra.mxu0 %v2131
    %2293 = vmatpush.bf16.msra.mxu0 %v2125
    %2294 = vmatmul.bf16.gmra.mxu0 %v1960
    %v2295 = vpop.f32.mrf.mxu0
    %v2296 = vadd.f32 %v1969, %v2295
    %v2297 = vpop.f32.mrf.mxu0
    %v2298 = vadd.f32 %v1969, %v2297
    %2299 = vdwg.mxu0
    %v2300 = vpack.c.bf16 %v2240, %v2226
    %v2301 = vpack.c.bf16 %v2268, %v2254
    %v2302 = vpack.c.bf16 %v2296, %v2282
    %v2303 = vpack.c.bf16 %v2242, %v2228
    %v2304 = vpack.c.bf16 %v2270, %v2256
    %v2305 = vpack.c.bf16 %v2298, %v2284
    %v2308 = vunpack.c.l.b16 %v2300
    %v2309 = vunpack.c.l.b16 %v2303
    %v2310 = vpack.c.b16 %v2309, %v2308
    %v2312 = vunpack.c.h.b16 %v2300
    %v2313 = vunpack.c.h.b16 %v2303
    %v2314 = vpack.c.b16 %v2313, %v2312
    %v2318 = vunpack.c.l.b16 %v2301
    %v2319 = vunpack.c.l.b16 %v2304
    %v2320 = vpack.c.b16 %v2319, %v2318
    %v2322 = vunpack.c.h.b16 %v2301
    %v2323 = vunpack.c.h.b16 %v2304
    %v2324 = vpack.c.b16 %v2323, %v2322
    %v2328 = vunpack.c.l.b16 %v2302
    %v2329 = vunpack.c.l.b16 %v2305
    %v2330 = vpack.c.b16 %v2329, %v2328
    %2332 = vmatpush.bf16.xpose.msra.mxu0 0
    %2333 = vmatpush.bf16.xpose.msra.mxu0 0
    %2334 = vmatpush.bf16.xpose.msra.mxu0 0
    %2335 = vmatpush.bf16.xpose.msra.mxu0 0
    %2336 = vmatpush.bf16.xpose.msra.mxu0 0
    %2337 = vmatpush.bf16.xpose.msra.mxu0 0
    %2338 = vmatpush.bf16.xpose.msra.mxu0 0
    %2339 = vmatpush.bf16.xpose.msra.mxu0 %v2330
    %2340 = vmatmul.bf16.gmra.mxu0 %v2310
    %v2341 = vpop.f32.mrf.mxu0
    %v2342 = vadd.f32 %v630, %v2341
    %v2343 = vpop.f32.mrf.mxu0
    %v2344 = vadd.f32 %v631, %v2343
    %2345 = vmatmul.bf16.gmra.mxu0 %v2314
    %v2346 = vpop.f32.mrf.mxu0
    %v2347 = vadd.f32 %v632, %v2346
    %v2348 = vpop.f32.mrf.mxu0
    %v2349 = vadd.f32 %v633, %v2348
    %2350 = vmatmul.bf16.gmra.mxu0 %v2320
    %v2351 = vpop.f32.mrf.mxu0
    %v2352 = vadd.f32 %v634, %v2351
    %v2353 = vpop.f32.mrf.mxu0
    %v2354 = vadd.f32 %v635, %v2353
    %2355 = vmatmul.bf16.gmra.mxu0 %v2324
    %v2356 = vpop.f32.mrf.mxu0
    %v2357 = vadd.f32 %v636, %v2356
    %v2358 = vpop.f32.mrf.mxu0
    %v2359 = vadd.f32 %v637, %v2358
    %2360 = vdwg.mxu0
    %v2361 = vsel %vm144, %v2342, -inf
    %2362 = vmax.xlane.f32.xlu0 %v2361
    %v2363 = vpop.xlane.xlu0 %2362
    %v2364 = vsel %vm144, %v2344, -inf
    %2365 = vmax.xlane.f32.xlu0 %v2364
    %v2366 = vpop.xlane.xlu0 %2365
    %v2367 = vsel %vm144, %v2347, -inf
    %2368 = vmax.xlane.f32.xlu0 %v2367
    %v2369 = vpop.xlane.xlu0 %2368
    %v2370 = vsel %vm144, %v2349, -inf
    %2371 = vmax.xlane.f32.xlu0 %v2370
    %v2372 = vpop.xlane.xlu0 %2371
    %v2373 = vsel %vm144, %v2352, -inf
    %2374 = vmax.xlane.f32.xlu0 %v2373
    %v2375 = vpop.xlane.xlu0 %2374
    %v2376 = vsel %vm144, %v2354, -inf
    %2377 = vmax.xlane.f32.xlu0 %v2376
    %v2378 = vpop.xlane.xlu0 %2377
    %v2379 = vsel %vm144, %v2357, -inf
    %2380 = vmax.xlane.f32.xlu0 %v2379
    %v2381 = vpop.xlane.xlu0 %2380
    %v2382 = vsel %vm144, %v2359, -inf
    %2383 = vmax.xlane.f32.xlu0 %v2382
    %v2384 = vpop.xlane.xlu0 %2383
    %v2385 = vsub.f32 %v2342, %v2363
    %v2386 = vsub.f32 %v2344, %v2366
    %v2387 = vsub.f32 %v2347, %v2369
    %v2388 = vsub.f32 %v2349, %v2372
    %v2389 = vsub.f32 %v2352, %v2375
    %v2390 = vsub.f32 %v2354, %v2378
    %v2391 = vsub.f32 %v2357, %v2381
    %v2392 = vsub.f32 %v2359, %v2384
    %v2393 = vmul.f32 %v2385, 1.442695
    %v2394 = vpow.pop %v2393
    %v2395 = vmul.f32 %v2386, 1.442695
    %v2396 = vpow.pop %v2395
    %v2397 = vmul.f32 %v2387, 1.442695
    %v2398 = vpow.pop %v2397
    %v2399 = vmul.f32 %v2388, 1.442695
    %v2400 = vpow.pop %v2399
    %v2401 = vmul.f32 %v2389, 1.442695
    %v2402 = vpow.pop %v2401
    %v2403 = vmul.f32 %v2390, 1.442695
    %v2404 = vpow.pop %v2403
    %v2405 = vmul.f32 %v2391, 1.442695
    %v2406 = vpow.pop %v2405
    %v2407 = vmul.f32 %v2392, 1.442695
    %v2408 = vpow.pop %v2407
    %v2409 = vsel %vm144, %v2394, 0.0
    %2410 = vadd.xlane.f32.xlu0 %v2409
    %v2411 = vpop.xlane.xlu0 %2410
    %v2412 = vsel %vm144, %v2396, 0.0
    %2413 = vadd.xlane.f32.xlu0 %v2412
    %v2414 = vpop.xlane.xlu0 %2413
    %v2415 = vsel %vm144, %v2398, 0.0
    %2416 = vadd.xlane.f32.xlu0 %v2415
    %v2417 = vpop.xlane.xlu0 %2416
    %v2418 = vsel %vm144, %v2400, 0.0
    %2419 = vadd.xlane.f32.xlu0 %v2418
    %v2420 = vpop.xlane.xlu0 %2419
    %v2421 = vsel %vm144, %v2402, 0.0
    %2422 = vadd.xlane.f32.xlu0 %v2421
    %v2423 = vpop.xlane.xlu0 %2422
    %v2424 = vsel %vm144, %v2404, 0.0
    %2425 = vadd.xlane.f32.xlu0 %v2424
    %v2426 = vpop.xlane.xlu0 %2425
    %v2427 = vsel %vm144, %v2406, 0.0
    %2428 = vadd.xlane.f32.xlu0 %v2427
    %v2429 = vpop.xlane.xlu0 %2428
    %v2430 = vsel %vm144, %v2408, 0.0
    %2431 = vadd.xlane.f32.xlu0 %v2430
    %v2432 = vpop.xlane.xlu0 %2431
    %v2433 = vrcp.pop %v2411
    %v2434 = vrcp.pop %v2414
    %v2435 = vrcp.pop %v2417
    %v2436 = vrcp.pop %v2420
    %v2437 = vrcp.pop %v2423
    %v2438 = vrcp.pop %v2426
    %v2439 = vrcp.pop %v2429
    %v2440 = vrcp.pop %v2432
    %v2441 = vmul.f32 %v2394, %v2433
    %v2442 = vmul.f32 %v2396, %v2434
    %v2443 = vmul.f32 %v2398, %v2435
    %v2444 = vmul.f32 %v2400, %v2436
    %v2445 = vmul.f32 %v2402, %v2437
    %v2446 = vmul.f32 %v2404, %v2438
    %v2447 = vmul.f32 %v2406, %v2439
    %v2448 = vmul.f32 %v2408, %v2440
    %v2449 = vpack.c.bf16 %v2442, %v2441
    %v2450 = vpack.c.bf16 %v2444, %v2443
    %v2451 = vpack.c.bf16 %v2446, %v2445
    %v2452 = vpack.c.bf16 %v2448, %v2447
    %v2453 = vunpack.c.h.b16 %v2302
    %v2454 = vunpack.c.h.b16 %v2305
    %v2455 = vpack.c.b16 %v2454, %v2453
    %v2458 = vsel %vm144, %v2449, 0
    %v2461 = vsel %vm144, %v2450, 0
    %v2464 = vsel %vm144, %v2451, 0
    %v2467 = vsel %vm144, %v2452, 0
    %2469 = vmatpush.bf16.msra.mxu0 0
    %2470 = vmatpush.bf16.msra.mxu0 0
    %2471 = vmatpush.bf16.msra.mxu0 0
    %2472 = vmatpush.bf16.msra.mxu0 0
    %2473 = vmatpush.bf16.msra.mxu0 0
    %2474 = vmatpush.bf16.msra.mxu0 0
    %2475 = vmatpush.bf16.msra.mxu0 0
    %2476 = vmatpush.bf16.msra.mxu0 %v2455
    %2477 = vmatmul.bf16.gmra.mxu0 %v2458
    %v2478 = vpop.f32.mrf.mxu0
    %v2479 = vadd.f32 0.0, %v2478
    %v2480 = vpop.f32.mrf.mxu0
    %v2481 = vadd.f32 0.0, %v2480
    %2482 = vmatmul.bf16.gmra.mxu0 %v2461
    %v2483 = vpop.f32.mrf.mxu0
    %v2484 = vadd.f32 0.0, %v2483
    %v2485 = vpop.f32.mrf.mxu0
    %v2486 = vadd.f32 0.0, %v2485
    %2487 = vmatmul.bf16.gmra.mxu0 %v2464
    %v2488 = vpop.f32.mrf.mxu0
    %v2489 = vadd.f32 0.0, %v2488
    %v2490 = vpop.f32.mrf.mxu0
    %v2491 = vadd.f32 0.0, %v2490
    %2492 = vmatmul.bf16.gmra.mxu0 %v2467
    %v2493 = vpop.f32.mrf.mxu0
    %v2494 = vadd.f32 0.0, %v2493
    %v2495 = vpop.f32.mrf.mxu0
    %v2496 = vadd.f32 0.0, %v2495
    %2497 = vdwg.mxu0
    %v2498 = vpack.c.bf16 %v2479, %v2479
    %v2499 = vpack.c.bf16 %v2481, %v2481
    %v2500 = vpack.c.bf16 %v2484, %v2484
    %v2501 = vpack.c.bf16 %v2486, %v2486
    %v2502 = vpack.c.bf16 %v2489, %v2489
    %v2503 = vpack.c.bf16 %v2491, %v2491
    %v2504 = vpack.c.bf16 %v2494, %v2494
    %v2505 = vpack.c.bf16 %v2496, %v2496
    %v2506 = vld [vmem:[#allocation6 + $0x18] sm:$0xf]
    %v2507 = vld [vmem:[#allocation6 + $0x50] sm:$0xf]
    %v2508 = vld [vmem:[#allocation6 + $0x88] sm:$0xf]
    %v2509 = vld [vmem:[#allocation6 + $0xc0] sm:$0xf]
    %v2510 = vld [vmem:[#allocation6 + $0xf8] sm:$0xf]
    %v2511 = vld [vmem:[#allocation6 + $0x130] sm:$0xf]
    %v2512 = vld [vmem:[#allocation6 + $0x168] sm:$0xf]
    %v2513 = vld [vmem:[#allocation6 + $0x1a0] sm:$0xf]
    %v2514 = vld [vmem:[#allocation6 + $0x1d8] sm:$0xf]
    %v2515 = vld [vmem:[#allocation6 + $0x210] sm:$0xf]
    %v2516 = vld [vmem:[#allocation6 + $0x248] sm:$0xf]
    %v2517 = vld [vmem:[#allocation6 + $0x280] sm:$0xf]
    %v2518 = vld [vmem:[#allocation6 + $0x2b8] sm:$0xf]
    %v2519 = vld [vmem:[#allocation6 + $0x2f0] sm:$0xf]
    %v2520 = vld [vmem:[#allocation6 + $0x328] sm:$0xf]
    %v2521 = vld [vmem:[#allocation6 + $0x360] sm:$0xf]
    %v2522 = vld [vmem:[#allocation6 + $0x1c] sm:$0xf]
    %v2523 = vld [vmem:[#allocation6 + $0x54] sm:$0xf]
    %v2524 = vld [vmem:[#allocation6 + $0x8c] sm:$0xf]
    %v2525 = vld [vmem:[#allocation6 + $0xc4] sm:$0xf]
    %v2526 = vld [vmem:[#allocation6 + $0xfc] sm:$0xf]
    %v2527 = vld [vmem:[#allocation6 + $0x134] sm:$0xf]
    %v2528 = vld [vmem:[#allocation6 + $0x16c] sm:$0xf]
    %v2529 = vld [vmem:[#allocation6 + $0x1a4] sm:$0xf]
    %v2530 = vld [vmem:[#allocation6 + $0x1dc] sm:$0xf]
    %v2531 = vld [vmem:[#allocation6 + $0x214] sm:$0xf]
    %v2532 = vld [vmem:[#allocation6 + $0x24c] sm:$0xf]
    %v2533 = vld [vmem:[#allocation6 + $0x284] sm:$0xf]
    %v2534 = vld [vmem:[#allocation6 + $0x2bc] sm:$0xf]
    %v2535 = vld [vmem:[#allocation6 + $0x2f4] sm:$0xf]
    %v2536 = vld [vmem:[#allocation6 + $0x32c] sm:$0xf]
    %v2537 = vld [vmem:[#allocation6 + $0x364] sm:$0xf]
    %v2540 = vunpack.c.l.b16 %v2500
    %v2541 = vunpack.c.l.b16 %v2501
    %v2542 = vpack.c.b16 %v2541, %v2540
    %v2560 = vunpack.c.l.b16 %v2522
    %v2561 = vunpack.c.l.b16 %v2523
    %v2562 = vunpack.c.l.b16 %v2524
    %v2563 = vunpack.c.l.b16 %v2525
    %v2564 = vunpack.c.l.b16 %v2526
    %v2565 = vunpack.c.l.b16 %v2527
    %v2566 = vunpack.c.l.b16 %v2528
    %v2567 = vunpack.c.l.b16 %v2529
    %v2568 = vunpack.c.l.b16 %v2530
    %v2569 = vunpack.c.l.b16 %v2531
    %v2570 = vunpack.c.l.b16 %v2532
    %v2571 = vunpack.c.l.b16 %v2533
    %v2572 = vunpack.c.l.b16 %v2534
    %v2573 = vunpack.c.l.b16 %v2535
    %v2574 = vunpack.c.l.b16 %v2536
    %v2575 = vunpack.c.l.b16 %v2537
    %v2576 = vpack.c.b16 %v2561, %v2560
    %v2577 = vpack.c.b16 %v2563, %v2562
    %v2578 = vpack.c.b16 %v2565, %v2564
    %v2579 = vpack.c.b16 %v2567, %v2566
    %v2580 = vpack.c.b16 %v2569, %v2568
    %v2581 = vpack.c.b16 %v2571, %v2570
    %v2582 = vpack.c.b16 %v2573, %v2572
    %v2583 = vpack.c.b16 %v2575, %v2574
    %2592 = vmatpush.bf16.msra.mxu0 %v2583
    %2593 = vmatpush.bf16.msra.mxu0 %v2582
    %2594 = vmatpush.bf16.msra.mxu0 %v2581
    %2595 = vmatpush.bf16.msra.mxu0 %v2580
    %2596 = vmatpush.bf16.msra.mxu0 %v2579
    %2597 = vmatpush.bf16.msra.mxu0 %v2578
    %2598 = vmatpush.bf16.msra.mxu0 %v2577
    %2599 = vmatpush.bf16.msra.mxu0 %v2576
    %2600 = vmatmul.bf16.gmra.mxu0 %v2542
    %v2601 = vpop.f32.mrf.mxu0
    %v2602 = vadd.f32 0.0, %v2601
    %v2603 = vpop.f32.mrf.mxu0
    %v2604 = vadd.f32 0.0, %v2603
    %2605 = vdwg.mxu0
    %v2608 = vunpack.c.l.b16 %v2498
    %v2609 = vunpack.c.l.b16 %v2499
    %v2610 = vpack.c.b16 %v2609, %v2608
    %v2628 = vunpack.c.l.b16 %v2506
    %v2629 = vunpack.c.l.b16 %v2507
    %v2630 = vunpack.c.l.b16 %v2508
    %v2631 = vunpack.c.l.b16 %v2509
    %v2632 = vunpack.c.l.b16 %v2510
    %v2633 = vunpack.c.l.b16 %v2511
    %v2634 = vunpack.c.l.b16 %v2512
    %v2635 = vunpack.c.l.b16 %v2513
    %v2636 = vunpack.c.l.b16 %v2514
    %v2637 = vunpack.c.l.b16 %v2515
    %v2638 = vunpack.c.l.b16 %v2516
    %v2639 = vunpack.c.l.b16 %v2517
    %v2640 = vunpack.c.l.b16 %v2518
    %v2641 = vunpack.c.l.b16 %v2519
    %v2642 = vunpack.c.l.b16 %v2520
    %v2643 = vunpack.c.l.b16 %v2521
    %v2644 = vpack.c.b16 %v2629, %v2628
    %v2645 = vpack.c.b16 %v2631, %v2630
    %v2646 = vpack.c.b16 %v2633, %v2632
    %v2647 = vpack.c.b16 %v2635, %v2634
    %v2648 = vpack.c.b16 %v2637, %v2636
    %v2649 = vpack.c.b16 %v2639, %v2638
    %v2650 = vpack.c.b16 %v2641, %v2640
    %v2651 = vpack.c.b16 %v2643, %v2642
    %2660 = vmatpush.bf16.msra.mxu0 %v2651
    %2661 = vmatpush.bf16.msra.mxu0 %v2650
    %2662 = vmatpush.bf16.msra.mxu0 %v2649
    %2663 = vmatpush.bf16.msra.mxu0 %v2648
    %2664 = vmatpush.bf16.msra.mxu0 %v2647
    %2665 = vmatpush.bf16.msra.mxu0 %v2646
    %2666 = vmatpush.bf16.msra.mxu0 %v2645
    %2667 = vmatpush.bf16.msra.mxu0 %v2644
    %2668 = vmatmul.bf16.gmra.mxu0 %v2610
    %v2669 = vpop.f32.mrf.mxu0
    %v2670 = vadd.f32 %v2602, %v2669
    %v2671 = vpop.f32.mrf.mxu0
    %v2672 = vadd.f32 %v2604, %v2671
    %2673 = vdwg.mxu0
    %v2674 = vld [vmem:[#allocation6 + $0x20] sm:$0xf]
    %v2675 = vld [vmem:[#allocation6 + $0x58] sm:$0xf]
    %v2676 = vld [vmem:[#allocation6 + $0x90] sm:$0xf]
    %v2677 = vld [vmem:[#allocation6 + $0xc8] sm:$0xf]
    %v2678 = vld [vmem:[#allocation6 + $0x100] sm:$0xf]
    %v2679 = vld [vmem:[#allocation6 + $0x138] sm:$0xf]
    %v2680 = vld [vmem:[#allocation6 + $0x170] sm:$0xf]
    %v2681 = vld [vmem:[#allocation6 + $0x1a8] sm:$0xf]
    %v2682 = vld [vmem:[#allocation6 + $0x1e0] sm:$0xf]
    %v2683 = vld [vmem:[#allocation6 + $0x218] sm:$0xf]
    %v2684 = vld [vmem:[#allocation6 + $0x250] sm:$0xf]
    %v2685 = vld [vmem:[#allocation6 + $0x288] sm:$0xf]
    %v2686 = vld [vmem:[#allocation6 + $0x2c0] sm:$0xf]
    %v2687 = vld [vmem:[#allocation6 + $0x2f8] sm:$0xf]
    %v2688 = vld [vmem:[#allocation6 + $0x330] sm:$0xf]
    %v2689 = vld [vmem:[#allocation6 + $0x368] sm:$0xf]
    %v2692 = vunpack.c.l.b16 %v2502
    %v2693 = vunpack.c.l.b16 %v2503
    %v2694 = vpack.c.b16 %v2693, %v2692
    %v2712 = vunpack.c.l.b16 %v2674
    %v2713 = vunpack.c.l.b16 %v2675
    %v2714 = vunpack.c.l.b16 %v2676
    %v2715 = vunpack.c.l.b16 %v2677
    %v2716 = vunpack.c.l.b16 %v2678
    %v2717 = vunpack.c.l.b16 %v2679
    %v2718 = vunpack.c.l.b16 %v2680
    %v2719 = vunpack.c.l.b16 %v2681
    %v2720 = vunpack.c.l.b16 %v2682
    %v2721 = vunpack.c.l.b16 %v2683
    %v2722 = vunpack.c.l.b16 %v2684
    %v2723 = vunpack.c.l.b16 %v2685
    %v2724 = vunpack.c.l.b16 %v2686
    %v2725 = vunpack.c.l.b16 %v2687
    %v2726 = vunpack.c.l.b16 %v2688
    %v2727 = vunpack.c.l.b16 %v2689
    %v2728 = vpack.c.b16 %v2713, %v2712
    %v2729 = vpack.c.b16 %v2715, %v2714
    %v2730 = vpack.c.b16 %v2717, %v2716
    %v2731 = vpack.c.b16 %v2719, %v2718
    %v2732 = vpack.c.b16 %v2721, %v2720
    %v2733 = vpack.c.b16 %v2723, %v2722
    %v2734 = vpack.c.b16 %v2725, %v2724
    %v2735 = vpack.c.b16 %v2727, %v2726
    %2744 = vmatpush.bf16.msra.mxu0 %v2735
    %2745 = vmatpush.bf16.msra.mxu0 %v2734
    %2746 = vmatpush.bf16.msra.mxu0 %v2733
    %2747 = vmatpush.bf16.msra.mxu0 %v2732
    %2748 = vmatpush.bf16.msra.mxu0 %v2731
    %2749 = vmatpush.bf16.msra.mxu0 %v2730
    %2750 = vmatpush.bf16.msra.mxu0 %v2729
    %2751 = vmatpush.bf16.msra.mxu0 %v2728
    %2752 = vmatmul.bf16.gmra.mxu0 %v2694
    %v2753 = vpop.f32.mrf.mxu0
    %v2754 = vadd.f32 0.0, %v2753
    %v2755 = vpop.f32.mrf.mxu0
    %v2756 = vadd.f32 0.0, %v2755
    %2757 = vdwg.mxu0
    %v2758 = vadd.f32 %v2670, %v2754
    %v2759 = vadd.f32 %v2672, %v2756
    %v2760 = vld [vmem:[#allocation6 + $0x24] sm:$0xf]
    %v2761 = vld [vmem:[#allocation6 + $0x5c] sm:$0xf]
    %v2762 = vld [vmem:[#allocation6 + $0x94] sm:$0xf]
    %v2763 = vld [vmem:[#allocation6 + $0xcc] sm:$0xf]
    %v2764 = vld [vmem:[#allocation6 + $0x104] sm:$0xf]
    %v2765 = vld [vmem:[#allocation6 + $0x13c] sm:$0xf]
    %v2766 = vld [vmem:[#allocation6 + $0x174] sm:$0xf]
    %v2767 = vld [vmem:[#allocation6 + $0x1ac] sm:$0xf]
    %v2768 = vld [vmem:[#allocation6 + $0x1e4] sm:$0xf]
    %v2769 = vld [vmem:[#allocation6 + $0x21c] sm:$0xf]
    %v2770 = vld [vmem:[#allocation6 + $0x254] sm:$0xf]
    %v2771 = vld [vmem:[#allocation6 + $0x28c] sm:$0xf]
    %v2772 = vld [vmem:[#allocation6 + $0x2c4] sm:$0xf]
    %v2773 = vld [vmem:[#allocation6 + $0x2fc] sm:$0xf]
    %v2774 = vld [vmem:[#allocation6 + $0x334] sm:$0xf]
    %v2775 = vld [vmem:[#allocation6 + $0x36c] sm:$0xf]
    %v2778 = vunpack.c.l.b16 %v2504
    %v2779 = vunpack.c.l.b16 %v2505
    %v2780 = vpack.c.b16 %v2779, %v2778
    %v2798 = vunpack.c.l.b16 %v2760
    %v2799 = vunpack.c.l.b16 %v2761
    %v2800 = vunpack.c.l.b16 %v2762
    %v2801 = vunpack.c.l.b16 %v2763
    %v2802 = vunpack.c.l.b16 %v2764
    %v2803 = vunpack.c.l.b16 %v2765
    %v2804 = vunpack.c.l.b16 %v2766
    %v2805 = vunpack.c.l.b16 %v2767
    %v2806 = vunpack.c.l.b16 %v2768
    %v2807 = vunpack.c.l.b16 %v2769
    %v2808 = vunpack.c.l.b16 %v2770
    %v2809 = vunpack.c.l.b16 %v2771
    %v2810 = vunpack.c.l.b16 %v2772
    %v2811 = vunpack.c.l.b16 %v2773
    %v2812 = vunpack.c.l.b16 %v2774
    %v2813 = vunpack.c.l.b16 %v2775
    %v2814 = vpack.c.b16 %v2799, %v2798
    %v2815 = vpack.c.b16 %v2801, %v2800
    %v2816 = vpack.c.b16 %v2803, %v2802
    %v2817 = vpack.c.b16 %v2805, %v2804
    %v2818 = vpack.c.b16 %v2807, %v2806
    %v2819 = vpack.c.b16 %v2809, %v2808
    %v2820 = vpack.c.b16 %v2811, %v2810
    %v2821 = vpack.c.b16 %v2813, %v2812
    %2830 = vmatpush.bf16.msra.mxu0 %v2821
    %2831 = vmatpush.bf16.msra.mxu0 %v2820
    %2832 = vmatpush.bf16.msra.mxu0 %v2819
    %2833 = vmatpush.bf16.msra.mxu0 %v2818
    %2834 = vmatpush.bf16.msra.mxu0 %v2817
    %2835 = vmatpush.bf16.msra.mxu0 %v2816
    %2836 = vmatpush.bf16.msra.mxu0 %v2815
    %2837 = vmatpush.bf16.msra.mxu0 %v2814
    %2838 = vmatmul.bf16.gmra.mxu0 %v2780
    %v2839 = vpop.f32.mrf.mxu0
    %v2840 = vadd.f32 0.0, %v2839
    %v2841 = vpop.f32.mrf.mxu0
    %v2842 = vadd.f32 0.0, %v2841
    %2843 = vdwg.mxu0
    %v2844 = vadd.f32 %v2758, %v2840
    %v2845 = vadd.f32 %v2759, %v2842
    %v2846 = vld [vmem:[%s2 + $0x18] sm:$0x1]
    %v2847 = vperm.slane %v2846, 0
    %v2848 = vadd.f32 %v2844, %v2847
    %v2849 = vadd.f32 %v2845, %v2847
    %v2850 = vadd.f32 %v1910, %v2848
    %v2851 = vadd.f32 %v1911, %v2849
    %v2852 = vld [vmem:[%s2 + $0x19] sm:$0x1]
    %v2853 = vld [vmem:[%s2 + $0x1a] sm:$0x1]
    %2854 = vadd.xlane.f32.xlu0 %v2850
    %v2855 = vpop.xlane.xlu0 %2854
    %2856 = vadd.xlane.f32.xlu0 %v2851
    %v2857 = vpop.xlane.xlu0 %2856
    %v2858 = vmul.f32 %v2855, %v174
    %v2859 = vmul.f32 %v2857, %v174
    %v2860 = vsub.f32 %v2850, %v2858
    %v2861 = vsub.f32 %v2851, %v2859
    %v2862 = vmul.f32 %v2860, %v2860
    %v2863 = vmul.f32 %v2861, %v2861
    %2864 = vadd.xlane.f32.xlu0 %v2862
    %v2865 = vpop.xlane.xlu0 %2864
    %2866 = vadd.xlane.f32.xlu0 %v2863
    %v2867 = vpop.xlane.xlu0 %2866
    %v2868 = vmul.f32 %v2865, %v174
    %v2869 = vmul.f32 %v2867, %v174
    %v2870 = vadd.f32 %v2868, 1e-05
    %v2871 = vadd.f32 %v2869, 1e-05
    %v2872 = vrsqrt.pop %v2870
    %v2873 = vmul.f32 %v2872, %v2870
    %v2874 = vmul.f32 %v2873, %v2872
    %v2875 = vmul.f32 0.5, %v2874
    %v2876 = vsub.f32 1.5, %v2875
    %v2877 = vmul.f32 %v2872, %v2876
    %vm2878 = vweird.f32 %v2870
    %vm2879 = vweird.f32 %v2872
    %vm2880 = vmor %vm2878, %vm2879
    %v2881 = vsel %vm2880, %v2872, %v2877
    %v2882 = vrsqrt.pop %v2871
    %v2883 = vmul.f32 %v2882, %v2871
    %v2884 = vmul.f32 %v2883, %v2882
    %v2885 = vmul.f32 0.5, %v2884
    %v2886 = vsub.f32 1.5, %v2885
    %v2887 = vmul.f32 %v2882, %v2886
    %vm2888 = vweird.f32 %v2871
    %vm2889 = vweird.f32 %v2882
    %vm2890 = vmor %vm2888, %vm2889
    %v2891 = vsel %vm2890, %v2882, %v2887
    %v2892 = vmul.f32 %v2860, %v2881
    %v2893 = vmul.f32 %v2861, %v2891
    %v2894 = vperm.slane %v2852, 0
    %v2895 = vmul.f32 %v2892, %v2894
    %v2896 = vmul.f32 %v2893, %v2894
    %v2897 = vperm.slane %v2853, 0
    %v2898 = vadd.f32 %v2895, %v2897
    %v2899 = vadd.f32 %v2896, %v2897
    %v2900 = vld [vmem:[#allocation6 + $0x28] sm:$0xff]
    %v2901 = vld [vmem:[#allocation6 + $0x30] sm:$0xff]
    %v2902 = vld [vmem:[#allocation6 + $0x60] sm:$0xff]
    %v2903 = vld [vmem:[#allocation6 + $0x68] sm:$0xff]
    %v2904 = vld [vmem:[#allocation6 + $0x98] sm:$0xff]
    %v2905 = vld [vmem:[#allocation6 + $0xa0] sm:$0xff]
    %v2906 = vld [vmem:[#allocation6 + $0xd0] sm:$0xff]
    %v2907 = vld [vmem:[#allocation6 + $0xd8] sm:$0xff]
    %v2908 = vld [vmem:[#allocation6 + $0x108] sm:$0xff]
    %v2909 = vld [vmem:[#allocation6 + $0x110] sm:$0xff]
    %v2910 = vld [vmem:[#allocation6 + $0x140] sm:$0xff]
    %v2911 = vld [vmem:[#allocation6 + $0x148] sm:$0xff]
    %v2912 = vld [vmem:[#allocation6 + $0x178] sm:$0xff]
    %v2913 = vld [vmem:[#allocation6 + $0x180] sm:$0xff]
    %v2914 = vld [vmem:[#allocation6 + $0x1b0] sm:$0xff]
    %v2915 = vld [vmem:[#allocation6 + $0x1b8] sm:$0xff]
    %v2916 = vld [vmem:[#allocation6 + $0x1e8] sm:$0xff]
    %v2917 = vld [vmem:[#allocation6 + $0x1f0] sm:$0xff]
    %v2918 = vld [vmem:[#allocation6 + $0x220] sm:$0xff]
    %v2919 = vld [vmem:[#allocation6 + $0x228] sm:$0xff]
    %v2920 = vld [vmem:[#allocation6 + $0x258] sm:$0xff]
    %v2921 = vld [vmem:[#allocation6 + $0x260] sm:$0xff]
    %v2922 = vld [vmem:[#allocation6 + $0x290] sm:$0xff]
    %v2923 = vld [vmem:[#allocation6 + $0x298] sm:$0xff]
    %v2924 = vld [vmem:[#allocation6 + $0x2c8] sm:$0xff]
    %v2925 = vld [vmem:[#allocation6 + $0x2d0] sm:$0xff]
    %v2926 = vld [vmem:[#allocation6 + $0x300] sm:$0xff]
    %v2927 = vld [vmem:[#allocation6 + $0x308] sm:$0xff]
    %v2928 = vld [vmem:[#allocation6 + $0x338] sm:$0xff]
    %v2929 = vld [vmem:[#allocation6 + $0x340] sm:$0xff]
    %v2930 = vld [vmem:[#allocation6 + $0x370] sm:$0xff]
    %v2931 = vld [vmem:[#allocation6 + $0x378] sm:$0xff]
    %v2932 = vpack.c.bf16 %v2899, %v2898
    %s2933 = scalar_lea.vmem %s3, 13
    %v2934 = vld [vmem:[%s2933] ss:$2 sm:$0xf]
    %v2936 = vperm.slane %v2934, 0
    %v2937 = vperm.slane %v2934, 1
    %v2938 = vperm.slane %v2934, 2
    %v2939 = vperm.slane %v2934, 3
    %v2976 = vunpack.c.l.b16 %v2900
    %v2977 = vunpack.c.h.b16 %v2900
    %v2978 = vunpack.c.l.b16 %v2901
    %v2979 = vunpack.c.h.b16 %v2901
    %v2980 = vunpack.c.l.b16 %v2902
    %v2981 = vunpack.c.h.b16 %v2902
    %v2982 = vunpack.c.l.b16 %v2903
    %v2983 = vunpack.c.h.b16 %v2903
    %v2984 = vunpack.c.l.b16 %v2904
    %v2985 = vunpack.c.h.b16 %v2904
    %v2986 = vunpack.c.l.b16 %v2905
    %v2987 = vunpack.c.h.b16 %v2905
    %v2988 = vunpack.c.l.b16 %v2906
    %v2989 = vunpack.c.h.b16 %v2906
    %v2990 = vunpack.c.l.b16 %v2907
    %v2991 = vunpack.c.h.b16 %v2907
    %v2992 = vunpack.c.l.b16 %v2908
    %v2993 = vunpack.c.h.b16 %v2908
    %v2994 = vunpack.c.l.b16 %v2909
    %v2995 = vunpack.c.h.b16 %v2909
    %v2996 = vunpack.c.l.b16 %v2910
    %v2997 = vunpack.c.h.b16 %v2910
    %v2998 = vunpack.c.l.b16 %v2911
    %v2999 = vunpack.c.h.b16 %v2911
    %v3000 = vunpack.c.l.b16 %v2912
    %v3001 = vunpack.c.h.b16 %v2912
    %v3002 = vunpack.c.l.b16 %v2913
    %v3003 = vunpack.c.h.b16 %v2913
    %v3004 = vunpack.c.l.b16 %v2914
    %v3005 = vunpack.c.h.b16 %v2914
    %v3006 = vunpack.c.l.b16 %v2915
    %v3007 = vunpack.c.h.b16 %v2915
    %v3008 = vunpack.c.l.b16 %v2916
    %v3009 = vunpack.c.h.b16 %v2916
    %v3010 = vunpack.c.l.b16 %v2917
    %v3011 = vunpack.c.h.b16 %v2917
    %v3012 = vunpack.c.l.b16 %v2918
    %v3013 = vunpack.c.h.b16 %v2918
    %v3014 = vunpack.c.l.b16 %v2919
    %v3015 = vunpack.c.h.b16 %v2919
    %v3016 = vunpack.c.l.b16 %v2920
    %v3017 = vunpack.c.h.b16 %v2920
    %v3018 = vunpack.c.l.b16 %v2921
    %v3019 = vunpack.c.h.b16 %v2921
    %v3020 = vunpack.c.l.b16 %v2922
    %v3021 = vunpack.c.h.b16 %v2922
    %v3022 = vunpack.c.l.b16 %v2923
    %v3023 = vunpack.c.h.b16 %v2923
    %v3024 = vunpack.c.l.b16 %v2924
    %v3025 = vunpack.c.h.b16 %v2924
    %v3026 = vunpack.c.l.b16 %v2925
    %v3027 = vunpack.c.h.b16 %v2925
    %v3028 = vunpack.c.l.b16 %v2926
    %v3029 = vunpack.c.h.b16 %v2926
    %v3030 = vunpack.c.l.b16 %v2927
    %v3031 = vunpack.c.h.b16 %v2927
    %v3032 = vunpack.c.l.b16 %v2928
    %v3033 = vunpack.c.h.b16 %v2928
    %v3034 = vunpack.c.l.b16 %v2929
    %v3035 = vunpack.c.h.b16 %v2929
    %v3036 = vunpack.c.l.b16 %v2930
    %v3037 = vunpack.c.h.b16 %v2930
    %v3038 = vunpack.c.l.b16 %v2931
    %v3039 = vunpack.c.h.b16 %v2931
    %v3040 = vpack.c.b16 %v2980, %v2976
    %v3041 = vpack.c.b16 %v2981, %v2977
    %v3042 = vpack.c.b16 %v2982, %v2978
    %v3043 = vpack.c.b16 %v2983, %v2979
    %v3044 = vpack.c.b16 %v2988, %v2984
    %v3045 = vpack.c.b16 %v2989, %v2985
    %v3046 = vpack.c.b16 %v2990, %v2986
    %v3047 = vpack.c.b16 %v2991, %v2987
    %v3048 = vpack.c.b16 %v2996, %v2992
    %v3049 = vpack.c.b16 %v2997, %v2993
    %v3050 = vpack.c.b16 %v2998, %v2994
    %v3051 = vpack.c.b16 %v2999, %v2995
    %v3052 = vpack.c.b16 %v3004, %v3000
    %v3053 = vpack.c.b16 %v3005, %v3001
    %v3054 = vpack.c.b16 %v3006, %v3002
    %v3055 = vpack.c.b16 %v3007, %v3003
    %v3056 = vpack.c.b16 %v3012, %v3008
    %v3057 = vpack.c.b16 %v3013, %v3009
    %v3058 = vpack.c.b16 %v3014, %v3010
    %v3059 = vpack.c.b16 %v3015, %v3011
    %v3060 = vpack.c.b16 %v3020, %v3016
    %v3061 = vpack.c.b16 %v3021, %v3017
    %v3062 = vpack.c.b16 %v3022, %v3018
    %v3063 = vpack.c.b16 %v3023, %v3019
    %v3064 = vpack.c.b16 %v3028, %v3024
    %v3065 = vpack.c.b16 %v3029, %v3025
    %v3066 = vpack.c.b16 %v3030, %v3026
    %v3067 = vpack.c.b16 %v3031, %v3027
    %v3068 = vpack.c.b16 %v3036, %v3032
    %v3069 = vpack.c.b16 %v3037, %v3033
    %v3070 = vpack.c.b16 %v3038, %v3034
    %v3071 = vpack.c.b16 %v3039, %v3035
    %3104 = vmatpush.bf16.msra.mxu0 %v3068
    %3105 = vmatpush.bf16.msra.mxu0 %v3064
    %3106 = vmatpush.bf16.msra.mxu0 %v3060
    %3107 = vmatpush.bf16.msra.mxu0 %v3056
    %3108 = vmatpush.bf16.msra.mxu0 %v3052
    %3109 = vmatpush.bf16.msra.mxu0 %v3048
    %3110 = vmatpush.bf16.msra.mxu0 %v3044
    %3111 = vmatpush.bf16.msra.mxu0 %v3040
    %3112 = vmatmul.bf16.gmra.mxu0 %v2932
    %v3113 = vpop.f32.mrf.mxu0
    %v3114 = vadd.f32 %v2936, %v3113
    %v3115 = vpop.f32.mrf.mxu0
    %v3116 = vadd.f32 %v2936, %v3115
    %3117 = vdwg.mxu0
    %3118 = vmatpush.bf16.msra.mxu0 %v3069
    %3119 = vmatpush.bf16.msra.mxu0 %v3065
    %3120 = vmatpush.bf16.msra.mxu0 %v3061
    %3121 = vmatpush.bf16.msra.mxu0 %v3057
    %3122 = vmatpush.bf16.msra.mxu0 %v3053
    %3123 = vmatpush.bf16.msra.mxu0 %v3049
    %3124 = vmatpush.bf16.msra.mxu0 %v3045
    %3125 = vmatpush.bf16.msra.mxu0 %v3041
    %3126 = vmatmul.bf16.gmra.mxu0 %v2932
    %v3127 = vpop.f32.mrf.mxu0
    %v3128 = vadd.f32 %v2937, %v3127
    %v3129 = vpop.f32.mrf.mxu0
    %v3130 = vadd.f32 %v2937, %v3129
    %3131 = vdwg.mxu0
    %3132 = vmatpush.bf16.msra.mxu0 %v3070
    %3133 = vmatpush.bf16.msra.mxu0 %v3066
    %3134 = vmatpush.bf16.msra.mxu0 %v3062
    %3135 = vmatpush.bf16.msra.mxu0 %v3058
    %3136 = vmatpush.bf16.msra.mxu0 %v3054
    %3137 = vmatpush.bf16.msra.mxu0 %v3050
    %3138 = vmatpush.bf16.msra.mxu0 %v3046
    %3139 = vmatpush.bf16.msra.mxu0 %v3042
    %3140 = vmatmul.bf16.gmra.mxu0 %v2932
    %v3141 = vpop.f32.mrf.mxu0
    %v3142 = vadd.f32 %v2938, %v3141
    %v3143 = vpop.f32.mrf.mxu0
    %v3144 = vadd.f32 %v2938, %v3143
    %3145 = vdwg.mxu0
    %3146 = vmatpush.bf16.msra.mxu0 %v3071
    %3147 = vmatpush.bf16.msra.mxu0 %v3067
    %3148 = vmatpush.bf16.msra.mxu0 %v3063
    %3149 = vmatpush.bf16.msra.mxu0 %v3059
    %3150 = vmatpush.bf16.msra.mxu0 %v3055
    %3151 = vmatpush.bf16.msra.mxu0 %v3051
    %3152 = vmatpush.bf16.msra.mxu0 %v3047
    %3153 = vmatpush.bf16.msra.mxu0 %v3043
    %3154 = vmatmul.bf16.gmra.mxu0 %v2932
    %v3155 = vpop.f32.mrf.mxu0
    %v3156 = vadd.f32 %v2939, %v3155
    %v3157 = vpop.f32.mrf.mxu0
    %v3158 = vadd.f32 %v2939, %v3157
    %3159 = vdwg.mxu0
    %v3160 = vmul.f32 %v3114, 0.5
    %v3161 = vmul.f32 %v3128, 0.5
    %v3162 = vmul.f32 %v3142, 0.5
    %v3163 = vmul.f32 %v3156, 0.5
    %v3164 = vmul.f32 %v3116, 0.5
    %v3165 = vmul.f32 %v3130, 0.5
    %v3166 = vmul.f32 %v3144, 0.5
    %v3167 = vmul.f32 %v3158, 0.5
    %v3168 = vmul.f32 %v3114, 0.044715
    %v3169 = vmul.f32 %v3128, 0.044715
    %v3170 = vmul.f32 %v3142, 0.044715
    %v3171 = vmul.f32 %v3156, 0.044715
    %v3172 = vmul.f32 %v3116, 0.044715
    %v3173 = vmul.f32 %v3130, 0.044715
    %v3174 = vmul.f32 %v3144, 0.044715
    %v3175 = vmul.f32 %v3158, 0.044715
    %v3176 = vmul.f32 %v3168, %v3114
    %v3177 = vmul.f32 %v3169, %v3128
    %v3178 = vmul.f32 %v3170, %v3142
    %v3179 = vmul.f32 %v3171, %v3156
    %v3180 = vmul.f32 %v3172, %v3116
    %v3181 = vmul.f32 %v3173, %v3130
    %v3182 = vmul.f32 %v3174, %v3144
    %v3183 = vmul.f32 %v3175, %v3158
    %v3184 = vmul.f32 %v3176, %v3114
    %v3185 = vmul.f32 %v3177, %v3128
    %v3186 = vmul.f32 %v3178, %v3142
    %v3187 = vmul.f32 %v3179, %v3156
    %v3188 = vmul.f32 %v3180, %v3116
    %v3189 = vmul.f32 %v3181, %v3130
    %v3190 = vmul.f32 %v3182, %v3144
    %v3191 = vmul.f32 %v3183, %v3158
    %v3192 = vadd.f32 %v3114, %v3184
    %v3193 = vadd.f32 %v3128, %v3185
    %v3194 = vadd.f32 %v3142, %v3186
    %v3195 = vadd.f32 %v3156, %v3187
    %v3196 = vadd.f32 %v3116, %v3188
    %v3197 = vadd.f32 %v3130, %v3189
    %v3198 = vadd.f32 %v3144, %v3190
    %v3199 = vadd.f32 %v3158, %v3191
    %v3200 = vmul.f32 %v3192, 0.7978846
    %v3201 = vmul.f32 %v3193, 0.7978846
    %v3202 = vmul.f32 %v3194, 0.7978846
    %v3203 = vmul.f32 %v3195, 0.7978846
    %v3204 = vmul.f32 %v3196, 0.7978846
    %v3205 = vmul.f32 %v3197, 0.7978846
    %v3206 = vmul.f32 %v3198, 0.7978846
    %v3207 = vmul.f32 %v3199, 0.7978846
    %v3208 = vtanh.pop %v3200
    %v3209 = vtanh.pop %v3201
    %v3210 = vtanh.pop %v3202
    %v3211 = vtanh.pop %v3203
    %v3212 = vtanh.pop %v3204
    %v3213 = vtanh.pop %v3205
    %v3214 = vtanh.pop %v3206
    %v3215 = vtanh.pop %v3207
    %v3216 = vadd.f32 %v3208, 1.0
    %v3217 = vadd.f32 %v3209, 1.0
    %v3218 = vadd.f32 %v3210, 1.0
    %v3219 = vadd.f32 %v3211, 1.0
    %v3220 = vadd.f32 %v3212, 1.0
    %v3221 = vadd.f32 %v3213, 1.0
    %v3222 = vadd.f32 %v3214, 1.0
    %v3223 = vadd.f32 %v3215, 1.0
    %v3224 = vmul.f32 %v3160, %v3216
    %v3225 = vmul.f32 %v3161, %v3217
    %v3226 = vmul.f32 %v3162, %v3218
    %v3227 = vmul.f32 %v3163, %v3219
    %v3228 = vmul.f32 %v3164, %v3220
    %v3229 = vmul.f32 %v3165, %v3221
    %v3230 = vmul.f32 %v3166, %v3222
    %v3231 = vmul.f32 %v3167, %v3223
    %v3232 = vld [vmem:[#allocation9] sm:$0xf]
    %v3233 = vld [vmem:[#allocation9 + $0x4] sm:$0xf]
    %v3234 = vld [vmem:[#allocation9 + $0x8] sm:$0xf]
    %v3235 = vld [vmem:[#allocation9 + $0xc] sm:$0xf]
    %v3236 = vld [vmem:[#allocation9 + $0x10] sm:$0xf]
    %v3237 = vld [vmem:[#allocation9 + $0x14] sm:$0xf]
    %v3238 = vld [vmem:[#allocation9 + $0x18] sm:$0xf]
    %v3239 = vld [vmem:[#allocation9 + $0x1c] sm:$0xf]
    %v3240 = vld [vmem:[#allocation9 + $0x20] sm:$0xf]
    %v3241 = vld [vmem:[#allocation9 + $0x24] sm:$0xf]
    %v3242 = vld [vmem:[#allocation9 + $0x28] sm:$0xf]
    %v3243 = vld [vmem:[#allocation9 + $0x2c] sm:$0xf]
    %v3244 = vld [vmem:[#allocation9 + $0x30] sm:$0xf]
    %v3245 = vld [vmem:[#allocation9 + $0x34] sm:$0xf]
    %v3246 = vld [vmem:[#allocation9 + $0x38] sm:$0xf]
    %v3247 = vld [vmem:[#allocation9 + $0x3c] sm:$0xf]
    %v3248 = vld [vmem:[#allocation9 + $0x40] sm:$0xf]
    %v3249 = vld [vmem:[#allocation9 + $0x44] sm:$0xf]
    %v3250 = vld [vmem:[#allocation9 + $0x48] sm:$0xf]
    %v3251 = vld [vmem:[#allocation9 + $0x4c] sm:$0xf]
    %v3252 = vld [vmem:[#allocation9 + $0x50] sm:$0xf]
    %v3253 = vld [vmem:[#allocation9 + $0x54] sm:$0xf]
    %v3254 = vld [vmem:[#allocation9 + $0x58] sm:$0xf]
    %v3255 = vld [vmem:[#allocation9 + $0x5c] sm:$0xf]
    %v3256 = vld [vmem:[#allocation9 + $0x60] sm:$0xf]
    %v3257 = vld [vmem:[#allocation9 + $0x64] sm:$0xf]
    %v3258 = vld [vmem:[#allocation9 + $0x68] sm:$0xf]
    %v3259 = vld [vmem:[#allocation9 + $0x6c] sm:$0xf]
    %v3260 = vld [vmem:[#allocation9 + $0x70] sm:$0xf]
    %v3261 = vld [vmem:[#allocation9 + $0x74] sm:$0xf]
    %v3262 = vld [vmem:[#allocation9 + $0x78] sm:$0xf]
    %v3263 = vld [vmem:[#allocation9 + $0x7c] sm:$0xf]
    %v3264 = vld [vmem:[#allocation9 + $0x80] sm:$0xf]
    %v3265 = vld [vmem:[#allocation9 + $0x84] sm:$0xf]
    %v3266 = vld [vmem:[#allocation9 + $0x88] sm:$0xf]
    %v3267 = vld [vmem:[#allocation9 + $0x8c] sm:$0xf]
    %v3268 = vld [vmem:[#allocation9 + $0x90] sm:$0xf]
    %v3269 = vld [vmem:[#allocation9 + $0x94] sm:$0xf]
    %v3270 = vld [vmem:[#allocation9 + $0x98] sm:$0xf]
    %v3271 = vld [vmem:[#allocation9 + $0x9c] sm:$0xf]
    %v3272 = vld [vmem:[#allocation9 + $0xa0] sm:$0xf]
    %v3273 = vld [vmem:[#allocation9 + $0xa4] sm:$0xf]
    %v3274 = vld [vmem:[#allocation9 + $0xa8] sm:$0xf]
    %v3275 = vld [vmem:[#allocation9 + $0xac] sm:$0xf]
    %v3276 = vld [vmem:[#allocation9 + $0xb0] sm:$0xf]
    %v3277 = vld [vmem:[#allocation9 + $0xb4] sm:$0xf]
    %v3278 = vld [vmem:[#allocation9 + $0xb8] sm:$0xf]
    %v3279 = vld [vmem:[#allocation9 + $0xbc] sm:$0xf]
    %v3280 = vld [vmem:[#allocation9 + $0xc0] sm:$0xf]
    %v3281 = vld [vmem:[#allocation9 + $0xc4] sm:$0xf]
    %v3282 = vld [vmem:[#allocation9 + $0xc8] sm:$0xf]
    %v3283 = vld [vmem:[#allocation9 + $0xcc] sm:$0xf]
    %v3284 = vld [vmem:[#allocation9 + $0xd0] sm:$0xf]
    %v3285 = vld [vmem:[#allocation9 + $0xd4] sm:$0xf]
    %v3286 = vld [vmem:[#allocation9 + $0xd8] sm:$0xf]
    %v3287 = vld [vmem:[#allocation9 + $0xdc] sm:$0xf]
    %v3288 = vld [vmem:[#allocation9 + $0xe0] sm:$0xf]
    %v3289 = vld [vmem:[#allocation9 + $0xe4] sm:$0xf]
    %v3290 = vld [vmem:[#allocation9 + $0xe8] sm:$0xf]
    %v3291 = vld [vmem:[#allocation9 + $0xec] sm:$0xf]
    %v3292 = vld [vmem:[#allocation9 + $0xf0] sm:$0xf]
    %v3293 = vld [vmem:[#allocation9 + $0xf4] sm:$0xf]
    %v3294 = vld [vmem:[#allocation9 + $0xf8] sm:$0xf]
    %v3295 = vld [vmem:[#allocation9 + $0xfc] sm:$0xf]
    %v3296 = vpack.c.bf16 %v3228, %v3224
    %v3297 = vpack.c.bf16 %v3229, %v3225
    %v3298 = vpack.c.bf16 %v3230, %v3226
    %v3299 = vpack.c.bf16 %v3231, %v3227
    %v3300 = vld [vmem:[%s2 + $0x1d] sm:$0x1]
    %v3301 = vperm.slane %v3300, 0
    %v3366 = vunpack.c.l.b16 %v3232
    %v3367 = vunpack.c.l.b16 %v3233
    %v3368 = vunpack.c.l.b16 %v3234
    %v3369 = vunpack.c.l.b16 %v3235
    %v3370 = vunpack.c.l.b16 %v3236
    %v3371 = vunpack.c.l.b16 %v3237
    %v3372 = vunpack.c.l.b16 %v3238
    %v3373 = vunpack.c.l.b16 %v3239
    %v3374 = vunpack.c.l.b16 %v3240
    %v3375 = vunpack.c.l.b16 %v3241
    %v3376 = vunpack.c.l.b16 %v3242
    %v3377 = vunpack.c.l.b16 %v3243
    %v3378 = vunpack.c.l.b16 %v3244
    %v3379 = vunpack.c.l.b16 %v3245
    %v3380 = vunpack.c.l.b16 %v3246
    %v3381 = vunpack.c.l.b16 %v3247
    %v3382 = vunpack.c.l.b16 %v3248
    %v3383 = vunpack.c.l.b16 %v3249
    %v3384 = vunpack.c.l.b16 %v3250
    %v3385 = vunpack.c.l.b16 %v3251
    %v3386 = vunpack.c.l.b16 %v3252
    %v3387 = vunpack.c.l.b16 %v3253
    %v3388 = vunpack.c.l.b16 %v3254
    %v3389 = vunpack.c.l.b16 %v3255
    %v3390 = vunpack.c.l.b16 %v3256
    %v3391 = vunpack.c.l.b16 %v3257
    %v3392 = vunpack.c.l.b16 %v3258
    %v3393 = vunpack.c.l.b16 %v3259
    %v3394 = vunpack.c.l.b16 %v3260
    %v3395 = vunpack.c.l.b16 %v3261
    %v3396 = vunpack.c.l.b16 %v3262
    %v3397 = vunpack.c.l.b16 %v3263
    %v3398 = vunpack.c.l.b16 %v3264
    %v3399 = vunpack.c.l.b16 %v3265
    %v3400 = vunpack.c.l.b16 %v3266
    %v3401 = vunpack.c.l.b16 %v3267
    %v3402 = vunpack.c.l.b16 %v3268
    %v3403 = vunpack.c.l.b16 %v3269
    %v3404 = vunpack.c.l.b16 %v3270
    %v3405 = vunpack.c.l.b16 %v3271
    %v3406 = vunpack.c.l.b16 %v3272
    %v3407 = vunpack.c.l.b16 %v3273
    %v3408 = vunpack.c.l.b16 %v3274
    %v3409 = vunpack.c.l.b16 %v3275
    %v3410 = vunpack.c.l.b16 %v3276
    %v3411 = vunpack.c.l.b16 %v3277
    %v3412 = vunpack.c.l.b16 %v3278
    %v3413 = vunpack.c.l.b16 %v3279
    %v3414 = vunpack.c.l.b16 %v3280
    %v3415 = vunpack.c.l.b16 %v3281
    %v3416 = vunpack.c.l.b16 %v3282
    %v3417 = vunpack.c.l.b16 %v3283
    %v3418 = vunpack.c.l.b16 %v3284
    %v3419 = vunpack.c.l.b16 %v3285
    %v3420 = vunpack.c.l.b16 %v3286
    %v3421 = vunpack.c.l.b16 %v3287
    %v3422 = vunpack.c.l.b16 %v3288
    %v3423 = vunpack.c.l.b16 %v3289
    %v3424 = vunpack.c.l.b16 %v3290
    %v3425 = vunpack.c.l.b16 %v3291
    %v3426 = vunpack.c.l.b16 %v3292
    %v3427 = vunpack.c.l.b16 %v3293
    %v3428 = vunpack.c.l.b16 %v3294
    %v3429 = vunpack.c.l.b16 %v3295
    %v3430 = vpack.c.b16 %v3367, %v3366
    %v3431 = vpack.c.b16 %v3369, %v3368
    %v3432 = vpack.c.b16 %v3371, %v3370
    %v3433 = vpack.c.b16 %v3373, %v3372
    %v3434 = vpack.c.b16 %v3375, %v3374
    %v3435 = vpack.c.b16 %v3377, %v3376
    %v3436 = vpack.c.b16 %v3379, %v3378
    %v3437 = vpack.c.b16 %v3381, %v3380
    %v3438 = vpack.c.b16 %v3383, %v3382
    %v3439 = vpack.c.b16 %v3385, %v3384
    %v3440 = vpack.c.b16 %v3387, %v3386
    %v3441 = vpack.c.b16 %v3389, %v3388
    %v3442 = vpack.c.b16 %v3391, %v3390
    %v3443 = vpack.c.b16 %v3393, %v3392
    %v3444 = vpack.c.b16 %v3395, %v3394
    %v3445 = vpack.c.b16 %v3397, %v3396
    %v3446 = vpack.c.b16 %v3399, %v3398
    %v3447 = vpack.c.b16 %v3401, %v3400
    %v3448 = vpack.c.b16 %v3403, %v3402
    %v3449 = vpack.c.b16 %v3405, %v3404
    %v3450 = vpack.c.b16 %v3407, %v3406
    %v3451 = vpack.c.b16 %v3409, %v3408
    %v3452 = vpack.c.b16 %v3411, %v3410
    %v3453 = vpack.c.b16 %v3413, %v3412
    %v3454 = vpack.c.b16 %v3415, %v3414
    %v3455 = vpack.c.b16 %v3417, %v3416
    %v3456 = vpack.c.b16 %v3419, %v3418
    %v3457 = vpack.c.b16 %v3421, %v3420
    %v3458 = vpack.c.b16 %v3423, %v3422
    %v3459 = vpack.c.b16 %v3425, %v3424
    %v3460 = vpack.c.b16 %v3427, %v3426
    %v3461 = vpack.c.b16 %v3429, %v3428
    %3494 = vmatpush.bf16.msra.mxu0 %v3437
    %3495 = vmatpush.bf16.msra.mxu0 %v3436
    %3496 = vmatpush.bf16.msra.mxu0 %v3435
    %3497 = vmatpush.bf16.msra.mxu0 %v3434
    %3498 = vmatpush.bf16.msra.mxu0 %v3433
    %3499 = vmatpush.bf16.msra.mxu0 %v3432
    %3500 = vmatpush.bf16.msra.mxu0 %v3431
    %3501 = vmatpush.bf16.msra.mxu0 %v3430
    %3502 = vmatmul.bf16.gmra.mxu0 %v3296
    %v3503 = vpop.f32.mrf.mxu0
    %v3504 = vadd.f32 %v3301, %v3503
    %v3505 = vpop.f32.mrf.mxu0
    %v3506 = vadd.f32 %v3301, %v3505
    %3507 = vdwg.mxu0
    %3508 = vmatpush.bf16.msra.mxu0 %v3445
    %3509 = vmatpush.bf16.msra.mxu0 %v3444
    %3510 = vmatpush.bf16.msra.mxu0 %v3443
    %3511 = vmatpush.bf16.msra.mxu0 %v3442
    %3512 = vmatpush.bf16.msra.mxu0 %v3441
    %3513 = vmatpush.bf16.msra.mxu0 %v3440
    %3514 = vmatpush.bf16.msra.mxu0 %v3439
    %3515 = vmatpush.bf16.msra.mxu0 %v3438
    %3516 = vmatmul.bf16.gmra.mxu0 %v3297
    %v3517 = vpop.f32.mrf.mxu0
    %v3518 = vadd.f32 %v3504, %v3517
    %v3519 = vpop.f32.mrf.mxu0
    %v3520 = vadd.f32 %v3506, %v3519
    %3521 = vdwg.mxu0
    %3522 = vmatpush.bf16.msra.mxu0 %v3453
    %3523 = vmatpush.bf16.msra.mxu0 %v3452
    %3524 = vmatpush.bf16.msra.mxu0 %v3451
    %3525 = vmatpush.bf16.msra.mxu0 %v3450
    %3526 = vmatpush.bf16.msra.mxu0 %v3449
    %3527 = vmatpush.bf16.msra.mxu0 %v3448
    %3528 = vmatpush.bf16.msra.mxu0 %v3447
    %3529 = vmatpush.bf16.msra.mxu0 %v3446
    %3530 = vmatmul.bf16.gmra.mxu0 %v3298
    %v3531 = vpop.f32.mrf.mxu0
    %v3532 = vadd.f32 %v3518, %v3531
    %v3533 = vpop.f32.mrf.mxu0
    %v3534 = vadd.f32 %v3520, %v3533
    %3535 = vdwg.mxu0
    %3536 = vmatpush.bf16.msra.mxu0 %v3461
    %3537 = vmatpush.bf16.msra.mxu0 %v3460
    %3538 = vmatpush.bf16.msra.mxu0 %v3459
    %3539 = vmatpush.bf16.msra.mxu0 %v3458
    %3540 = vmatpush.bf16.msra.mxu0 %v3457
    %3541 = vmatpush.bf16.msra.mxu0 %v3456
    %3542 = vmatpush.bf16.msra.mxu0 %v3455
    %3543 = vmatpush.bf16.msra.mxu0 %v3454
    %3544 = vmatmul.bf16.gmra.mxu0 %v3299
    %v3545 = vpop.f32.mrf.mxu0
    %v3546 = vadd.f32 %v3532, %v3545
    %v3547 = vpop.f32.mrf.mxu0
    %v3548 = vadd.f32 %v3534, %v3547
    %3549 = vdwg.mxu0
    %v3550 = vadd.f32 %v2898, %v3546
    %v3551 = vadd.f32 %v2899, %v3548
    %v3552 = vld [vmem:[%s2 + $0x1b] sm:$0x1]
    %v3553 = vld [vmem:[%s2 + $0x1c] sm:$0x1]
    %3554 = vadd.xlane.f32.xlu0 %v3550
    %v3555 = vpop.xlane.xlu0 %3554
    %3556 = vadd.xlane.f32.xlu0 %v3551
    %v3557 = vpop.xlane.xlu0 %3556
    %v3558 = vmul.f32 %v3555, %v174
    %v3559 = vmul.f32 %v3557, %v174
    %v3560 = vsub.f32 %v3550, %v3558
    %v3561 = vsub.f32 %v3551, %v3559
    %v3562 = vmul.f32 %v3560, %v3560
    %v3563 = vmul.f32 %v3561, %v3561
    %3564 = vadd.xlane.f32.xlu0 %v3562
    %v3565 = vpop.xlane.xlu0 %3564
    %3566 = vadd.xlane.f32.xlu0 %v3563
    %v3567 = vpop.xlane.xlu0 %3566
    %v3568 = vmul.f32 %v3565, %v174
    %v3569 = vmul.f32 %v3567, %v174
    %v3570 = vadd.f32 %v3568, 1e-05
    %v3571 = vadd.f32 %v3569, 1e-05
    %v3572 = vrsqrt.pop %v3570
    %v3573 = vmul.f32 %v3572, %v3570
    %v3574 = vmul.f32 %v3573, %v3572
    %v3575 = vmul.f32 0.5, %v3574
    %v3576 = vsub.f32 1.5, %v3575
    %v3577 = vmul.f32 %v3572, %v3576
    %vm3578 = vweird.f32 %v3570
    %vm3579 = vweird.f32 %v3572
    %vm3580 = vmor %vm3578, %vm3579
    %v3581 = vsel %vm3580, %v3572, %v3577
    %v3582 = vrsqrt.pop %v3571
    %v3583 = vmul.f32 %v3582, %v3571
    %v3584 = vmul.f32 %v3583, %v3582
    %v3585 = vmul.f32 0.5, %v3584
    %v3586 = vsub.f32 1.5, %v3585
    %v3587 = vmul.f32 %v3582, %v3586
    %vm3588 = vweird.f32 %v3571
    %vm3589 = vweird.f32 %v3582
    %vm3590 = vmor %vm3588, %vm3589
    %v3591 = vsel %vm3590, %v3582, %v3587
    %v3592 = vmul.f32 %v3560, %v3581
    %v3593 = vmul.f32 %v3561, %v3591
    %v3594 = vperm.slane %v3552, 0
    %v3595 = vmul.f32 %v3592, %v3594
    %v3596 = vmul.f32 %v3593, %v3594
    %v3597 = vperm.slane %v3553, 0
    %v3598 = vadd.f32 %v3595, %v3597
    %v3599 = vadd.f32 %v3596, %v3597
    %v3600 = vld [vmem:[%s2 + $0x1e] sm:$0x1]
    %v3601 = vld [vmem:[%s2 + $0x1f] sm:$0x1]
    %3602 = vadd.xlane.f32.xlu0 %v3598
    %v3603 = vpop.xlane.xlu0 %3602
    %3604 = vadd.xlane.f32.xlu0 %v3599
    %v3605 = vpop.xlane.xlu0 %3604
    %v3606 = vmul.f32 %v3603, %v174
    %v3607 = vmul.f32 %v3605, %v174
    %v3608 = vsub.f32 %v3598, %v3606
    %v3609 = vsub.f32 %v3599, %v3607
    %v3610 = vmul.f32 %v3608, %v3608
    %v3611 = vmul.f32 %v3609, %v3609
    %3612 = vadd.xlane.f32.xlu0 %v3610
    %v3613 = vpop.xlane.xlu0 %3612
    %3614 = vadd.xlane.f32.xlu0 %v3611
    %v3615 = vpop.xlane.xlu0 %3614
    %v3616 = vmul.f32 %v3613, %v174
    %v3617 = vmul.f32 %v3615, %v174
    %v3618 = vadd.f32 %v3616, 1e-05
    %v3619 = vadd.f32 %v3617, 1e-05
    %v3620 = vrsqrt.pop %v3618
    %v3621 = vmul.f32 %v3620, %v3618
    %v3622 = vmul.f32 %v3621, %v3620
    %v3623 = vmul.f32 0.5, %v3622
    %v3624 = vsub.f32 1.5, %v3623
    %v3625 = vmul.f32 %v3620, %v3624
    %vm3626 = vweird.f32 %v3618
    %vm3627 = vweird.f32 %v3620
    %vm3628 = vmor %vm3626, %vm3627
    %v3629 = vsel %vm3628, %v3620, %v3625
    %v3630 = vrsqrt.pop %v3619
    %v3631 = vmul.f32 %v3630, %v3619
    %v3632 = vmul.f32 %v3631, %v3630
    %v3633 = vmul.f32 0.5, %v3632
    %v3634 = vsub.f32 1.5, %v3633
    %v3635 = vmul.f32 %v3630, %v3634
    %vm3636 = vweird.f32 %v3619
    %vm3637 = vweird.f32 %v3630
    %vm3638 = vmor %vm3636, %vm3637
    %v3639 = vsel %vm3638, %v3630, %v3635
    %v3640 = vmul.f32 %v3608, %v3629
    %v3641 = vmul.f32 %v3609, %v3639
    %v3642 = vperm.slane %v3600, 0
    %v3643 = vmul.f32 %v3640, %v3642
    %v3644 = vmul.f32 %v3641, %v3642
    %v3645 = vperm.slane %v3601, 0
    %v3646 = vadd.f32 %v3643, %v3645
    %v3647 = vadd.f32 %v3644, %v3645
    %v3648 = vld [vmem:[#allocation10] sm:$0xf]
    %v3649 = vld [vmem:[#allocation10 + $0xc] sm:$0xf]
    %v3650 = vld [vmem:[#allocation10 + $0x18] sm:$0xf]
    %v3651 = vld [vmem:[#allocation10 + $0x24] sm:$0xf]
    %v3652 = vld [vmem:[#allocation10 + $0x30] sm:$0xf]
    %v3653 = vld [vmem:[#allocation10 + $0x3c] sm:$0xf]
    %v3654 = vld [vmem:[#allocation10 + $0x48] sm:$0xf]
    %v3655 = vld [vmem:[#allocation10 + $0x54] sm:$0xf]
    %v3656 = vld [vmem:[#allocation10 + $0x60] sm:$0xf]
    %v3657 = vld [vmem:[#allocation10 + $0x6c] sm:$0xf]
    %v3658 = vld [vmem:[#allocation10 + $0x78] sm:$0xf]
    %v3659 = vld [vmem:[#allocation10 + $0x84] sm:$0xf]
    %v3660 = vld [vmem:[#allocation10 + $0x90] sm:$0xf]
    %v3661 = vld [vmem:[#allocation10 + $0x9c] sm:$0xf]
    %v3662 = vld [vmem:[#allocation10 + $0xa8] sm:$0xf]
    %v3663 = vld [vmem:[#allocation10 + $0xb4] sm:$0xf]
    %v3664 = vpack.c.bf16 %v3647, %v3646
    %v3665 = vld [vmem:[#allocation2] sm:$0x1]
    %v3666 = vperm.slane %v3665, 0
    %v3683 = vunpack.c.l.b16 %v3648
    %v3684 = vunpack.c.l.b16 %v3649
    %v3685 = vunpack.c.l.b16 %v3650
    %v3686 = vunpack.c.l.b16 %v3651
    %v3687 = vunpack.c.l.b16 %v3652
    %v3688 = vunpack.c.l.b16 %v3653
    %v3689 = vunpack.c.l.b16 %v3654
    %v3690 = vunpack.c.l.b16 %v3655
    %v3691 = vunpack.c.l.b16 %v3656
    %v3692 = vunpack.c.l.b16 %v3657
    %v3693 = vunpack.c.l.b16 %v3658
    %v3694 = vunpack.c.l.b16 %v3659
    %v3695 = vunpack.c.l.b16 %v3660
    %v3696 = vunpack.c.l.b16 %v3661
    %v3697 = vunpack.c.l.b16 %v3662
    %v3698 = vunpack.c.l.b16 %v3663
    %v3699 = vpack.c.b16 %v3684, %v3683
    %v3700 = vpack.c.b16 %v3686, %v3685
    %v3701 = vpack.c.b16 %v3688, %v3687
    %v3702 = vpack.c.b16 %v3690, %v3689
    %v3703 = vpack.c.b16 %v3692, %v3691
    %v3704 = vpack.c.b16 %v3694, %v3693
    %v3705 = vpack.c.b16 %v3696, %v3695
    %v3706 = vpack.c.b16 %v3698, %v3697
    %3715 = vmatpush.bf16.msra.mxu0 %v3706
    %3716 = vmatpush.bf16.msra.mxu0 %v3705
    %3717 = vmatpush.bf16.msra.mxu0 %v3704
    %3718 = vmatpush.bf16.msra.mxu0 %v3703
    %3719 = vmatpush.bf16.msra.mxu0 %v3702
    %3720 = vmatpush.bf16.msra.mxu0 %v3701
    %3721 = vmatpush.bf16.msra.mxu0 %v3700
    %3722 = vmatpush.bf16.msra.mxu0 %v3699
    %3723 = vmatmul.bf16.gmra.mxu0 %v3664
    %v3724 = vpop.f32.mrf.mxu0
    %v3725 = vadd.f32 %v3666, %v3724
    %v3726 = vpop.f32.mrf.mxu0
    %v3727 = vadd.f32 %v3666, %v3726
    %3728 = vdwg.mxu0
    %v3729 = vtanh.pop %v3725
    %v3730 = vtanh.pop %v3727
    %v3731 = vld [vmem:[#allocation2 + $0x1] sm:$0x1]
    %v3732 = vperm.slane %v3731, 0
    %v3733 = vmul.f32 %v3729, %v3732
    %v3734 = vmul.f32 %v3730, %v3732
    %3735 = vadd.xlane.f32.xlu0 %v3733
    %v3736 = vpop.xlane.xlu0 %3735
    %3737 = vadd.xlane.f32.xlu0 %v3734
    %v3738 = vpop.xlane.xlu0 %3737
    %v3739 = vld [vmem:[#allocation2 + $0x2] sm:$0x1]
    %v3740 = vperm.slane %v3739, 0
    %v3741 = vadd.f32 %v3736, %v3740
    %v3742 = vadd.f32 %v3738, %v3740
    %vm3743 = vcmask 7168
    %v3744 = vsel %vm3743, %v3741, -inf
    %v3745 = vrot.slane %v3744, 4
    %v3746 = vmax.f32 %v3744, %v3745
    %v3747 = vrot.slane %v3746, 2
    %v3748 = vmax.f32 %v3746, %v3747
    %v3749 = vrot.slane %v3748, 1
    %v3750 = vmax.f32 %v3748, %v3749
    %v3751 = vsel %vm3743, %v3742, -inf
    %v3752 = vrot.slane %v3751, 4
    %v3753 = vmax.f32 %v3751, %v3752
    %v3754 = vrot.slane %v3753, 2
    %v3755 = vmax.f32 %v3753, %v3754
    %v3756 = vrot.slane %v3755, 1
    %v3757 = vmax.f32 %v3755, %v3756
    %v3758 = vsub.f32 %v3741, %v3750
    %v3759 = vsub.f32 %v3742, %v3757
    %v3760 = vmul.f32 %v3758, 1.442695
    %v3761 = vpow.pop %v3760
    %v3762 = vmul.f32 %v3759, 1.442695
    %v3763 = vpow.pop %v3762
    %v3764 = vsel %vm3743, %v3761, 0.0
    %v3765 = vrot.slane %v3764, 4
    %v3766 = vadd.f32 %v3764, %v3765
    %v3767 = vrot.slane %v3766, 2
    %v3768 = vadd.f32 %v3766, %v3767
    %v3769 = vrot.slane %v3768, 1
    %v3770 = vadd.f32 %v3768, %v3769
    %v3771 = vsel %vm3743, %v3763, 0.0
    %v3772 = vrot.slane %v3771, 4
    %v3773 = vadd.f32 %v3771, %v3772
    %v3774 = vrot.slane %v3773, 2
    %v3775 = vadd.f32 %v3773, %v3774
    %v3776 = vrot.slane %v3775, 1
    %v3777 = vadd.f32 %v3775, %v3776
    %v3778 = vrcp.pop %v3770
    %v3779 = vrcp.pop %v3777
    %v3780 = vmul.f32 %v3761, %v3778
    %v3781 = vmul.f32 %v3763, %v3779
    %3783 = vset.pattern.permute.xlu0 0
    %3784 = vperm.xlu0 %3783, %v3780
    %v3785 = vpop.permute.xlu0 %3784
    %3788 = vset.pattern.permute.xlu0 0
    %3789 = vperm.xlu0 %3788, %v3781
    %v3790 = vpop.permute.xlu0 %3789
    %v3792 = vmul.f32 %v3646, %v3785
    %v3793 = vmul.f32 %v3647, %v3790
    %v3794 = vrot.slane %v3792, 4
    %v3795 = vadd.f32 %v3792, %v3794
    %v3796 = vrot.slane %v3795, 2
    %v3797 = vadd.f32 %v3795, %v3796
    %v3798 = vrot.slane %v3797, 1
    %v3799 = vadd.f32 %v3797, %v3798
    %v3800 = vrot.slane %v3793, 4
    %v3801 = vadd.f32 %v3793, %v3800
    %v3802 = vrot.slane %v3801, 2
    %v3803 = vadd.f32 %v3801, %v3802
    %v3804 = vrot.slane %v3803, 1
    %v3805 = vadd.f32 %v3803, %v3804
    %v3806 = vld [vmem:[#allocation10 + $0x4] sm:$0xf]
    %v3807 = vld [vmem:[#allocation10 + $0x10] sm:$0xf]
    %v3808 = vld [vmem:[#allocation10 + $0x1c] sm:$0xf]
    %v3809 = vld [vmem:[#allocation10 + $0x28] sm:$0xf]
    %v3810 = vld [vmem:[#allocation10 + $0x34] sm:$0xf]
    %v3811 = vld [vmem:[#allocation10 + $0x40] sm:$0xf]
    %v3812 = vld [vmem:[#allocation10 + $0x4c] sm:$0xf]
    %v3813 = vld [vmem:[#allocation10 + $0x58] sm:$0xf]
    %v3814 = vld [vmem:[#allocation10 + $0x64] sm:$0xf]
    %v3815 = vld [vmem:[#allocation10 + $0x70] sm:$0xf]
    %v3816 = vld [vmem:[#allocation10 + $0x7c] sm:$0xf]
    %v3817 = vld [vmem:[#allocation10 + $0x88] sm:$0xf]
    %v3818 = vld [vmem:[#allocation10 + $0x94] sm:$0xf]
    %v3819 = vld [vmem:[#allocation10 + $0xa0] sm:$0xf]
    %v3820 = vld [vmem:[#allocation10 + $0xac] sm:$0xf]
    %v3821 = vld [vmem:[#allocation10 + $0xb8] sm:$0xf]
    %v3822 = vpack.c.bf16 %v3799, %v3799
    %v3823 = vpack.c.bf16 %v3805, %v3805
    %v3824 = vld [vmem:[#allocation2 + $0x3] sm:$0x1]
    %v3825 = vperm.slane %v3824, 0
    %v3828 = vunpack.c.l.b16 %v3822
    %v3829 = vunpack.c.l.b16 %v3823
    %vm3830 = vcmask 1041409
    %v3831 = vsel %vm3830, %v3829, %v3828
    %v3832 = vpack.c.b16 %v3831, %v3831
    %v3850 = vunpack.c.l.b16 %v3806
    %v3851 = vunpack.c.l.b16 %v3807
    %v3852 = vunpack.c.l.b16 %v3808
    %v3853 = vunpack.c.l.b16 %v3809
    %v3854 = vunpack.c.l.b16 %v3810
    %v3855 = vunpack.c.l.b16 %v3811
    %v3856 = vunpack.c.l.b16 %v3812
    %v3857 = vunpack.c.l.b16 %v3813
    %v3858 = vunpack.c.l.b16 %v3814
    %v3859 = vunpack.c.l.b16 %v3815
    %v3860 = vunpack.c.l.b16 %v3816
    %v3861 = vunpack.c.l.b16 %v3817
    %v3862 = vunpack.c.l.b16 %v3818
    %v3863 = vunpack.c.l.b16 %v3819
    %v3864 = vunpack.c.l.b16 %v3820
    %v3865 = vunpack.c.l.b16 %v3821
    %v3866 = vpack.c.b16 %v3851, %v3850
    %v3867 = vpack.c.b16 %v3853, %v3852
    %v3868 = vpack.c.b16 %v3855, %v3854
    %v3869 = vpack.c.b16 %v3857, %v3856
    %v3870 = vpack.c.b16 %v3859, %v3858
    %v3871 = vpack.c.b16 %v3861, %v3860
    %v3872 = vpack.c.b16 %v3863, %v3862
    %v3873 = vpack.c.b16 %v3865, %v3864
    %3882 = vmatpush.bf16.msra.mxu0 %v3873
    %3883 = vmatpush.bf16.msra.mxu0 %v3872
    %3884 = vmatpush.bf16.msra.mxu0 %v3871
    %3885 = vmatpush.bf16.msra.mxu0 %v3870
    %3886 = vmatpush.bf16.msra.mxu0 %v3869
    %3887 = vmatpush.bf16.msra.mxu0 %v3868
    %3888 = vmatpush.bf16.msra.mxu0 %v3867
    %3889 = vmatpush.bf16.msra.mxu0 %v3866
    %3890 = vmatmul.bf16.gmra.mxu0 %v3832
    %v3891 = vpop.f32.mrf.mxu0
    %v3892 = vadd.f32 %v3825, %v3891
    %v3893 = vpop.f32.mrf.mxu0
    %3894 = vdwg.mxu0
    %v3895 = vmul.f32 %v3892, 0.5
    %v3896 = vmul.f32 %v3892, 0.044715
    %v3897 = vmul.f32 %v3896, %v3892
    %v3898 = vmul.f32 %v3897, %v3892
    %v3899 = vadd.f32 %v3892, %v3898
    %v3900 = vmul.f32 %v3899, 0.7978846
    %v3901 = vtanh.pop %v3900
    %v3902 = vadd.f32 %v3901, 1.0
    %v3903 = vmul.f32 %v3895, %v3902
    %v3904 = vld [vmem:[#allocation10 + $0x8] sm:$0xf]
    %v3905 = vld [vmem:[#allocation10 + $0x14] sm:$0xf]
    %v3906 = vld [vmem:[#allocation10 + $0x20] sm:$0xf]
    %v3907 = vld [vmem:[#allocation10 + $0x2c] sm:$0xf]
    %v3908 = vld [vmem:[#allocation10 + $0x38] sm:$0xf]
    %v3909 = vld [vmem:[#allocation10 + $0x44] sm:$0xf]
    %v3910 = vld [vmem:[#allocation10 + $0x50] sm:$0xf]
    %v3911 = vld [vmem:[#allocation10 + $0x5c] sm:$0xf]
    %v3912 = vld [vmem:[#allocation10 + $0x68] sm:$0xf]
    %v3913 = vld [vmem:[#allocation10 + $0x74] sm:$0xf]
    %v3914 = vld [vmem:[#allocation10 + $0x80] sm:$0xf]
    %v3915 = vld [vmem:[#allocation10 + $0x8c] sm:$0xf]
    %v3916 = vld [vmem:[#allocation10 + $0x98] sm:$0xf]
    %v3917 = vld [vmem:[#allocation10 + $0xa4] sm:$0xf]
    %v3918 = vld [vmem:[#allocation10 + $0xb0] sm:$0xf]
    %v3919 = vld [vmem:[#allocation10 + $0xbc] sm:$0xf]
    %v3920 = vpack.c.bf16 %v3903, %v3903
    %v3921 = vld [vmem:[#allocation2 + $0x4] sm:$0x1]
    %v3922 = vperm.slane %v3921, 0
    %v3939 = vunpack.c.l.b16 %v3904
    %v3940 = vunpack.c.l.b16 %v3905
    %v3941 = vunpack.c.l.b16 %v3906
    %v3942 = vunpack.c.l.b16 %v3907
    %v3943 = vunpack.c.l.b16 %v3908
    %v3944 = vunpack.c.l.b16 %v3909
    %v3945 = vunpack.c.l.b16 %v3910
    %v3946 = vunpack.c.l.b16 %v3911
    %v3947 = vunpack.c.l.b16 %v3912
    %v3948 = vunpack.c.l.b16 %v3913
    %v3949 = vunpack.c.l.b16 %v3914
    %v3950 = vunpack.c.l.b16 %v3915
    %v3951 = vunpack.c.l.b16 %v3916
    %v3952 = vunpack.c.l.b16 %v3917
    %v3953 = vunpack.c.l.b16 %v3918
    %v3954 = vunpack.c.l.b16 %v3919
    %v3955 = vpack.c.b16 %v3940, %v3939
    %v3956 = vpack.c.b16 %v3942, %v3941
    %v3957 = vpack.c.b16 %v3944, %v3943
    %v3958 = vpack.c.b16 %v3946, %v3945
    %v3959 = vpack.c.b16 %v3948, %v3947
    %v3960 = vpack.c.b16 %v3950, %v3949
    %v3961 = vpack.c.b16 %v3952, %v3951
    %v3962 = vpack.c.b16 %v3954, %v3953
    %3971 = vmatpush.bf16.msra.mxu0 %v3962
    %3972 = vmatpush.bf16.msra.mxu0 %v3961
    %3973 = vmatpush.bf16.msra.mxu0 %v3960
    %3974 = vmatpush.bf16.msra.mxu0 %v3959
    %3975 = vmatpush.bf16.msra.mxu0 %v3958
    %3976 = vmatpush.bf16.msra.mxu0 %v3957
    %3977 = vmatpush.bf16.msra.mxu0 %v3956
    %3978 = vmatpush.bf16.msra.mxu0 %v3955
    %3979 = vmatmul.bf16.gmra.mxu0 %v3920
    %v3980 = vpop.f32.mrf.mxu0
    %v3981 = vadd.f32 %v3922, %v3980
    %v3982 = vpop.f32.mrf.mxu0
    %3983 = vdwg.mxu0
    %v3984 = vmul.f32 %v3981, 0.5
    %v3985 = vmul.f32 %v3981, 0.044715
    %v3986 = vmul.f32 %v3985, %v3981
    %v3987 = vmul.f32 %v3986, %v3981
    %v3988 = vadd.f32 %v3981, %v3987
    %v3989 = vmul.f32 %v3988, 0.7978846
    %v3990 = vtanh.pop %v3989
    %v3991 = vadd.f32 %v3990, 1.0
    %v3992 = vmul.f32 %v3984, %v3991
    %v3993 = vld [vmem:[#allocation2 + $0x6] sm:$0x1]
    %v3994 = vperm.slane %v3993, 0
    %v3995 = vmul.f32 %v3992, %v3994
    %vm3996 = vcmask 1041408
    %v3997 = vsel %vm3996, %v3995, 0.0
    %3998 = vadd.xlane.f32.xlu0 %v3997
    %v3999 = vpop.xlane.xlu0 %3998
    %v4000 = vld [vmem:[#allocation2 + $0x5] sm:$0x1]
    %v4001 = vperm.slane %v4000, 0
    %v4002 = vadd.f32 %v3999, %v4001
    %vm4003 = vcmask 1024
    %4004 = vst.msk [vmem:[%s11] sm:$0x3] %vm4003, %v4002
    // Predicated region
    $region70: #{tpu_custom_call.1} parent=1 // pred_check
      _
    $region71: #{tpu_custom_call.1} parent=1 // pred_check_branch
      %4006 = sbr.rel (0) target = $region73
    $region72: #{tpu_custom_call.1} parent=1 // pred_region
      _
    $region73: #{tpu_custom_call.1} parent=1 // pred_fallthru
      _
    // Predicated region
    $region74: #{tpu_custom_call.1} parent=1 // pred_check
      _
    $region75: #{tpu_custom_call.1} parent=1 // pred_check_branch
      %4008 = sbr.rel (0) target = $region77
    $region76: #{tpu_custom_call.1} parent=1 // pred_region
      _
    $region77: #{tpu_custom_call.1} parent=1 // pred_fallthru
      _
    %4009 = vsyncpa [#allocation3], 1
    %4010 = vsyncpa [#allocation5], 1
    %4011 = vsyncpa [#allocation8], 1
    %4012 = vsyncpa [#allocation11], 1

</llo_original>
